<compile_context>
chip_gen: v7x
topology: tpu7x:2x2x1
jax: 0.10.0
libtpu: 0.0.40
codegen_flags: <defaults>
</compile_context>

<pallas_src>
import jax
import jax.numpy as jnp
import numpy as np
from jax.experimental import pallas as pl
from jax.experimental.pallas import tpu as pltpu


def _round_up(x, m):
    return ((x + m - 1) // m) * m


def _time_chunk(T, max_chunk=32):
    """Largest divisor of T that is <= max_chunk (bounds per-chunk VMEM)."""
    tc = min(T, max_chunk)
    while T % tc != 0:
        tc -= 1
    return tc


# ----------------------------- fused forward kernel ---------------------------

def fused_rnn_kernel(tok_ref, enc_ref, wih_ref, whh_ref, b_ref, h0_ref, c0_ref,
                     dw_ref, db_ref,
                     logits_ref, hT_ref, cT_ref,
                     y_scr, xg_scr, h_scr, c_scr):
    l = pl.program_id(0)                 # layer (outer, "arbitrary")
    tc = pl.program_id(1)                # time chunk (inner, "arbitrary")
    n_layers = pl.num_programs(0)
    n_chunks = pl.num_programs(1)

    BP, HP = h_scr.shape                 # padded batch, padded hidden
    TCB, G = xg_scr.shape                # chunk rows (TC*BP), 4*HP
    VP = enc_ref.shape[0]                # padded vocab
    TC = TCB // BP                       # timesteps per chunk (static)

    base = pl.multiple_of(tc * TCB, TCB)  # row offset of this chunk in y_scr

    # --- hoisted input projection (+ bias) for the whole chunk: one MXU matmul
    @pl.when(l == 0)
    def _():
        # In-kernel embedding gather via one-hot matmul: token ids (4 B each)
        # are the only activation DMA'd from HBM; bf16 table stays in VMEM.
        tok = tok_ref[...]                                         # (TCB, 1) i32
        lane = jax.lax.broadcasted_iota(jnp.int32, (TCB, VP), 1)
        onehot = jnp.where(lane == tok, 1.0, 0.0).astype(jnp.bfloat16)
        emb = jnp.dot(onehot, enc_ref[...],
                      preferred_element_type=jnp.float32)          # exact rows
        xg_scr[...] = (jnp.dot(emb.astype(jnp.bfloat16), wih_ref[0],
                               preferred_element_type=jnp.float32)
                       + b_ref[0])

    @pl.when(l > 0)
    def _():
        x_in = y_scr[pl.ds(base, TCB), :].astype(jnp.bfloat16)
        xg_scr[...] = (jnp.dot(x_in, wih_ref[0],
                               preferred_element_type=jnp.float32)
                       + b_ref[0])

    # --- reset recurrent state at the first chunk of each layer
    @pl.when(tc == 0)
    def _():
        h_scr[...] = h0_ref[0]
        c_scr[...] = c0_ref[0]

    # --- serial recurrence over this chunk (h/c carried in registers)
    def step(t, carry):
        h, c = carry
        row = pl.multiple_of(t * BP, BP)
        gates = xg_scr[pl.ds(row, BP), :] + jnp.dot(
            h.astype(jnp.bfloat16), whh_ref[0],
            preferred_element_type=jnp.float32)                    # (BP, 4*HP)
        # gate lane layout (i, f, o, g): one wide sigmoid + one tanh
        sig = jax.nn.sigmoid(gates[:, :3 * HP])
        i_g = sig[:, 0 * HP:1 * HP]
        f_g = sig[:, 1 * HP:2 * HP]
        o_g = sig[:, 2 * HP:3 * HP]
        g_g = jnp.tanh(gates[:, 3 * HP:])
        c_new = f_g * c + i_g * g_g
        h_new = o_g * jnp.tanh(c_new)
        y_scr[pl.ds(pl.multiple_of(base + row, BP), BP), :] = h_new
        return (h_new, c_new)

    h_fin, c_fin = jax.lax.fori_loop(0, TC, step, (h_scr[...], c_scr[...]),
                                     unroll=min(TC, 8))
    h_scr[...] = h_fin
    c_scr[...] = c_fin

    # --- final hidden state: written once per layer
    @pl.when(tc == n_chunks - 1)
    def _():
        hT_ref[0] = h_fin
        cT_ref[0] = c_fin

    # --- decoder on the last layer only, per chunk (lane-dense output)
    @pl.when(l == n_layers - 1)
    def _():
        y_chunk = y_scr[pl.ds(base, TCB), :].astype(jnp.bfloat16)
        logits_ref[...] = (jnp.dot(y_chunk, dw_ref[...],
                                   preferred_element_type=jnp.float32)
                           + db_ref[...])


def fused_forward_call(tok_flat, enc_p, h0p, c0p, wih_p, whh_p, b_p,
                       dec_w_p, dec_b_p, *, T, BP, max_time_chunk=32):
    L, _, HP = h0p.shape
    G = wih_p.shape[2]
    OP = dec_w_p.shape[1]
    VP = enc_p.shape[0]

    TC = _time_chunk(T, max_time_chunk)
    NC = T // TC
    TCB = TC * BP

    # VMEM budget: blocks are double-buffered by default; add slack for
    # (8,128) tile padding.  Keeps bigger shapes within the scoped limit
    # instead of the 16/32 MiB defaults.
    block_bytes = (TCB * 4                       # token ids
                   + VP * HP * 2                 # embedding table (bf16)
                   + 2 * HP * G * 2              # W_ih + W_hh (bf16)
                   + G * 4                       # bias
                   + 2 * BP * HP * 4             # h0 + c0
                   + HP * OP * 2 + OP * 4        # decoder W + b
                   + TCB * OP * 4                # logits chunk
                   + 2 * BP * HP * 4)            # hT + cT
    scratch_bytes = (T * BP * HP + TCB * G + 2 * BP * HP) * 4
    vmem_limit = int(min(128 * 1024 * 1024,
                         max(4 * block_bytes + 2 * scratch_bytes + (4 << 20),
                             16 * 1024 * 1024)))

    grid_spec = pltpu.PrefetchScalarGridSpec(
        num_scalar_prefetch=0,
        grid=(L, NC),
        in_specs=[
            pl.BlockSpec((TCB, 1), lambda l, tc: (tc, 0)),       # token ids
            pl.BlockSpec((VP, HP), lambda l, tc: (0, 0)),        # emb table bf16
            pl.BlockSpec((1, HP, G), lambda l, tc: (l, 0, 0)),   # W_ih^T bf16
            pl.BlockSpec((1, HP, G), lambda l, tc: (l, 0, 0)),   # W_hh^T bf16
            pl.BlockSpec((1, 1, G), lambda l, tc: (l, 0, 0)),    # bias (ih+hh)
            pl.BlockSpec((1, BP, HP), lambda l, tc: (l, 0, 0)),  # h0
            pl.BlockSpec((1, BP, HP), lambda l, tc: (l, 0, 0)),  # c0
            pl.BlockSpec((HP, OP), lambda l, tc: (0, 0)),        # decoder W^T
            pl.BlockSpec((1, OP), lambda l, tc: (0, 0)),         # decoder bias
        ],
        out_specs=(
            pl.BlockSpec((TCB, OP), lambda l, tc: (tc, 0)),      # logits chunk
            pl.BlockSpec((1, BP, HP), lambda l, tc: (l, 0, 0)),  # h_T
            pl.BlockSpec((1, BP, HP), lambda l, tc: (l, 0, 0)),  # c_T
        ),
        scratch_shapes=[
            pltpu.VMEM((T * BP, HP), jnp.float32),   # inter-layer activations
            pltpu.VMEM((TCB, G), jnp.float32),       # per-chunk input projection
            pltpu.VMEM((BP, HP), jnp.float32),       # h carry
            pltpu.VMEM((BP, HP), jnp.float32),       # c carry
        ],
    )
    return pl.pallas_call(
        fused_rnn_kernel,
        out_shape=(
            jax.ShapeDtypeStruct((T * BP, OP), jnp.float32),
            jax.ShapeDtypeStruct((L, BP, HP), jnp.float32),
            jax.ShapeDtypeStruct((L, BP, HP), jnp.float32),
        ),
        grid_spec=grid_spec,
        compiler_params=pltpu.CompilerParams(
            dimension_semantics=("arbitrary", "arbitrary"),
            vmem_limit_bytes=vmem_limit),
    )(tok_flat, enc_p, wih_p, whh_p, b_p, h0p, c0p, dec_w_p, dec_b_p)


# ------------------------------ parameter setup --------------------------------

def init_params(key, input_size, hidden_size, output_size, n_layers):
    H = hidden_size
    keys = jax.random.split(key, 2 + 2 * n_layers)

    def xavier(k, shape):
        fan_out, fan_in = shape
        limit = float(np.sqrt(6.0 / (fan_in + fan_out)))
        return jax.random.uniform(k, shape, jnp.float32, -limit, limit)

    enc = xavier(keys[0], (input_size, H))                 # Embedding weight
    dec_w = xavier(keys[1], (output_size, H))              # Linear weight
    dec_b = jnp.zeros((output_size,), jnp.float32)

    # nn.init.constant_(bias, 0); forget gate bias = 1 in both b_ih and b_hh
    # -> folded (summed) bias has 2.0 in the f-gate slot.
    bias = jnp.zeros((4 * H,), jnp.float32).at[H:2 * H].set(2.0)

    ortho = jax.nn.initializers.orthogonal()   # nn.init.orthogonal_ equivalent
    w_ih_t, w_hh_t, b = [], [], []
    for l in range(n_layers):
        w_ih = ortho(keys[2 + 2 * l], (4 * H, H), jnp.float32)
        w_hh = ortho(keys[3 + 2 * l], (4 * H, H), jnp.float32)
        w_ih_t.append(w_ih.T.astype(jnp.bfloat16))         # (H, 4H) bf16 MXU operand
        w_hh_t.append(w_hh.T.astype(jnp.bfloat16))
        b.append(bias)

    return {"enc": enc,
            "dec_w_t": dec_w.T.astype(jnp.bfloat16),        # (H, O) bf16
            "dec_b": dec_b,
            "w_ih_t": w_ih_t, "w_hh_t": w_hh_t, "b": b}


def pad_params(params, V, H, O, n_layers):
    """Kernel-space params: zero-padded to (8,128) tiles, gates laid out (i,f,o,g)."""
    HP = _round_up(H, 128)
    OP = _round_up(O, 128)
    VP = _round_up(V, 128)
    G = 4 * HP

    enc_p = jnp.zeros((VP, HP), jnp.bfloat16).at[:V, :H].set(
        params["enc"].astype(jnp.bfloat16))

    # PyTorch gate order is (i, f, g, o); kernel lane slots are (i, f, o, g) so
    # one wide sigmoid covers lanes [:3*HP] and one tanh covers [3*HP:].
    src_for_slot = (0, 1, 3, 2)

    wih_p = jnp.zeros((n_layers, HP, G), jnp.bfloat16)
    whh_p = jnp.zeros((n_layers, HP, G), jnp.bfloat16)
    b_p = jnp.zeros((n_layers, 1, G), jnp.float32)
    for l in range(n_layers):
        for slot, src in enumerate(src_for_slot):
            wih_p = wih_p.at[l, :H, slot * HP:slot * HP + H].set(
                params["w_ih_t"][l][:, src * H:(src + 1) * H])
            whh_p = whh_p.at[l, :H, slot * HP:slot * HP + H].set(
                params["w_hh_t"][l][:, src * H:(src + 1) * H])
            b_p = b_p.at[l, 0, slot * HP:slot * HP + H].set(
                params["b"][l][src * H:(src + 1) * H])

    dec_w_p = jnp.zeros((HP, OP), jnp.bfloat16).at[:H, :O].set(params["dec_w_t"])
    dec_b_p = jnp.zeros((1, OP), jnp.float32).at[0, :O].set(params["dec_b"])

    return {"enc_p": enc_p, "wih_p": wih_p, "whh_p": whh_p, "b_p": b_p,
            "dec_w_p": dec_w_p, "dec_b_p": dec_b_p,
            "HP": HP, "OP": OP, "VP": VP}


# -------------------------------- forward pass --------------------------------

def smiles_rnn_forward(kparams, x_tokens, hidden, H, O, max_time_chunk=32):
    h0, c0 = hidden                                        # (L, B, H)
    L, B, _ = h0.shape
    T = x_tokens.shape[1]
    HP, OP = kparams["HP"], kparams["OP"]
    BP = _round_up(B, 8)

    # Only token ids travel to the kernel (time-major, batch-padded).  Pad
    # value -1 never matches the in-kernel one-hot -> padded rows get zero
    # embeddings, so padded batch rows stay numerically inert (h = c = 0).
    tok_tm = jnp.pad(x_tokens.T.astype(jnp.int32), ((0, 0), (0, BP - B)),
                     constant_values=-1)                   # (T, BP)
    tok_flat = tok_tm.reshape(T * BP, 1)

    h0p = jnp.pad(h0, ((0, 0), (0, BP - B), (0, HP - H)))
    c0p = jnp.pad(c0, ((0, 0), (0, BP - B), (0, HP - H)))

    logits_p, hT_p, cT_p = fused_forward_call(
        tok_flat, kparams["enc_p"], h0p, c0p, kparams["wih_p"],
        kparams["whh_p"], kparams["b_p"], kparams["dec_w_p"],
        kparams["dec_b_p"], T=T, BP=BP, max_time_chunk=max_time_chunk)

    logits = logits_p.reshape(T, BP, OP)[:, :B, :O].transpose(1, 0, 2)  # (B,T,O)
    return logits, (hT_p[:, :B, :H], cT_p[:, :B, :H])


# ------------------------------ pure-JAX reference -----------------------------

def ref_forward(params, x_tokens, hidden, n_layers, H):
    h0, c0 = hidden
    x = jnp.take(params["enc"], x_tokens, axis=0)          # (B, T, H) f32
    hs, cs = [], []
    for l in range(n_layers):
        w_ih, w_hh = params["w_ih_t"][l], params["w_hh_t"][l]
        b = params["b"][l]

        def step(carry, x_t, w_ih=w_ih, w_hh=w_hh, b=b):
            h, c = carry
            g = (jnp.dot(x_t.astype(jnp.bfloat16), w_ih,
                         preferred_element_type=jnp.float32)
                 + jnp.dot(h.astype(jnp.bfloat16), w_hh,
                           preferred_element_type=jnp.float32)
                 + b)
            i = jax.nn.sigmoid(g[:, :H])
            f = jax.nn.sigmoid(g[:, H:2 * H])
            gg = jnp.tanh(g[:, 2 * H:3 * H])
            o = jax.nn.sigmoid(g[:, 3 * H:])
            c = f * c + i * gg
            h = o * jnp.tanh(c)
            return (h, c), h

        (hT, cT), ys = jax.lax.scan(step, (h0[l], c0[l]),
                                    jnp.transpose(x, (1, 0, 2)))
        x = jnp.transpose(ys, (1, 0, 2))
        hs.append(hT)
        cs.append(cT)
    logits = (jnp.dot(x.astype(jnp.bfloat16), params["dec_w_t"],
                      preferred_element_type=jnp.float32) + params["dec_b"])
    return logits, (jnp.stack(hs), jnp.stack(cs))


# ----------------------------------- main --------------------------------------

if __name__ == "__main__":
    input_size = 16    # vocab
    hidden_size = 32
    output_size = 16
    n_layers = 2
    B, T = 2, 8

    key = jax.random.PRNGKey(0)
    pkey, tkey = jax.random.split(key)
    params = init_params(pkey, input_size, hidden_size, output_size, n_layers)
    kparams = pad_params(params, input_size, hidden_size, output_size, n_layers)

    x_tokens = jax.random.randint(tkey, (B, T), 0, input_size, dtype=jnp.int32)
    hidden = (jnp.zeros((n_layers, B, hidden_size), jnp.float32),
              jnp.zeros((n_layers, B, hidden_size), jnp.float32))

    # max_time_chunk=4 so the toy run (T=8) exercises the chunked-projection /
    # h-c carry path (production default is 32 timesteps per chunk).
    logits, (h_out, c_out) = smiles_rnn_forward(
        kparams, x_tokens, hidden, hidden_size, output_size, max_time_chunk=4)
    jax.block_until_ready((logits, h_out, c_out))

    ref_logits, (ref_h, ref_c) = ref_forward(params, x_tokens, hidden,
                                             n_layers, hidden_size)
    np.testing.assert_allclose(np.asarray(logits), np.asarray(ref_logits),
                               rtol=2e-3, atol=2e-3)
    np.testing.assert_allclose(np.asarray(h_out), np.asarray(ref_h),
                               rtol=2e-3, atol=2e-3)
    np.testing.assert_allclose(np.asarray(c_out), np.asarray(ref_c),
                               rtol=2e-3, atol=2e-3)

    assert logits.shape == (B, T, output_size)
    assert h_out.shape == (n_layers, B, hidden_size)
    assert c_out.shape == (n_layers, B, hidden_size)
    print("KERNEL_OK")
</pallas_src>

<mosaic_0001>
module attributes {stable_mosaic.version = 11 : i64} {
  func.func @fused_rnn_kernel(%arg0: i32, %arg1: i32, %arg2: memref<32x1xi32, #tpu.memory_space<vmem>>, %arg3: memref<128x128xbf16, #tpu.memory_space<vmem>>, %arg4: memref<1x128x512xbf16, #tpu.memory_space<vmem>>, %arg5: memref<1x128x512xbf16, #tpu.memory_space<vmem>>, %arg6: memref<1x1x512xf32, #tpu.memory_space<vmem>>, %arg7: memref<1x8x128xf32, #tpu.memory_space<vmem>>, %arg8: memref<1x8x128xf32, #tpu.memory_space<vmem>>, %arg9: memref<128x128xbf16, #tpu.memory_space<vmem>>, %arg10: memref<1x128xf32, #tpu.memory_space<vmem>>, %arg11: memref<32x128xf32, #tpu.memory_space<vmem>>, %arg12: memref<1x8x128xf32, #tpu.memory_space<vmem>>, %arg13: memref<1x8x128xf32, #tpu.memory_space<vmem>>, %arg14: memref<64x128xf32, #tpu.memory_space<vmem>>, %arg15: memref<32x512xf32, #tpu.memory_space<vmem>>, %arg16: memref<8x128xf32, #tpu.memory_space<vmem>>, %arg17: memref<8x128xf32, #tpu.memory_space<vmem>>) attributes {dimension_semantics = [#tpu.dimension_semantics<arbitrary>, #tpu.dimension_semantics<arbitrary>], iteration_bounds = array<i64: 2, 2>, scalar_prefetch = 0 : i64, scratch_operands = 4 : i64, tpu.core_type = #tpu.core_type<tc>, window_params = [{transform_indices = @transform_0, window_bounds = array<i64: 32, 1>}, {pipeline_mode = #tpu.pipeline_mode<synchronous>, transform_indices = @transform_1, window_bounds = array<i64: 128, 128>}, {transform_indices = @transform_2, window_bounds = array<i64: 1, 128, 512>}, {transform_indices = @transform_3, window_bounds = array<i64: 1, 128, 512>}, {transform_indices = @transform_4, window_bounds = array<i64: 1, 1, 512>}, {transform_indices = @transform_5, window_bounds = array<i64: 1, 8, 128>}, {transform_indices = @transform_6, window_bounds = array<i64: 1, 8, 128>}, {pipeline_mode = #tpu.pipeline_mode<synchronous>, transform_indices = @transform_7, window_bounds = array<i64: 128, 128>}, {pipeline_mode = #tpu.pipeline_mode<synchronous>, transform_indices = @transform_8, window_bounds = array<i64: 1, 128>}, {transform_indices = @transform_9, window_bounds = array<i64: 32, 128>}, {transform_indices = @transform_10, window_bounds = array<i64: 1, 8, 128>}, {transform_indices = @transform_11, window_bounds = array<i64: 1, 8, 128>}]} {
    %c32_i32 = arith.constant 32 : i32
    %0 = arith.muli %arg1, %c32_i32 : i32
    %1 = tpu.assume_multiple %0, 32 : i32
    %c0_i32 = arith.constant 0 : i32
    %2 = arith.cmpi eq, %arg0, %c0_i32 : i32
    %3 = arith.extui %2 : i1 to i32
    %c0_i32_0 = arith.constant 0 : i32
    %4 = arith.cmpi ne, %3, %c0_i32_0 : i32
    scf.if %4 {
      %c0_47 = arith.constant 0 : index
      %c0_48 = arith.constant 0 : index
      %137 = vector.load %arg2[%c0_47, %c0_48] : memref<32x1xi32, #tpu.memory_space<vmem>>, vector<32x1xi32>
      %138 = tpu.iota {dimensions = array<i32: 1>} : vector<32x128xi32>
      %139 = vector.broadcast %137 : vector<32x1xi32> to vector<32x128xi32>
      %140 = arith.cmpi eq, %138, %139 : vector<32x128xi32>
      %cst_49 = arith.constant 1.000000e+00 : f32
      %cst_50 = arith.constant 0.000000e+00 : f32
      %141 = vector.broadcast %cst_49 : f32 to vector<32x128xf32>
      %142 = vector.broadcast %cst_50 : f32 to vector<32x128xf32>
      %143 = arith.select %140, %141, %142 : vector<32x128xi1>, vector<32x128xf32>
      %144 = arith.truncf %143 : vector<32x128xf32> to vector<32x128xbf16>
      %c0_51 = arith.constant 0 : index
      %c0_52 = arith.constant 0 : index
      %145 = vector.load %arg3[%c0_51, %c0_52] : memref<128x128xbf16, #tpu.memory_space<vmem>>, vector<128x128xbf16>
      %cst_53 = arith.constant dense<0.000000e+00> : vector<32x128xf32>
      %146 = tpu.matmul %144, %145, %cst_53 {dimension_numbers = #tpu.dot_dimension_numbers<[1], [0], [0], [1], [0, 0, 1, 1], [], []>} : vector<32x128xbf16>, vector<128x128xbf16>, vector<32x128xf32> -> vector<32x128xf32>
      %147 = arith.truncf %146 : vector<32x128xf32> to vector<32x128xbf16>
      %c0_54 = arith.constant 0 : index
      %c0_55 = arith.constant 0 : index
      %c0_56 = arith.constant 0 : index
      %148 = vector.load %arg4[%c0_54, %c0_55, %c0_56] : memref<1x128x512xbf16, #tpu.memory_space<vmem>>, vector<1x128x512xbf16>
      %149 = vector.shape_cast %148 : vector<1x128x512xbf16> to vector<128x512xbf16>
      %cst_57 = arith.constant dense<0.000000e+00> : vector<32x512xf32>
      %150 = tpu.matmul %147, %149, %cst_57 {dimension_numbers = #tpu.dot_dimension_numbers<[1], [0], [0], [1], [0, 0, 1, 1], [], []>} : vector<32x128xbf16>, vector<128x512xbf16>, vector<32x512xf32> -> vector<32x512xf32>
      %c0_58 = arith.constant 0 : index
      %c0_59 = arith.constant 0 : index
      %c0_60 = arith.constant 0 : index
      %151 = vector.load %arg6[%c0_58, %c0_59, %c0_60] : memref<1x1x512xf32, #tpu.memory_space<vmem>>, vector<1x1x512xf32>
      %152 = vector.shape_cast %151 : vector<1x1x512xf32> to vector<1x512xf32>
      %153 = vector.broadcast %152 : vector<1x512xf32> to vector<32x512xf32>
      %154 = arith.addf %150, %153 : vector<32x512xf32>
      %c0_61 = arith.constant 0 : index
      %c0_62 = arith.constant 0 : index
      %155 = vector.load %arg15[%c0_61, %c0_62] : memref<32x512xf32, #tpu.memory_space<vmem>>, vector<32x512xf32>
      tpu.vector_store %arg15[%c0_61, %c0_62], %154 {strides = array<i32>} : memref<32x512xf32, #tpu.memory_space<vmem>>, vector<32x512xf32>,
    } else {
    }
    %c0_i32_1 = arith.constant 0 : i32
    %5 = arith.cmpi sgt, %arg0, %c0_i32_1 : i32
    %6 = arith.extui %5 : i1 to i32
    %c0_i32_2 = arith.constant 0 : i32
    %7 = arith.cmpi ne, %6, %c0_i32_2 : i32
    scf.if %7 {
      %137 = arith.index_cast %1 : i32 to index
      %c0_47 = arith.constant 0 : index
      %138 = vector.load %arg14[%137, %c0_47] : memref<64x128xf32, #tpu.memory_space<vmem>>, vector<32x128xf32>
      %139 = arith.truncf %138 : vector<32x128xf32> to vector<32x128xbf16>
      %c0_48 = arith.constant 0 : index
      %c0_49 = arith.constant 0 : index
      %c0_50 = arith.constant 0 : index
      %140 = vector.load %arg4[%c0_48, %c0_49, %c0_50] : memref<1x128x512xbf16, #tpu.memory_space<vmem>>, vector<1x128x512xbf16>
      %141 = vector.shape_cast %140 : vector<1x128x512xbf16> to vector<128x512xbf16>
      %cst_51 = arith.constant dense<0.000000e+00> : vector<32x512xf32>
      %142 = tpu.matmul %139, %141, %cst_51 {dimension_numbers = #tpu.dot_dimension_numbers<[1], [0], [0], [1], [0, 0, 1, 1], [], []>} : vector<32x128xbf16>, vector<128x512xbf16>, vector<32x512xf32> -> vector<32x512xf32>
      %c0_52 = arith.constant 0 : index
      %c0_53 = arith.constant 0 : index
      %c0_54 = arith.constant 0 : index
      %143 = vector.load %arg6[%c0_52, %c0_53, %c0_54] : memref<1x1x512xf32, #tpu.memory_space<vmem>>, vector<1x1x512xf32>
      %144 = vector.shape_cast %143 : vector<1x1x512xf32> to vector<1x512xf32>
      %145 = vector.broadcast %144 : vector<1x512xf32> to vector<32x512xf32>
      %146 = arith.addf %142, %145 : vector<32x512xf32>
      %c0_55 = arith.constant 0 : index
      %c0_56 = arith.constant 0 : index
      %147 = vector.load %arg15[%c0_55, %c0_56] : memref<32x512xf32, #tpu.memory_space<vmem>>, vector<32x512xf32>
      tpu.vector_store %arg15[%c0_55, %c0_56], %146 {strides = array<i32>} : memref<32x512xf32, #tpu.memory_space<vmem>>, vector<32x512xf32>,
    } else {
    }
    %c0_i32_3 = arith.constant 0 : i32
    %8 = arith.cmpi eq, %arg1, %c0_i32_3 : i32
    %9 = arith.extui %8 : i1 to i32
    %c0_i32_4 = arith.constant 0 : i32
    %10 = arith.cmpi ne, %9, %c0_i32_4 : i32
    scf.if %10 {
      %c0_47 = arith.constant 0 : index
      %c0_48 = arith.constant 0 : index
      %c0_49 = arith.constant 0 : index
      %137 = vector.load %arg7[%c0_47, %c0_48, %c0_49] : memref<1x8x128xf32, #tpu.memory_space<vmem>>, vector<1x8x128xf32>
      %138 = vector.shape_cast %137 : vector<1x8x128xf32> to vector<8x128xf32>
      %c0_50 = arith.constant 0 : index
      %c0_51 = arith.constant 0 : index
      %139 = vector.load %arg16[%c0_50, %c0_51] : memref<8x128xf32, #tpu.memory_space<vmem>>, vector<8x128xf32>
      tpu.vector_store %arg16[%c0_50, %c0_51], %138 {strides = array<i32>} : memref<8x128xf32, #tpu.memory_space<vmem>>, vector<8x128xf32>,
      %c0_52 = arith.constant 0 : index
      %c0_53 = arith.constant 0 : index
      %c0_54 = arith.constant 0 : index
      %140 = vector.load %arg8[%c0_52, %c0_53, %c0_54] : memref<1x8x128xf32, #tpu.memory_space<vmem>>, vector<1x8x128xf32>
      %141 = vector.shape_cast %140 : vector<1x8x128xf32> to vector<8x128xf32>
      %c0_55 = arith.constant 0 : index
      %c0_56 = arith.constant 0 : index
      %142 = vector.load %arg17[%c0_55, %c0_56] : memref<8x128xf32, #tpu.memory_space<vmem>>, vector<8x128xf32>
      tpu.vector_store %arg17[%c0_55, %c0_56], %141 {strides = array<i32>} : memref<8x128xf32, #tpu.memory_space<vmem>>, vector<8x128xf32>,
    } else {
    }
    %c0 = arith.constant 0 : index
    %c0_5 = arith.constant 0 : index
    %11 = vector.load %arg16[%c0, %c0_5] : memref<8x128xf32, #tpu.memory_space<vmem>>, vector<8x128xf32>
    %c0_6 = arith.constant 0 : index
    %c0_7 = arith.constant 0 : index
    %12 = vector.load %arg17[%c0_6, %c0_7] : memref<8x128xf32, #tpu.memory_space<vmem>>, vector<8x128xf32>
    %c0_i32_8 = arith.constant 0 : i32
    %c8_i32 = arith.constant 8 : i32
    %13 = arith.muli %c0_i32_8, %c8_i32 : i32
    %14 = tpu.assume_multiple %13, 8 : i32
    %15 = arith.index_cast %14 : i32 to index
    %c0_9 = arith.constant 0 : index
    %16 = vector.load %arg15[%15, %c0_9] : memref<32x512xf32, #tpu.memory_space<vmem>>, vector<8x512xf32>
    %17 = arith.truncf %11 : vector<8x128xf32> to vector<8x128xbf16>
    %c0_10 = arith.constant 0 : index
    %c0_11 = arith.constant 0 : index
    %c0_12 = arith.constant 0 : index
    %18 = vector.load %arg5[%c0_10, %c0_11, %c0_12] : memref<1x128x512xbf16, #tpu.memory_space<vmem>>, vector<1x128x512xbf16>
    %19 = vector.shape_cast %18 : vector<1x128x512xbf16> to vector<128x512xbf16>
    %cst = arith.constant dense<0.000000e+00> : vector<8x512xf32>
    %20 = tpu.matmul %17, %19, %cst {dimension_numbers = #tpu.dot_dimension_numbers<[1], [0], [0], [1], [0, 0, 1, 1], [], []>} : vector<8x128xbf16>, vector<128x512xbf16>, vector<8x512xf32> -> vector<8x512xf32>
    %21 = arith.addf %16, %20 : vector<8x512xf32>
    %22 = vector.extract_strided_slice %21 {offsets = [0, 0], sizes = [8, 384], strides = [1, 1]} : vector<8x512xf32> to vector<8x384xf32>
    %23 = arith.negf %22 : vector<8x384xf32>
    %24 = math.exp %23 : vector<8x384xf32>
    %cst_13 = arith.constant 1.000000e+00 : f32
    %25 = vector.broadcast %cst_13 : f32 to vector<8x384xf32>
    %26 = arith.addf %25, %24 : vector<8x384xf32>
    %27 = arith.divf %25, %26 : vector<8x384xf32>
    %28 = vector.extract_strided_slice %27 {offsets = [0, 0], sizes = [8, 128], strides = [1, 1]} : vector<8x384xf32> to vector<8x128xf32>
    %29 = vector.extract_strided_slice %27 {offsets = [0, 128], sizes = [8, 128], strides = [1, 1]} : vector<8x384xf32> to vector<8x128xf32>
    %30 = vector.extract_strided_slice %27 {offsets = [0, 256], sizes = [8, 128], strides = [1, 1]} : vector<8x384xf32> to vector<8x128xf32>
    %31 = vector.extract_strided_slice %21 {offsets = [0, 384], sizes = [8, 128], strides = [1, 1]} : vector<8x512xf32> to vector<8x128xf32>
    %32 = math.tanh %31 : vector<8x128xf32>
    %33 = arith.mulf %29, %12 : vector<8x128xf32>
    %34 = arith.mulf %28, %32 : vector<8x128xf32>
    %35 = arith.addf %33, %34 : vector<8x128xf32>
    %36 = math.tanh %35 : vector<8x128xf32>
    %37 = arith.mulf %30, %36 : vector<8x128xf32>
    %38 = arith.addi %1, %14 : i32
    %39 = tpu.assume_multiple %38, 8 : i32
    %40 = arith.index_cast %39 : i32 to index
    %c0_14 = arith.constant 0 : index
    %41 = vector.load %arg14[%40, %c0_14] : memref<64x128xf32, #tpu.memory_space<vmem>>, vector<8x128xf32>
    tpu.vector_store %arg14[%40, %c0_14], %37 {strides = array<i32>} : memref<64x128xf32, #tpu.memory_space<vmem>>, vector<8x128xf32>,
    %c1_i32 = arith.constant 1 : i32
    %c8_i32_15 = arith.constant 8 : i32
    %42 = arith.muli %c1_i32, %c8_i32_15 : i32
    %43 = tpu.assume_multiple %42, 8 : i32
    %44 = arith.index_cast %43 : i32 to index
    %c0_16 = arith.constant 0 : index
    %45 = vector.load %arg15[%44, %c0_16] : memref<32x512xf32, #tpu.memory_space<vmem>>, vector<8x512xf32>
    %46 = arith.truncf %37 : vector<8x128xf32> to vector<8x128xbf16>
    %c0_17 = arith.constant 0 : index
    %c0_18 = arith.constant 0 : index
    %c0_19 = arith.constant 0 : index
    %47 = vector.load %arg5[%c0_17, %c0_18, %c0_19] : memref<1x128x512xbf16, #tpu.memory_space<vmem>>, vector<1x128x512xbf16>
    %48 = vector.shape_cast %47 : vector<1x128x512xbf16> to vector<128x512xbf16>
    %cst_20 = arith.constant dense<0.000000e+00> : vector<8x512xf32>
    %49 = tpu.matmul %46, %48, %cst_20 {dimension_numbers = #tpu.dot_dimension_numbers<[1], [0], [0], [1], [0, 0, 1, 1], [], []>} : vector<8x128xbf16>, vector<128x512xbf16>, vector<8x512xf32> -> vector<8x512xf32>
    %50 = arith.addf %45, %49 : vector<8x512xf32>
    %51 = vector.extract_strided_slice %50 {offsets = [0, 0], sizes = [8, 384], strides = [1, 1]} : vector<8x512xf32> to vector<8x384xf32>
    %52 = arith.negf %51 : vector<8x384xf32>
    %53 = math.exp %52 : vector<8x384xf32>
    %cst_21 = arith.constant 1.000000e+00 : f32
    %54 = vector.broadcast %cst_21 : f32 to vector<8x384xf32>
    %55 = arith.addf %54, %53 : vector<8x384xf32>
    %56 = arith.divf %54, %55 : vector<8x384xf32>
    %57 = vector.extract_strided_slice %56 {offsets = [0, 0], sizes = [8, 128], strides = [1, 1]} : vector<8x384xf32> to vector<8x128xf32>
    %58 = vector.extract_strided_slice %56 {offsets = [0, 128], sizes = [8, 128], strides = [1, 1]} : vector<8x384xf32> to vector<8x128xf32>
    %59 = vector.extract_strided_slice %56 {offsets = [0, 256], sizes = [8, 128], strides = [1, 1]} : vector<8x384xf32> to vector<8x128xf32>
    %60 = vector.extract_strided_slice %50 {offsets = [0, 384], sizes = [8, 128], strides = [1, 1]} : vector<8x512xf32> to vector<8x128xf32>
    %61 = math.tanh %60 : vector<8x128xf32>
    %62 = arith.mulf %58, %35 : vector<8x128xf32>
    %63 = arith.mulf %57, %61 : vector<8x128xf32>
    %64 = arith.addf %62, %63 : vector<8x128xf32>
    %65 = math.tanh %64 : vector<8x128xf32>
    %66 = arith.mulf %59, %65 : vector<8x128xf32>
    %67 = arith.addi %1, %43 : i32
    %68 = tpu.assume_multiple %67, 8 : i32
    %69 = arith.index_cast %68 : i32 to index
    %c0_22 = arith.constant 0 : index
    %70 = vector.load %arg14[%69, %c0_22] : memref<64x128xf32, #tpu.memory_space<vmem>>, vector<8x128xf32>
    tpu.vector_store %arg14[%69, %c0_22], %66 {strides = array<i32>} : memref<64x128xf32, #tpu.memory_space<vmem>>, vector<8x128xf32>,
    %c2_i32 = arith.constant 2 : i32
    %c8_i32_23 = arith.constant 8 : i32
    %71 = arith.muli %c2_i32, %c8_i32_23 : i32
    %72 = tpu.assume_multiple %71, 8 : i32
    %73 = arith.index_cast %72 : i32 to index
    %c0_24 = arith.constant 0 : index
    %74 = vector.load %arg15[%73, %c0_24] : memref<32x512xf32, #tpu.memory_space<vmem>>, vector<8x512xf32>
    %75 = arith.truncf %66 : vector<8x128xf32> to vector<8x128xbf16>
    %c0_25 = arith.constant 0 : index
    %c0_26 = arith.constant 0 : index
    %c0_27 = arith.constant 0 : index
    %76 = vector.load %arg5[%c0_25, %c0_26, %c0_27] : memref<1x128x512xbf16, #tpu.memory_space<vmem>>, vector<1x128x512xbf16>
    %77 = vector.shape_cast %76 : vector<1x128x512xbf16> to vector<128x512xbf16>
    %cst_28 = arith.constant dense<0.000000e+00> : vector<8x512xf32>
    %78 = tpu.matmul %75, %77, %cst_28 {dimension_numbers = #tpu.dot_dimension_numbers<[1], [0], [0], [1], [0, 0, 1, 1], [], []>} : vector<8x128xbf16>, vector<128x512xbf16>, vector<8x512xf32> -> vector<8x512xf32>
    %79 = arith.addf %74, %78 : vector<8x512xf32>
    %80 = vector.extract_strided_slice %79 {offsets = [0, 0], sizes = [8, 384], strides = [1, 1]} : vector<8x512xf32> to vector<8x384xf32>
    %81 = arith.negf %80 : vector<8x384xf32>
    %82 = math.exp %81 : vector<8x384xf32>
    %cst_29 = arith.constant 1.000000e+00 : f32
    %83 = vector.broadcast %cst_29 : f32 to vector<8x384xf32>
    %84 = arith.addf %83, %82 : vector<8x384xf32>
    %85 = arith.divf %83, %84 : vector<8x384xf32>
    %86 = vector.extract_strided_slice %85 {offsets = [0, 0], sizes = [8, 128], strides = [1, 1]} : vector<8x384xf32> to vector<8x128xf32>
    %87 = vector.extract_strided_slice %85 {offsets = [0, 128], sizes = [8, 128], strides = [1, 1]} : vector<8x384xf32> to vector<8x128xf32>
    %88 = vector.extract_strided_slice %85 {offsets = [0, 256], sizes = [8, 128], strides = [1, 1]} : vector<8x384xf32> to vector<8x128xf32>
    %89 = vector.extract_strided_slice %79 {offsets = [0, 384], sizes = [8, 128], strides = [1, 1]} : vector<8x512xf32> to vector<8x128xf32>
    %90 = math.tanh %89 : vector<8x128xf32>
    %91 = arith.mulf %87, %64 : vector<8x128xf32>
    %92 = arith.mulf %86, %90 : vector<8x128xf32>
    %93 = arith.addf %91, %92 : vector<8x128xf32>
    %94 = math.tanh %93 : vector<8x128xf32>
    %95 = arith.mulf %88, %94 : vector<8x128xf32>
    %96 = arith.addi %1, %72 : i32
    %97 = tpu.assume_multiple %96, 8 : i32
    %98 = arith.index_cast %97 : i32 to index
    %c0_30 = arith.constant 0 : index
    %99 = vector.load %arg14[%98, %c0_30] : memref<64x128xf32, #tpu.memory_space<vmem>>, vector<8x128xf32>
    tpu.vector_store %arg14[%98, %c0_30], %95 {strides = array<i32>} : memref<64x128xf32, #tpu.memory_space<vmem>>, vector<8x128xf32>,
    %c3_i32 = arith.constant 3 : i32
    %c8_i32_31 = arith.constant 8 : i32
    %100 = arith.muli %c3_i32, %c8_i32_31 : i32
    %101 = tpu.assume_multiple %100, 8 : i32
    %102 = arith.index_cast %101 : i32 to index
    %c0_32 = arith.constant 0 : index
    %103 = vector.load %arg15[%102, %c0_32] : memref<32x512xf32, #tpu.memory_space<vmem>>, vector<8x512xf32>
    %104 = arith.truncf %95 : vector<8x128xf32> to vector<8x128xbf16>
    %c0_33 = arith.constant 0 : index
    %c0_34 = arith.constant 0 : index
    %c0_35 = arith.constant 0 : index
    %105 = vector.load %arg5[%c0_33, %c0_34, %c0_35] : memref<1x128x512xbf16, #tpu.memory_space<vmem>>, vector<1x128x512xbf16>
    %106 = vector.shape_cast %105 : vector<1x128x512xbf16> to vector<128x512xbf16>
    %cst_36 = arith.constant dense<0.000000e+00> : vector<8x512xf32>
    %107 = tpu.matmul %104, %106, %cst_36 {dimension_numbers = #tpu.dot_dimension_numbers<[1], [0], [0], [1], [0, 0, 1, 1], [], []>} : vector<8x128xbf16>, vector<128x512xbf16>, vector<8x512xf32> -> vector<8x512xf32>
    %108 = arith.addf %103, %107 : vector<8x512xf32>
    %109 = vector.extract_strided_slice %108 {offsets = [0, 0], sizes = [8, 384], strides = [1, 1]} : vector<8x512xf32> to vector<8x384xf32>
    %110 = arith.negf %109 : vector<8x384xf32>
    %111 = math.exp %110 : vector<8x384xf32>
    %cst_37 = arith.constant 1.000000e+00 : f32
    %112 = vector.broadcast %cst_37 : f32 to vector<8x384xf32>
    %113 = arith.addf %112, %111 : vector<8x384xf32>
    %114 = arith.divf %112, %113 : vector<8x384xf32>
    %115 = vector.extract_strided_slice %114 {offsets = [0, 0], sizes = [8, 128], strides = [1, 1]} : vector<8x384xf32> to vector<8x128xf32>
    %116 = vector.extract_strided_slice %114 {offsets = [0, 128], sizes = [8, 128], strides = [1, 1]} : vector<8x384xf32> to vector<8x128xf32>
    %117 = vector.extract_strided_slice %114 {offsets = [0, 256], sizes = [8, 128], strides = [1, 1]} : vector<8x384xf32> to vector<8x128xf32>
    %118 = vector.extract_strided_slice %108 {offsets = [0, 384], sizes = [8, 128], strides = [1, 1]} : vector<8x512xf32> to vector<8x128xf32>
    %119 = math.tanh %118 : vector<8x128xf32>
    %120 = arith.mulf %116, %93 : vector<8x128xf32>
    %121 = arith.mulf %115, %119 : vector<8x128xf32>
    %122 = arith.addf %120, %121 : vector<8x128xf32>
    %123 = math.tanh %122 : vector<8x128xf32>
    %124 = arith.mulf %117, %123 : vector<8x128xf32>
    %125 = arith.addi %1, %101 : i32
    %126 = tpu.assume_multiple %125, 8 : i32
    %127 = arith.index_cast %126 : i32 to index
    %c0_38 = arith.constant 0 : index
    %128 = vector.load %arg14[%127, %c0_38] : memref<64x128xf32, #tpu.memory_space<vmem>>, vector<8x128xf32>
    tpu.vector_store %arg14[%127, %c0_38], %124 {strides = array<i32>} : memref<64x128xf32, #tpu.memory_space<vmem>>, vector<8x128xf32>,
    %c4_i32 = arith.constant 4 : i32
    %c0_39 = arith.constant 0 : index
    %c0_40 = arith.constant 0 : index
    %129 = vector.load %arg16[%c0_39, %c0_40] : memref<8x128xf32, #tpu.memory_space<vmem>>, vector<8x128xf32>
    tpu.vector_store %arg16[%c0_39, %c0_40], %124 {strides = array<i32>} : memref<8x128xf32, #tpu.memory_space<vmem>>, vector<8x128xf32>,
    %c0_41 = arith.constant 0 : index
    %c0_42 = arith.constant 0 : index
    %130 = vector.load %arg17[%c0_41, %c0_42] : memref<8x128xf32, #tpu.memory_space<vmem>>, vector<8x128xf32>
    tpu.vector_store %arg17[%c0_41, %c0_42], %122 {strides = array<i32>} : memref<8x128xf32, #tpu.memory_space<vmem>>, vector<8x128xf32>,
    %c1_i32_43 = arith.constant 1 : i32
    %131 = arith.cmpi eq, %arg1, %c1_i32_43 : i32
    %132 = arith.extui %131 : i1 to i32
    %c0_i32_44 = arith.constant 0 : i32
    %133 = arith.cmpi ne, %132, %c0_i32_44 : i32
    scf.if %133 {
      %c0_47 = arith.constant 0 : index
      %c0_48 = arith.constant 0 : index
      %c0_49 = arith.constant 0 : index
      %137 = vector.load %arg12[%c0_47, %c0_48, %c0_49] : memref<1x8x128xf32, #tpu.memory_space<vmem>>, vector<1x8x128xf32>
      %138 = vector.shape_cast %137 : vector<1x8x128xf32> to vector<8x128xf32>
      %139 = vector.shape_cast %124 : vector<8x128xf32> to vector<1x8x128xf32>
      tpu.vector_store %arg12[%c0_47, %c0_48, %c0_49], %139 {strides = array<i32>} : memref<1x8x128xf32, #tpu.memory_space<vmem>>, vector<1x8x128xf32>,
      %c0_50 = arith.constant 0 : index
      %c0_51 = arith.constant 0 : index
      %c0_52 = arith.constant 0 : index
      %140 = vector.load %arg13[%c0_50, %c0_51, %c0_52] : memref<1x8x128xf32, #tpu.memory_space<vmem>>, vector<1x8x128xf32>
      %141 = vector.shape_cast %140 : vector<1x8x128xf32> to vector<8x128xf32>
      %142 = vector.shape_cast %122 : vector<8x128xf32> to vector<1x8x128xf32>
      tpu.vector_store %arg13[%c0_50, %c0_51, %c0_52], %142 {strides = array<i32>} : memref<1x8x128xf32, #tpu.memory_space<vmem>>, vector<1x8x128xf32>,
    } else {
    }
    %c1_i32_45 = arith.constant 1 : i32
    %134 = arith.cmpi eq, %arg0, %c1_i32_45 : i32
    %135 = arith.extui %134 : i1 to i32
    %c0_i32_46 = arith.constant 0 : i32
    %136 = arith.cmpi ne, %135, %c0_i32_46 : i32
    scf.if %136 {
      %137 = arith.index_cast %1 : i32 to index
      %c0_47 = arith.constant 0 : index
      %138 = vector.load %arg14[%137, %c0_47] : memref<64x128xf32, #tpu.memory_space<vmem>>, vector<32x128xf32>
      %139 = arith.truncf %138 : vector<32x128xf32> to vector<32x128xbf16>
      %c0_48 = arith.constant 0 : index
      %c0_49 = arith.constant 0 : index
      %140 = vector.load %arg9[%c0_48, %c0_49] : memref<128x128xbf16, #tpu.memory_space<vmem>>, vector<128x128xbf16>
      %cst_50 = arith.constant dense<0.000000e+00> : vector<32x128xf32>
      %141 = tpu.matmul %139, %140, %cst_50 {dimension_numbers = #tpu.dot_dimension_numbers<[1], [0], [0], [1], [0, 0, 1, 1], [], []>} : vector<32x128xbf16>, vector<128x128xbf16>, vector<32x128xf32> -> vector<32x128xf32>
      %c0_51 = arith.constant 0 : index
      %c0_52 = arith.constant 0 : index
      %142 = vector.load %arg10[%c0_51, %c0_52] : memref<1x128xf32, #tpu.memory_space<vmem>>, vector<1x128xf32>
      %143 = vector.broadcast %142 : vector<1x128xf32> to vector<32x128xf32>
      %144 = arith.addf %141, %143 : vector<32x128xf32>
      %c0_53 = arith.constant 0 : index
      %c0_54 = arith.constant 0 : index
      %145 = vector.load %arg11[%c0_53, %c0_54] : memref<32x128xf32, #tpu.memory_space<vmem>>, vector<32x128xf32>
      tpu.vector_store %arg11[%c0_53, %c0_54], %144 {strides = array<i32>} : memref<32x128xf32, #tpu.memory_space<vmem>>, vector<32x128xf32>,
    } else {
    }
    return
  }
  func.func @transform_0(%arg0: i32, %arg1: i32) -> (i32, i32) {
    %c0_i32 = arith.constant 0 : i32
    %c0_i32_0 = arith.constant 0 : i32
    return %arg1, %c0_i32 : i32, i32
  }
  func.func @transform_1(%arg0: i32, %arg1: i32) -> (i32, i32) {
    %c0_i32 = arith.constant 0 : i32
    %c0_i32_0 = arith.constant 0 : i32
    %c0_i32_1 = arith.constant 0 : i32
    return %c0_i32, %c0_i32_0 : i32, i32
  }
  func.func @transform_2(%arg0: i32, %arg1: i32) -> (i32, i32, i32) {
    %c0_i32 = arith.constant 0 : i32
    %c0_i32_0 = arith.constant 0 : i32
    %c0_i32_1 = arith.constant 0 : i32
    return %arg0, %c0_i32, %c0_i32_0 : i32, i32, i32
  }
  func.func @transform_3(%arg0: i32, %arg1: i32) -> (i32, i32, i32) {
    %c0_i32 = arith.constant 0 : i32
    %c0_i32_0 = arith.constant 0 : i32
    %c0_i32_1 = arith.constant 0 : i32
    return %arg0, %c0_i32, %c0_i32_0 : i32, i32, i32
  }
  func.func @transform_4(%arg0: i32, %arg1: i32) -> (i32, i32, i32) {
    %c0_i32 = arith.constant 0 : i32
    %c0_i32_0 = arith.constant 0 : i32
    %c0_i32_1 = arith.constant 0 : i32
    return %arg0, %c0_i32, %c0_i32_0 : i32, i32, i32
  }
  func.func @transform_5(%arg0: i32, %arg1: i32) -> (i32, i32, i32) {
    %c0_i32 = arith.constant 0 : i32
    %c0_i32_0 = arith.constant 0 : i32
    %c0_i32_1 = arith.constant 0 : i32
    return %arg0, %c0_i32, %c0_i32_0 : i32, i32, i32
  }
  func.func @transform_6(%arg0: i32, %arg1: i32) -> (i32, i32, i32) {
    %c0_i32 = arith.constant 0 : i32
    %c0_i32_0 = arith.constant 0 : i32
    %c0_i32_1 = arith.constant 0 : i32
    return %arg0, %c0_i32, %c0_i32_0 : i32, i32, i32
  }
  func.func @transform_7(%arg0: i32, %arg1: i32) -> (i32, i32) {
    %c0_i32 = arith.constant 0 : i32
    %c0_i32_0 = arith.constant 0 : i32
    %c0_i32_1 = arith.constant 0 : i32
    return %c0_i32, %c0_i32_0 : i32, i32
  }
  func.func @transform_8(%arg0: i32, %arg1: i32) -> (i32, i32) {
    %c0_i32 = arith.constant 0 : i32
    %c0_i32_0 = arith.constant 0 : i32
    %c0_i32_1 = arith.constant 0 : i32
    return %c0_i32, %c0_i32_0 : i32, i32
  }
  func.func @transform_9(%arg0: i32, %arg1: i32) -> (i32, i32) {
    %c0_i32 = arith.constant 0 : i32
    %c0_i32_0 = arith.constant 0 : i32
    return %arg1, %c0_i32 : i32, i32
  }
  func.func @transform_10(%arg0: i32, %arg1: i32) -> (i32, i32, i32) {
    %c0_i32 = arith.constant 0 : i32
    %c0_i32_0 = arith.constant 0 : i32
    %c0_i32_1 = arith.constant 0 : i32
    return %arg0, %c0_i32, %c0_i32_0 : i32, i32, i32
  }
  func.func @transform_11(%arg0: i32, %arg1: i32) -> (i32, i32, i32) {
    %c0_i32 = arith.constant 0 : i32
    %c0_i32_0 = arith.constant 0 : i32
    %c0_i32_1 = arith.constant 0 : i32
    return %arg0, %c0_i32, %c0_i32_0 : i32, i32, i32
  }
}

</mosaic_0001>

<llo_original>
// kernel: tpu_custom_call.1
$region0: #{tpu_custom_call.1}
  #allocation0 [shape = 'u32[]', space=smem, size = 0x4, offset = 0x4, fixed_abs, tag = 'smem constant byte address 0x4 - core index']
  #allocation1 [shape = 'u32[144,128]{1,0:T(1,128)}', space=vmem, size = 0x12000, scoped, tag = 'internal scratch']
  #allocation2 [shape = 'f32[64,128]{1,0:T(8,128)}', space=vmem, size = 0x8000, scoped, tag = 'scratch operand']
  #allocation3 [shape = 'f32[32,512]{1,0:T(8,128)}', space=vmem, size = 0x10000, scoped, tag = 'scratch operand']
  #allocation4 [shape = 'f32[8,128]{1,0:T(8,128)}', space=vmem, size = 0x1000, scoped, tag = 'scratch operand']
  #allocation5 [shape = 'f32[8,128]{1,0:T(8,128)}', space=vmem, size = 0x1000, scoped, tag = 'scratch operand']
  %s0 = inlined_call_operand.vmem [shape: s32[64,1], index: 0, kind: input, shape index: {}]
  %s1 = inlined_call_operand.vmem [shape: bf16[128,128], index: 1, kind: input, shape index: {}]
  %s2 = inlined_call_operand.hbm [shape: bf16[2,128,512], index: 2, kind: input, shape index: {}]
  %s3 = inlined_call_operand.hbm [shape: bf16[2,128,512], index: 3, kind: input, shape index: {}]
  %s4 = inlined_call_operand.hbm [shape: f32[2,1,512], index: 4, kind: input, shape index: {}]
  %s5 = inlined_call_operand.vmem [shape: f32[2,8,128], index: 5, kind: input, shape index: {}]
  %s6 = inlined_call_operand.hbm [shape: f32[2,8,128], index: 6, kind: input, shape index: {}]
  %s7 = inlined_call_operand.hbm [shape: bf16[128,128], index: 7, kind: input, shape index: {}]
  %s8 = inlined_call_operand.vmem [shape: f32[1,128], index: 8, kind: input, shape index: {}]
  %s9 = inlined_call_operand.hbm [shape: f32[64,128], index: 9, kind: output, shape index: {0}]
  %s10 = inlined_call_operand.hbm [shape: f32[2,8,128], index: 10, kind: output, shape index: {1}]
  %s11 = inlined_call_operand.hbm [shape: f32[2,8,128], index: 11, kind: output, shape index: {2}]
  %12 = xla_tuple %s9, %s10, %s11
  %s13 = sld [smem:[#allocation0]]
  $region125: #{tpu_custom_call.1} parent=0
    _
  %s15 = ssub.s32 1, %s13
  %s16 = scalar_select 0, %s15, %s13
  $region1: #{tpu_custom_call.1} parent=0
    #allocation6 [shape = 'u8[262144]{0}', space=vmem, size = 0x40000, scoped, tag = 'input window, operand 2']
    #allocation7 [shape = 's32[2]{0}', space=sflag, size = 0x8, scoped, tag = 'scoped memory for tpu_custom_call.1']
    #allocation8 [shape = 's32[2]{0}', space=sflag, size = 0x8, scoped, tag = 'scoped memory for tpu_custom_call.1']
    #allocation9 [shape = 'u8[262144]{0}', space=vmem, size = 0x40000, scoped, tag = 'input window, operand 3']
    #allocation10 [shape = 's32[2]{0}', space=sflag, size = 0x8, scoped, tag = 'scoped memory for tpu_custom_call.1']
    #allocation11 [shape = 'u8[4096]{0}', space=vmem, size = 0x1000, scoped, tag = 'input window, operand 4']
    #allocation12 [shape = 'u8[8192]{0}', space=vmem, size = 0x2000, scoped, tag = 'input window, operand 6']
    #allocation13 [shape = 's32[2]{0}', space=sflag, size = 0x8, scoped, tag = 'scoped memory for tpu_custom_call.1']
    #allocation14 [shape = 'u8[32768]{0}', space=vmem, size = 0x8000, scoped, tag = 'input window, operand 7, single buffered']
    #allocation15 [shape = 'u8[32768]{0}', space=vmem, size = 0x8000, scoped, tag = 'output window, operand 0']
    #allocation16 [shape = 'u8[8192]{0}', space=vmem, size = 0x2000, scoped, tag = 'output window, operand 1']
    #allocation17 [shape = 's32[2]{0}', space=sflag, size = 0x8, scoped, tag = 'scoped memory for tpu_custom_call.1']
    #allocation18 [shape = 'u8[8192]{0}', space=vmem, size = 0x2000, scoped, tag = 'output window, operand 2']
    %17 = vsyncpa [#allocation7], 0
    %s18 = scalar_lea.sflag [#allocation7], 1
    %19 = vsyncpa %s18, 0
    %20 = vsyncpa [#allocation10], 0
    %s21 = scalar_lea.sflag [#allocation10], 1
    %22 = vsyncpa %s21, 0
    %23 = vsyncpa [#allocation13], 0
    %s24 = scalar_lea.sflag [#allocation13], 1
    %25 = vsyncpa %s24, 0
    %26 = vsyncpa [#allocation8], 0
    %s27 = scalar_lea.sflag [#allocation8], 1
    %28 = vsyncpa %s27, 0
    %29 = vsyncpa [#allocation17], 0
    %s30 = scalar_lea.sflag [#allocation17], 1
    %31 = vsyncpa %s30, 0
    loop: start=0, step=1, limit=6
    $region2: #{tpu_custom_call.1} parent=1 // loop_pre_header
      _
    $region3: #{tpu_custom_call.1} parent=1 // loop_header
      %s33 = sphi 0, %s37
      %p34 = scmp.ge.s32.totalorder %s33, 6
      %s40 = sphi 0, %s52
      %s41 = sphi 0, %s48
      %s42 = sphi 0, %s40
      %s43 = sphi 0, %s41
      %s44 = sphi 0, %s42
      %s45 = sphi 0, %s43
      %s55 = sphi 0, %s57
      %s58 = sphi 0, %s55
      %s59 = sphi 0, %s58
      %s75 = sphi 0, %s59
      %s79 = sphi 0, %s79
      %s81 = sphi 0, %s79
      %s82 = sphi 0, %s81
      %s96 = sphi 0, %s82
      %s102 = sphi 0, %s104
      %s105 = sphi 0, %s102
      %s106 = sphi 0, %s105
      %s122 = sphi 0, %s106
      %s128 = sphi 0, %s130
      %s131 = sphi 0, %s128
      %s132 = sphi 0, %s131
      %s148 = sphi 0, %s132
      %s154 = sphi 0, %s156
      %s157 = sphi 0, %s154
      %s158 = sphi 0, %s157
      %s174 = sphi 0, %s158
      %s180 = sphi 0, %s182
      %s183 = sphi 0, %s180
      %s184 = sphi 0, %s183
      %s200 = sphi 0, %s184
      %s206 = sphi 0, %s208
      %s209 = sphi 0, %s206
      %s210 = sphi 0, %s209
      %s226 = sphi 0, %s210
      %s230 = sphi 0, %s230
      %s232 = sphi 0, %s230
      %s233 = sphi 0, %s232
      %s247 = sphi 0, %s233
      %s251 = sphi 0, %s251
      %s253 = sphi 0, %s251
      %s254 = sphi 0, %s253
      %s268 = sphi 0, %s254
      %s274 = sphi 0, %s276
      %s277 = sphi 0, %s274
      %s278 = sphi 0, %s277
      %s294 = sphi 0, %s278
      %s300 = sphi 0, %s302
      %s303 = sphi 0, %s300
      %s304 = sphi 0, %s303
      %s320 = sphi 0, %s304
      %s326 = sphi 0, %s328
      %s329 = sphi 0, %s326
      %s330 = sphi 0, %s329
      %s346 = sphi 0, %s330
    $region4: #{tpu_custom_call.1} parent=1 // loop_header_branch
      %36 = sbr.rel (%p34) target = $region8
    $region5: #{tpu_custom_call.1} parent=1 // loop_body
      %s38 = ssub.s32 %s33, 1
      %s39 = ssub.s32 %s33, 2
      %s46 = sadd.s32 1, %s41
      %p47 = scmp.ge.s32.totalorder %s46, 2
      %s48 = scalar_select %p47, 0, %s46
      %s49 = sadd.s32 1, %s40
      %s50 = scalar_select %p47, %s49, %s40
      %p51 = scmp.ge.s32.totalorder %s50, 2
      %s52 = scalar_select %p51, 0, %s50
      %s53 = ssub.s32 %s41, %s48
      %p54 = scmp.eq.s32.totalorder %s53, 0
      %s56 = sadd.s32 %s55, 1
      %s57 = scalar_select %p54, %s55, %s56
      %p60 = pneg %p54
      %p61 = scmp.eq.s32.totalorder %s33, 3
      %p62 = por %p60, %p61
      %p63 = scmp.ne.s32.totalorder %s55, %s58
      %p64 = scmp.eq.s32.totalorder %s33, 0
      %p65 = por %p63, %p64
      %p66 = scmp.ne.s32.totalorder %s55, %s58
      %p67 = scmp.eq.s32.totalorder %s38, 3
      %p68 = por %p66, %p67
      %p69 = scmp.ne.s32.totalorder %s58, %s59
      %p70 = scmp.eq.s32.totalorder %s38, 0
      %p71 = por %p69, %p70
      %p72 = scmp.ne.s32.totalorder %s58, %s59
      %p73 = scmp.eq.s32.totalorder %s39, 3
      %p74 = por %p72, %p73
      %p76 = scmp.ne.s32.totalorder %s59, %s75
      %p77 = scmp.eq.s32.totalorder %s39, 0
      %p78 = por %p76, %p77
      %s80 = sadd.s32 %s79, 1
      %p83 = scmp.eq.s32.totalorder %s33, 3
      %p84 = scmp.ne.s32.totalorder %s79, %s81
      %p85 = scmp.eq.s32.totalorder %s33, 0
      %p86 = por %p84, %p85
      %p87 = scmp.ne.s32.totalorder %s79, %s81
      %p88 = scmp.eq.s32.totalorder %s38, 3
      %p89 = por %p87, %p88
      %p90 = scmp.ne.s32.totalorder %s81, %s82
      %p91 = scmp.eq.s32.totalorder %s38, 0
      %p92 = por %p90, %p91
      %p93 = scmp.ne.s32.totalorder %s81, %s82
      %p94 = scmp.eq.s32.totalorder %s39, 3
      %p95 = por %p93, %p94
      %p97 = scmp.ne.s32.totalorder %s82, %s96
      %p98 = scmp.eq.s32.totalorder %s39, 0
      %p99 = por %p97, %p98
      %s100 = ssub.s32 %s40, %s52
      %p101 = scmp.eq.s32.totalorder %s100, 0
      %s103 = sadd.s32 %s102, 1
      %s104 = scalar_select %p101, %s102, %s103
      %p107 = pneg %p101
      %p108 = scmp.eq.s32.totalorder %s33, 3
      %p109 = por %p107, %p108
      %p110 = scmp.ne.s32.totalorder %s102, %s105
      %p111 = scmp.eq.s32.totalorder %s33, 0
      %p112 = por %p110, %p111
      %p113 = scmp.ne.s32.totalorder %s102, %s105
      %p114 = scmp.eq.s32.totalorder %s38, 3
      %p115 = por %p113, %p114
      %p116 = scmp.ne.s32.totalorder %s105, %s106
      %p117 = scmp.eq.s32.totalorder %s38, 0
      %p118 = por %p116, %p117
      %p119 = scmp.ne.s32.totalorder %s105, %s106
      %p120 = scmp.eq.s32.totalorder %s39, 3
      %p121 = por %p119, %p120
      %p123 = scmp.ne.s32.totalorder %s106, %s122
      %p124 = scmp.eq.s32.totalorder %s39, 0
      %p125 = por %p123, %p124
      %s126 = ssub.s32 %s40, %s52
      %p127 = scmp.eq.s32.totalorder %s126, 0
      %s129 = sadd.s32 %s128, 1
      %s130 = scalar_select %p127, %s128, %s129
      %p133 = pneg %p127
      %p134 = scmp.eq.s32.totalorder %s33, 3
      %p135 = por %p133, %p134
      %p136 = scmp.ne.s32.totalorder %s128, %s131
      %p137 = scmp.eq.s32.totalorder %s33, 0
      %p138 = por %p136, %p137
      %p139 = scmp.ne.s32.totalorder %s128, %s131
      %p140 = scmp.eq.s32.totalorder %s38, 3
      %p141 = por %p139, %p140
      %p142 = scmp.ne.s32.totalorder %s131, %s132
      %p143 = scmp.eq.s32.totalorder %s38, 0
      %p144 = por %p142, %p143
      %p145 = scmp.ne.s32.totalorder %s131, %s132
      %p146 = scmp.eq.s32.totalorder %s39, 3
      %p147 = por %p145, %p146
      %p149 = scmp.ne.s32.totalorder %s132, %s148
      %p150 = scmp.eq.s32.totalorder %s39, 0
      %p151 = por %p149, %p150
      %s152 = ssub.s32 %s40, %s52
      %p153 = scmp.eq.s32.totalorder %s152, 0
      %s155 = sadd.s32 %s154, 1
      %s156 = scalar_select %p153, %s154, %s155
      %p159 = pneg %p153
      %p160 = scmp.eq.s32.totalorder %s33, 3
      %p161 = por %p159, %p160
      %p162 = scmp.ne.s32.totalorder %s154, %s157
      %p163 = scmp.eq.s32.totalorder %s33, 0
      %p164 = por %p162, %p163
      %p165 = scmp.ne.s32.totalorder %s154, %s157
      %p166 = scmp.eq.s32.totalorder %s38, 3
      %p167 = por %p165, %p166
      %p168 = scmp.ne.s32.totalorder %s157, %s158
      %p169 = scmp.eq.s32.totalorder %s38, 0
      %p170 = por %p168, %p169
      %p171 = scmp.ne.s32.totalorder %s157, %s158
      %p172 = scmp.eq.s32.totalorder %s39, 3
      %p173 = por %p171, %p172
      %p175 = scmp.ne.s32.totalorder %s158, %s174
      %p176 = scmp.eq.s32.totalorder %s39, 0
      %p177 = por %p175, %p176
      %s178 = ssub.s32 %s40, %s52
      %p179 = scmp.eq.s32.totalorder %s178, 0
      %s181 = sadd.s32 %s180, 1
      %s182 = scalar_select %p179, %s180, %s181
      %p185 = pneg %p179
      %p186 = scmp.eq.s32.totalorder %s33, 3
      %p187 = por %p185, %p186
      %p188 = scmp.ne.s32.totalorder %s180, %s183
      %p189 = scmp.eq.s32.totalorder %s33, 0
      %p190 = por %p188, %p189
      %p191 = scmp.ne.s32.totalorder %s180, %s183
      %p192 = scmp.eq.s32.totalorder %s38, 3
      %p193 = por %p191, %p192
      %p194 = scmp.ne.s32.totalorder %s183, %s184
      %p195 = scmp.eq.s32.totalorder %s38, 0
      %p196 = por %p194, %p195
      %p197 = scmp.ne.s32.totalorder %s183, %s184
      %p198 = scmp.eq.s32.totalorder %s39, 3
      %p199 = por %p197, %p198
      %p201 = scmp.ne.s32.totalorder %s184, %s200
      %p202 = scmp.eq.s32.totalorder %s39, 0
      %p203 = por %p201, %p202
      %s204 = ssub.s32 %s40, %s52
      %p205 = scmp.eq.s32.totalorder %s204, 0
      %s207 = sadd.s32 %s206, 1
      %s208 = scalar_select %p205, %s206, %s207
      %p211 = pneg %p205
      %p212 = scmp.eq.s32.totalorder %s33, 3
      %p213 = por %p211, %p212
      %p214 = scmp.ne.s32.totalorder %s206, %s209
      %p215 = scmp.eq.s32.totalorder %s33, 0
      %p216 = por %p214, %p215
      %p217 = scmp.ne.s32.totalorder %s206, %s209
      %p218 = scmp.eq.s32.totalorder %s38, 3
      %p219 = por %p217, %p218
      %p220 = scmp.ne.s32.totalorder %s209, %s210
      %p221 = scmp.eq.s32.totalorder %s38, 0
      %p222 = por %p220, %p221
      %p223 = scmp.ne.s32.totalorder %s209, %s210
      %p224 = scmp.eq.s32.totalorder %s39, 3
      %p225 = por %p223, %p224
      %p227 = scmp.ne.s32.totalorder %s210, %s226
      %p228 = scmp.eq.s32.totalorder %s39, 0
      %p229 = por %p227, %p228
      %s231 = sadd.s32 %s230, 1
      %p234 = scmp.eq.s32.totalorder %s33, 3
      %p235 = scmp.ne.s32.totalorder %s230, %s232
      %p236 = scmp.eq.s32.totalorder %s33, 0
      %p237 = por %p235, %p236
      %p238 = scmp.ne.s32.totalorder %s230, %s232
      %p239 = scmp.eq.s32.totalorder %s38, 3
      %p240 = por %p238, %p239
      %p241 = scmp.ne.s32.totalorder %s232, %s233
      %p242 = scmp.eq.s32.totalorder %s38, 0
      %p243 = por %p241, %p242
      %p244 = scmp.ne.s32.totalorder %s232, %s233
      %p245 = scmp.eq.s32.totalorder %s39, 3
      %p246 = por %p244, %p245
      %p248 = scmp.ne.s32.totalorder %s233, %s247
      %p249 = scmp.eq.s32.totalorder %s39, 0
      %p250 = por %p248, %p249
      %s252 = sadd.s32 %s251, 1
      %p255 = scmp.eq.s32.totalorder %s33, 3
      %p256 = scmp.ne.s32.totalorder %s251, %s253
      %p257 = scmp.eq.s32.totalorder %s33, 0
      %p258 = por %p256, %p257
      %p259 = scmp.ne.s32.totalorder %s251, %s253
      %p260 = scmp.eq.s32.totalorder %s38, 3
      %p261 = por %p259, %p260
      %p262 = scmp.ne.s32.totalorder %s253, %s254
      %p263 = scmp.eq.s32.totalorder %s38, 0
      %p264 = por %p262, %p263
      %p265 = scmp.ne.s32.totalorder %s253, %s254
      %p266 = scmp.eq.s32.totalorder %s39, 3
      %p267 = por %p265, %p266
      %p269 = scmp.ne.s32.totalorder %s254, %s268
      %p270 = scmp.eq.s32.totalorder %s39, 0
      %p271 = por %p269, %p270
      %s272 = ssub.s32 %s41, %s48
      %p273 = scmp.eq.s32.totalorder %s272, 0
      %s275 = sadd.s32 %s274, 1
      %s276 = scalar_select %p273, %s274, %s275
      %p279 = pneg %p273
      %p280 = scmp.eq.s32.totalorder %s33, 3
      %p281 = por %p279, %p280
      %p282 = scmp.ne.s32.totalorder %s274, %s277
      %p283 = scmp.eq.s32.totalorder %s33, 0
      %p284 = por %p282, %p283
      %p285 = scmp.ne.s32.totalorder %s274, %s277
      %p286 = scmp.eq.s32.totalorder %s38, 3
      %p287 = por %p285, %p286
      %p288 = scmp.ne.s32.totalorder %s277, %s278
      %p289 = scmp.eq.s32.totalorder %s38, 0
      %p290 = por %p288, %p289
      %p291 = scmp.ne.s32.totalorder %s277, %s278
      %p292 = scmp.eq.s32.totalorder %s39, 3
      %p293 = por %p291, %p292
      %p295 = scmp.ne.s32.totalorder %s278, %s294
      %p296 = scmp.eq.s32.totalorder %s39, 0
      %p297 = por %p295, %p296
      %s298 = ssub.s32 %s40, %s52
      %p299 = scmp.eq.s32.totalorder %s298, 0
      %s301 = sadd.s32 %s300, 1
      %s302 = scalar_select %p299, %s300, %s301
      %p305 = pneg %p299
      %p306 = scmp.eq.s32.totalorder %s33, 3
      %p307 = por %p305, %p306
      %p308 = scmp.ne.s32.totalorder %s300, %s303
      %p309 = scmp.eq.s32.totalorder %s33, 0
      %p310 = por %p308, %p309
      %p311 = scmp.ne.s32.totalorder %s300, %s303
      %p312 = scmp.eq.s32.totalorder %s38, 3
      %p313 = por %p311, %p312
      %p314 = scmp.ne.s32.totalorder %s303, %s304
      %p315 = scmp.eq.s32.totalorder %s38, 0
      %p316 = por %p314, %p315
      %p317 = scmp.ne.s32.totalorder %s303, %s304
      %p318 = scmp.eq.s32.totalorder %s39, 3
      %p319 = por %p317, %p318
      %p321 = scmp.ne.s32.totalorder %s304, %s320
      %p322 = scmp.eq.s32.totalorder %s39, 0
      %p323 = por %p321, %p322
      %s324 = ssub.s32 %s40, %s52
      %p325 = scmp.eq.s32.totalorder %s324, 0
      %s327 = sadd.s32 %s326, 1
      %s328 = scalar_select %p325, %s326, %s327
      %p331 = pneg %p325
      %p332 = scmp.eq.s32.totalorder %s33, 3
      %p333 = por %p331, %p332
      %p334 = scmp.ne.s32.totalorder %s326, %s329
      %p335 = scmp.eq.s32.totalorder %s33, 0
      %p336 = por %p334, %p335
      %p337 = scmp.ne.s32.totalorder %s326, %s329
      %p338 = scmp.eq.s32.totalorder %s38, 3
      %p339 = por %p337, %p338
      %p340 = scmp.ne.s32.totalorder %s329, %s330
      %p341 = scmp.eq.s32.totalorder %s38, 0
      %p342 = por %p340, %p341
      %p343 = scmp.ne.s32.totalorder %s329, %s330
      %p344 = scmp.eq.s32.totalorder %s39, 3
      %p345 = por %p343, %p344
      %p347 = scmp.ne.s32.totalorder %s330, %s346
      %p348 = scmp.eq.s32.totalorder %s39, 0
      %p349 = por %p347, %p348
      %p350 = scmp.le.s32.totalorder 1, %s33
      %p351 = scmp.lt.s32.totalorder %s33, 5
      %p352 = pnand %p350, %p351
      %p353 = pneg %p352
      // Predicated region
      $region9: #{tpu_custom_call.1} parent=5 // pred_check
        _
      $region10: #{tpu_custom_call.1} parent=5 // pred_check_branch
        %355 = sbr.rel (%p352) target = $region12
      $region11: #{tpu_custom_call.1} parent=5 // pred_region
        %s356 = ssub.s32 %s33, 1
        // Predicated region
        $region13: #{tpu_custom_call.1} parent=11 // pred_check
          %p357 = pneg %p92
        $region14: #{tpu_custom_call.1} parent=11 // pred_check_branch
          %359 = sbr.rel (%p357) target = $region16
        $region15: #{tpu_custom_call.1} parent=11 // pred_region
          _
        $region16: #{tpu_custom_call.1} parent=11 // pred_fallthru
          _
        // Predicated region
        $region17: #{tpu_custom_call.1} parent=11 // pred_check
          %p360 = pneg %p243
        $region18: #{tpu_custom_call.1} parent=11 // pred_check_branch
          %362 = sbr.rel (%p360) target = $region20
        $region19: #{tpu_custom_call.1} parent=11 // pred_region
          %s364 = ssub.s32 1024, 1024
          %365 = vsyncadd [#allocation13], %s364
          %s366 = sshll.u32 [#allocation14], 4
          %s367 = int_to_ptr.vmem [resolvable:$true] %s366
          %372 = dma.hbm_to_vmem [thread:$0]  %s7, 1024, %s367, [#allocation13], 64, 64, 4
        $region20: #{tpu_custom_call.1} parent=11 // pred_fallthru
          _
        // Predicated region
        $region21: #{tpu_custom_call.1} parent=11 // pred_check
          %p373 = pneg %p264
        $region22: #{tpu_custom_call.1} parent=11 // pred_check_branch
          %375 = sbr.rel (%p373) target = $region24
        $region23: #{tpu_custom_call.1} parent=11 // pred_region
          _
        $region24: #{tpu_custom_call.1} parent=11 // pred_fallthru
          _
      $region12: #{tpu_custom_call.1} parent=5 // pred_fallthru
        _
      %p376 = scmp.lt.s32.totalorder %s33, 4
      // Predicated region
      $region25: #{tpu_custom_call.1} parent=5 // pred_check
        %p377 = pneg %p376
      $region26: #{tpu_custom_call.1} parent=5 // pred_check_branch
        %379 = sbr.rel (%p377) target = $region28
      $region27: #{tpu_custom_call.1} parent=5 // pred_region
        // Predicated region
        $region29: #{tpu_custom_call.1} parent=27 // pred_check
          %p380 = pneg %p65
        $region30: #{tpu_custom_call.1} parent=27 // pred_check_branch
          %382 = sbr.rel (%p380) target = $region32
        $region31: #{tpu_custom_call.1} parent=27 // pred_region
          %s383 = smul.u32 4, %s41
          %p384 = scmp.lt.s32.totalorder %s383, 7
          %s385 = scalar_select %p384, %s383, 7
          %s386 = smul.addr %s385, 8
          %s387 = scalar_lea.vmem %s0, %s386
          %s388 = smul.u32 4, %s41
        $region32: #{tpu_custom_call.1} parent=27 // pred_fallthru
          _
        // Predicated region
        $region33: #{tpu_custom_call.1} parent=27 // pred_check
          %p389 = pneg %p112
        $region34: #{tpu_custom_call.1} parent=27 // pred_check_branch
          %391 = sbr.rel (%p389) target = $region36
        $region35: #{tpu_custom_call.1} parent=27 // pred_region
          %s392 = sand.u32 %s102, 1
          %s393 = scalar_lea.sflag [#allocation7], %s392
          %s394 = sand.u32 %s102, 1
          %s395 = smul.addr %s394, 256
          %s396 = scalar_lea.vmem [#allocation6], %s395
          %s398 = ssub.s32 4096, 4096
          %399 = vsyncadd %s393, %s398
          %s400 = smul.addr %s40, 64
          %s401 = smul.addr %s400, 64
          %s402 = scalar_lea.hbm %s2, %s401
          %s403 = sshll.u32 %s396, 4
          %s404 = int_to_ptr.vmem [resolvable:$true] %s403
          %409 = dma.hbm_to_vmem [thread:$0]  %s402, 4096, %s404, %s393, 256, 256, 16
        $region36: #{tpu_custom_call.1} parent=27 // pred_fallthru
          _
        // Predicated region
        $region37: #{tpu_custom_call.1} parent=27 // pred_check
          %p410 = pneg %p138
        $region38: #{tpu_custom_call.1} parent=27 // pred_check_branch
          %412 = sbr.rel (%p410) target = $region40
        $region39: #{tpu_custom_call.1} parent=27 // pred_region
          %s413 = sand.u32 %s33, 1
          %s414 = scalar_lea.sflag [#allocation10], %s413
          %s415 = sand.u32 %s128, 1
          %s416 = smul.addr %s415, 256
          %s417 = scalar_lea.vmem [#allocation9], %s416
          %s419 = ssub.s32 4096, 4096
          %420 = vsyncadd %s414, %s419
          %s421 = smul.addr %s40, 64
          %s422 = smul.addr %s421, 64
          %s423 = scalar_lea.hbm %s3, %s422
          %s424 = sshll.u32 %s417, 4
          %s425 = int_to_ptr.vmem [resolvable:$true] %s424
          %430 = dma.hbm_to_vmem [thread:$0]  %s423, 4096, %s425, %s414, 256, 256, 16
        $region40: #{tpu_custom_call.1} parent=27 // pred_fallthru
          _
        // Predicated region
        $region41: #{tpu_custom_call.1} parent=27 // pred_check
          %p431 = pneg %p164
        $region42: #{tpu_custom_call.1} parent=27 // pred_check_branch
          %433 = sbr.rel (%p431) target = $region44
        $region43: #{tpu_custom_call.1} parent=27 // pred_region
          %s434 = sand.u32 %s33, 1
          %s435 = scalar_lea.sflag [#allocation10], %s434
          %s436 = sand.u32 %s154, 1
          %s437 = smul.addr %s436, 4
          %s438 = scalar_lea.vmem [#allocation11], %s437
          %s440 = ssub.s32 64, 64
          %441 = vsyncadd %s435, %s440
          %s442 = smul.addr %s40, 4
          %s443 = smul.addr %s442, 16
          %s444 = scalar_lea.hbm %s4, %s443
          %s446 = sshll.u32 %s438, 4
          %s447 = int_to_ptr.vmem [resolvable:$true] %s446
          %449 = dma.hbm_to_vmem [thread:$0]  %s444, 64, %s447, %s435
        $region44: #{tpu_custom_call.1} parent=27 // pred_fallthru
          _
        // Predicated region
        $region45: #{tpu_custom_call.1} parent=27 // pred_check
          %p450 = pneg %p190
        $region46: #{tpu_custom_call.1} parent=27 // pred_check_branch
          %452 = sbr.rel (%p450) target = $region48
        $region47: #{tpu_custom_call.1} parent=27 // pred_region
          %p453 = scmp.lt.s32.totalorder %s40, 1
          %s454 = scalar_select %p453, %s40, 1
          %s455 = smul.addr %s454, 8
          %s456 = scalar_lea.vmem %s5, %s455
        $region48: #{tpu_custom_call.1} parent=27 // pred_fallthru
          _
        // Predicated region
        $region49: #{tpu_custom_call.1} parent=27 // pred_check
          %p457 = pneg %p216
        $region50: #{tpu_custom_call.1} parent=27 // pred_check_branch
          %459 = sbr.rel (%p457) target = $region52
        $region51: #{tpu_custom_call.1} parent=27 // pred_region
          %s460 = sand.u32 %s33, 1
          %s461 = scalar_lea.sflag [#allocation13], %s460
          %s462 = sand.u32 %s206, 1
          %s463 = smul.addr %s462, 8
          %s464 = scalar_lea.vmem [#allocation12], %s463
          %s466 = ssub.s32 128, 128
          %467 = vsyncadd %s461, %s466
          %s468 = smul.addr %s40, 128
          %s469 = scalar_lea.hbm %s6, %s468
          %s471 = sshll.u32 %s464, 4
          %s472 = int_to_ptr.vmem [resolvable:$true] %s471
          %474 = dma.hbm_to_vmem [thread:$0]  %s469, 128, %s472, %s461
        $region52: #{tpu_custom_call.1} parent=27 // pred_fallthru
          _
      $region28: #{tpu_custom_call.1} parent=5 // pred_fallthru
        _
      %p475 = scmp.le.s32.totalorder 1, %s33
      %p476 = scmp.lt.s32.totalorder %s33, 5
      %p477 = pnand %p475, %p476
      %p478 = pneg %p477
      // Predicated region
      $region53: #{tpu_custom_call.1} parent=5 // pred_check
        _
      $region54: #{tpu_custom_call.1} parent=5 // pred_check_branch
        %480 = sbr.rel (%p477) target = $region56
      $region55: #{tpu_custom_call.1} parent=5 // pred_region
        %s481 = ssub.s32 %s33, 1
        %s482 = sand.u32 %s105, 1
        %s483 = scalar_lea.sflag [#allocation7], %s482
        %s484 = sand.u32 %s105, 1
        %s485 = smul.addr %s484, 256
        %s486 = scalar_lea.vmem [#allocation6], %s485
        // Predicated region
        $region57: #{tpu_custom_call.1} parent=55 // pred_check
          %p487 = pneg %p118
        $region58: #{tpu_custom_call.1} parent=55 // pred_check_branch
          %489 = sbr.rel (%p487) target = $region60
        $region59: #{tpu_custom_call.1} parent=55 // pred_region
          %490 = dma.done %s483, 4096
        $region60: #{tpu_custom_call.1} parent=55 // pred_fallthru
          _
        %s491 = sand.u32 %s38, 1
        %s492 = scalar_lea.sflag [#allocation10], %s491
        %s493 = sand.u32 %s131, 1
        %s494 = smul.addr %s493, 256
        %s495 = scalar_lea.vmem [#allocation9], %s494
        // Predicated region
        $region61: #{tpu_custom_call.1} parent=55 // pred_check
          %p496 = pneg %p144
        $region62: #{tpu_custom_call.1} parent=55 // pred_check_branch
          %498 = sbr.rel (%p496) target = $region64
        $region63: #{tpu_custom_call.1} parent=55 // pred_region
          %499 = dma.done %s492, 4096
        $region64: #{tpu_custom_call.1} parent=55 // pred_fallthru
          _
        %s500 = sand.u32 %s38, 1
        %s501 = scalar_lea.sflag [#allocation10], %s500
        %s502 = sand.u32 %s157, 1
        %s503 = smul.addr %s502, 4
        %s504 = scalar_lea.vmem [#allocation11], %s503
        // Predicated region
        $region65: #{tpu_custom_call.1} parent=55 // pred_check
          %p505 = pneg %p170
        $region66: #{tpu_custom_call.1} parent=55 // pred_check_branch
          %507 = sbr.rel (%p505) target = $region68
        $region67: #{tpu_custom_call.1} parent=55 // pred_region
          %508 = dma.done %s501, 64
        $region68: #{tpu_custom_call.1} parent=55 // pred_fallthru
          _
        %s509 = sand.u32 %s38, 1
        %s510 = scalar_lea.sflag [#allocation13], %s509
        %s511 = sand.u32 %s209, 1
        %s512 = smul.addr %s511, 8
        %s513 = scalar_lea.vmem [#allocation12], %s512
        // Predicated region
        $region69: #{tpu_custom_call.1} parent=55 // pred_check
          %p514 = pneg %p222
        $region70: #{tpu_custom_call.1} parent=55 // pred_check_branch
          %516 = sbr.rel (%p514) target = $region72
        $region71: #{tpu_custom_call.1} parent=55 // pred_region
          %517 = dma.done %s510, 128
        $region72: #{tpu_custom_call.1} parent=55 // pred_fallthru
          _
        // Predicated region
        $region73: #{tpu_custom_call.1} parent=55 // pred_check
          %p518 = pneg %p243
        $region74: #{tpu_custom_call.1} parent=55 // pred_check_branch
          %520 = sbr.rel (%p518) target = $region76
        $region75: #{tpu_custom_call.1} parent=55 // pred_region
          %521 = dma.done [#allocation13], 1024
        $region76: #{tpu_custom_call.1} parent=55 // pred_fallthru
          _
        %s522 = smul.u32 4, %s43
        %p523 = scmp.lt.s32.totalorder %s522, 7
        %s524 = scalar_select %p523, %s522, 7
        %s525 = smul.addr %s524, 8
        %s526 = scalar_lea.vmem %s0, %s525
        %p527 = pneg %p71
        %p528 = pneg %p68
        %p529 = pneg %p92
        %p530 = pneg %p89
        %s531 = sand.u32 %s105, 1
        %s532 = scalar_lea.sflag [#allocation7], %s531
        %s533 = sand.u32 %s105, 1
        %s534 = smul.addr %s533, 256
        %s535 = scalar_lea.vmem [#allocation6], %s534
        %p536 = pneg %p118
        %p537 = pneg %p115
        %s538 = sand.u32 %s38, 1
        %s539 = scalar_lea.sflag [#allocation10], %s538
        %s540 = sand.u32 %s131, 1
        %s541 = smul.addr %s540, 256
        %s542 = scalar_lea.vmem [#allocation9], %s541
        %p543 = pneg %p144
        %p544 = pneg %p141
        %s545 = sand.u32 %s38, 1
        %s546 = scalar_lea.sflag [#allocation10], %s545
        %s547 = sand.u32 %s157, 1
        %s548 = smul.addr %s547, 4
        %s549 = scalar_lea.vmem [#allocation11], %s548
        %p550 = pneg %p170
        %p551 = pneg %p167
        %p552 = scmp.lt.s32.totalorder %s42, 1
        %s553 = scalar_select %p552, %s42, 1
        %s554 = smul.addr %s553, 8
        %s555 = scalar_lea.vmem %s5, %s554
        %p556 = pneg %p196
        %p557 = pneg %p193
        %s558 = sand.u32 %s38, 1
        %s559 = scalar_lea.sflag [#allocation13], %s558
        %s560 = sand.u32 %s209, 1
        %s561 = smul.addr %s560, 8
        %s562 = scalar_lea.vmem [#allocation12], %s561
        %p563 = pneg %p222
        %p564 = pneg %p219
        %p565 = pneg %p243
        %p566 = pneg %p240
        %p567 = pneg %p264
        %p568 = pneg %p261
        %p569 = pneg %p290
        %p570 = pneg %p287
        %s571 = sand.u32 %s277, 1
        %s572 = scalar_lea.sflag [#allocation8], %s571
        %s573 = sand.u32 %s277, 1
        %s574 = smul.addr %s573, 32
        %s575 = scalar_lea.vmem [#allocation15], %s574
        %p576 = pneg %p316
        %p577 = pneg %p313
        %s578 = sand.u32 %s38, 1
        %s579 = scalar_lea.sflag [#allocation17], %s578
        %s580 = sand.u32 %s303, 1
        %s581 = smul.addr %s580, 8
        %s582 = scalar_lea.vmem [#allocation16], %s581
        %p583 = pneg %p342
        %p584 = pneg %p339
        %s585 = sand.u32 %s38, 1
        %s586 = scalar_lea.sflag [#allocation17], %s585
        %s587 = sand.u32 %s329, 1
        %s588 = smul.addr %s587, 8
        %s589 = scalar_lea.vmem [#allocation18], %s588
        %s590 = smul.u32 4, %s43
        %p591 = scmp.lt.s32.totalorder %s590, 7
        %s592 = scalar_select %p591, %s590, 7
        %s593 = smul.addr %s592, 8
        %s594 = scalar_lea.vmem %s0, %s593
        %s595 = smul.u32 4, %s43
        %p596 = scmp.lt.s32.totalorder %s42, 1
        %s597 = scalar_select %p596, %s42, 1
        %s598 = smul.addr %s597, 8
        %s599 = scalar_lea.vmem %s5, %s598
        %s600 = smul.u32 4, %s43
        %s602 = smul.u32 %s43, 32
        %p603 = scmp.eq.s32.totalorder %s42, 0
        // Predicated region
        $region77: #{tpu_custom_call.1} parent=55 // pred_check
          %p604 = pneg %p603
        $region78: #{tpu_custom_call.1} parent=55 // pred_check_branch
          %606 = sbr.rel (%p604) target = $region80
        $region79: #{tpu_custom_call.1} parent=55 // pred_region
          %v607 = vld [vmem:[%s594] sm:$0xff]
          %v608 = vld [vmem:[%s594 + $0x8] sm:$0xff]
          %v609 = vld [vmem:[%s594 + $0x10] sm:$0xff]
          %v610 = vld [vmem:[%s594 + $0x18] sm:$0xff]
          %v611 = vlaneseq
          %v612 = vand.u32 %v611, 127
          %613 = vset.pattern.permute.xlu0 0
          %614 = vperm.xlu0 %613, %v607
          %v615 = vpop.permute.xlu0 %614
          %616 = vset.pattern.permute.xlu0 0
          %617 = vperm.xlu0 %616, %v608
          %v618 = vpop.permute.xlu0 %617
          %619 = vset.pattern.permute.xlu0 0
          %620 = vperm.xlu0 %619, %v609
          %v621 = vpop.permute.xlu0 %620
          %622 = vset.pattern.permute.xlu0 0
          %623 = vperm.xlu0 %622, %v610
          %v624 = vpop.permute.xlu0 %623
          %vm625 = vcmp.eq.s32.totalorder %v612, %v615
          %vm626 = vcmp.eq.s32.totalorder %v612, %v618
          %vm627 = vcmp.eq.s32.totalorder %v612, %v621
          %vm628 = vcmp.eq.s32.totalorder %v612, %v624
          %v629 = vsel %vm625, 1.0, 0.0
          %v630 = vsel %vm626, 1.0, 0.0
          %v631 = vsel %vm627, 1.0, 0.0
          %v632 = vsel %vm628, 1.0, 0.0
          %v633 = vpack.c.bf16 %v630, %v629
          %v634 = vpack.c.bf16 %v632, %v631
          %v635 = vld [vmem:[%s1] sm:$0xf]
          %v636 = vld [vmem:[%s1 + $0x4] sm:$0xf]
          %v637 = vld [vmem:[%s1 + $0x8] sm:$0xf]
          %v638 = vld [vmem:[%s1 + $0xc] sm:$0xf]
          %v639 = vld [vmem:[%s1 + $0x10] sm:$0xf]
          %v640 = vld [vmem:[%s1 + $0x14] sm:$0xf]
          %v641 = vld [vmem:[%s1 + $0x18] sm:$0xf]
          %v642 = vld [vmem:[%s1 + $0x1c] sm:$0xf]
          %v643 = vld [vmem:[%s1 + $0x20] sm:$0xf]
          %v644 = vld [vmem:[%s1 + $0x24] sm:$0xf]
          %v645 = vld [vmem:[%s1 + $0x28] sm:$0xf]
          %v646 = vld [vmem:[%s1 + $0x2c] sm:$0xf]
          %v647 = vld [vmem:[%s1 + $0x30] sm:$0xf]
          %v648 = vld [vmem:[%s1 + $0x34] sm:$0xf]
          %v649 = vld [vmem:[%s1 + $0x38] sm:$0xf]
          %v650 = vld [vmem:[%s1 + $0x3c] sm:$0xf]
          %v667 = vunpack.c.l.b16 %v635
          %v668 = vunpack.c.l.b16 %v636
          %v669 = vunpack.c.l.b16 %v637
          %v670 = vunpack.c.l.b16 %v638
          %v671 = vunpack.c.l.b16 %v639
          %v672 = vunpack.c.l.b16 %v640
          %v673 = vunpack.c.l.b16 %v641
          %v674 = vunpack.c.l.b16 %v642
          %v675 = vunpack.c.l.b16 %v643
          %v676 = vunpack.c.l.b16 %v644
          %v677 = vunpack.c.l.b16 %v645
          %v678 = vunpack.c.l.b16 %v646
          %v679 = vunpack.c.l.b16 %v647
          %v680 = vunpack.c.l.b16 %v648
          %v681 = vunpack.c.l.b16 %v649
          %v682 = vunpack.c.l.b16 %v650
          %v683 = vpack.c.b16 %v668, %v667
          %v684 = vpack.c.b16 %v670, %v669
          %v685 = vpack.c.b16 %v672, %v671
          %v686 = vpack.c.b16 %v674, %v673
          %v687 = vpack.c.b16 %v676, %v675
          %v688 = vpack.c.b16 %v678, %v677
          %v689 = vpack.c.b16 %v680, %v679
          %v690 = vpack.c.b16 %v682, %v681
          %699 = vmatprep.subr.bf16.mxu0 0
          %700 = vmatpush1.bf16.msra.mxu0 %v683
          %701 = vmatprep.subr.bf16.mxu0 0
          %702 = vmatpush1.bf16.msra.mxu0 %v684
          %703 = vmatprep.subr.bf16.mxu0 0
          %704 = vmatpush1.bf16.msra.mxu0 %v685
          %705 = vmatprep.subr.bf16.mxu0 0
          %706 = vmatpush1.bf16.msra.mxu0 %v686
          %707 = vmatprep.subr.bf16.mxu0 0
          %708 = vmatpush1.bf16.msra.mxu0 %v687
          %709 = vmatprep.subr.bf16.mxu0 0
          %710 = vmatpush1.bf16.msra.mxu0 %v688
          %711 = vmatprep.subr.bf16.mxu0 0
          %712 = vmatpush1.bf16.msra.mxu0 %v689
          %713 = vmatprep.subr.bf16.mxu0 0
          %714 = vmatpush1.bf16.msra.mxu0 %v690
          %715 = vmatprep.subr.bf16.mxu0 0
          %716 = vmatpush1.bf16.msra.mxu0 0
          %717 = vmatprep.subr.bf16.mxu0 0
          %718 = vmatpush1.bf16.msra.mxu0 0
          %719 = vmatprep.subr.bf16.mxu0 0
          %720 = vmatpush1.bf16.msra.mxu0 0
          %721 = vmatprep.subr.bf16.mxu0 0
          %722 = vmatpush1.bf16.msra.mxu0 0
          %723 = vmatprep.subr.bf16.mxu0 0
          %724 = vmatpush1.bf16.msra.mxu0 0
          %725 = vmatprep.subr.bf16.mxu0 0
          %726 = vmatpush1.bf16.msra.mxu0 0
          %727 = vmatprep.subr.bf16.mxu0 0
          %728 = vmatpush1.bf16.msra.mxu0 0
          %729 = vmatprep.subr.bf16.mxu0 0
          %730 = vmatpush1.bf16.msra.mxu0 0
          %731 = vmatprep.mubr.bf16.mxu0 0
          %732 = vmatmul.mubr.bf16.gmra.mrb[0].mxu0 %v633
          %v733 = vpop.f32.mrb[0].mxu0
          %v734 = vadd.f32 0.0, %v733
          %v735 = vpop.f32.mrb[0].mxu0
          %v736 = vpop.f32.mrb[0].mxu0
          %v737 = vadd.f32 0.0, %v736
          %v738 = vpop.f32.mrb[0].mxu0
          %739 = vmatprep.mubr.bf16.mxu0 0
          %740 = vmatmul.mubr.bf16.gmra.mrb[0].mxu0 %v634
          %v741 = vpop.f32.mrb[0].mxu0
          %v742 = vadd.f32 0.0, %v741
          %v743 = vpop.f32.mrb[0].mxu0
          %v744 = vpop.f32.mrb[0].mxu0
          %v745 = vadd.f32 0.0, %v744
          %v746 = vpop.f32.mrb[0].mxu0
          %747 = vdwg.mxu0
          %v748 = vpack.c.bf16 %v737, %v734
          %v749 = vpack.c.bf16 %v745, %v742
          %v750 = vld [vmem:[%s486] sm:$0xff]
          %v751 = vld [vmem:[%s486 + $0x8] sm:$0xff]
          %v752 = vld [vmem:[%s486 + $0x10] sm:$0xff]
          %v753 = vld [vmem:[%s486 + $0x18] sm:$0xff]
          %v754 = vld [vmem:[%s486 + $0x20] sm:$0xff]
          %v755 = vld [vmem:[%s486 + $0x28] sm:$0xff]
          %v756 = vld [vmem:[%s486 + $0x30] sm:$0xff]
          %v757 = vld [vmem:[%s486 + $0x38] sm:$0xff]
          %v758 = vld [vmem:[%s486 + $0x40] sm:$0xff]
          %v759 = vld [vmem:[%s486 + $0x48] sm:$0xff]
          %v760 = vld [vmem:[%s486 + $0x50] sm:$0xff]
          %v761 = vld [vmem:[%s486 + $0x58] sm:$0xff]
          %v762 = vld [vmem:[%s486 + $0x60] sm:$0xff]
          %v763 = vld [vmem:[%s486 + $0x68] sm:$0xff]
          %v764 = vld [vmem:[%s486 + $0x70] sm:$0xff]
          %v765 = vld [vmem:[%s486 + $0x78] sm:$0xff]
          %v766 = vld [vmem:[%s486 + $0x80] sm:$0xff]
          %v767 = vld [vmem:[%s486 + $0x88] sm:$0xff]
          %v768 = vld [vmem:[%s486 + $0x90] sm:$0xff]
          %v769 = vld [vmem:[%s486 + $0x98] sm:$0xff]
          %v770 = vld [vmem:[%s486 + $0xa0] sm:$0xff]
          %v771 = vld [vmem:[%s486 + $0xa8] sm:$0xff]
          %v772 = vld [vmem:[%s486 + $0xb0] sm:$0xff]
          %v773 = vld [vmem:[%s486 + $0xb8] sm:$0xff]
          %v774 = vld [vmem:[%s486 + $0xc0] sm:$0xff]
          %v775 = vld [vmem:[%s486 + $0xc8] sm:$0xff]
          %v776 = vld [vmem:[%s486 + $0xd0] sm:$0xff]
          %v777 = vld [vmem:[%s486 + $0xd8] sm:$0xff]
          %v778 = vld [vmem:[%s486 + $0xe0] sm:$0xff]
          %v779 = vld [vmem:[%s486 + $0xe8] sm:$0xff]
          %v780 = vld [vmem:[%s486 + $0xf0] sm:$0xff]
          %v781 = vld [vmem:[%s486 + $0xf8] sm:$0xff]
          %v782 = vld [vmem:[%s504] sm:$0xf]
          %v784 = vlaneseq
          %v785 = vshrl.u32 %v784, 7
          %v786 = vsub.s32 0, %v785
          %v787 = vrot.slane %v782, %v786
          %v788 = vlaneseq
          %v789 = vshrl.u32 %v788, 7
          %v790 = vsub.s32 1, %v789
          %v791 = vrot.slane %v782, %v790
          %v792 = vlaneseq
          %v793 = vshrl.u32 %v792, 7
          %v794 = vsub.s32 2, %v793
          %v795 = vrot.slane %v782, %v794
          %v796 = vlaneseq
          %v797 = vshrl.u32 %v796, 7
          %v798 = vsub.s32 3, %v797
          %v799 = vrot.slane %v782, %v798
          %v836 = vunpack.c.l.b16 %v750
          %v837 = vunpack.c.h.b16 %v750
          %v838 = vunpack.c.l.b16 %v751
          %v839 = vunpack.c.h.b16 %v751
          %v840 = vunpack.c.l.b16 %v752
          %v841 = vunpack.c.h.b16 %v752
          %v842 = vunpack.c.l.b16 %v753
          %v843 = vunpack.c.h.b16 %v753
          %v844 = vunpack.c.l.b16 %v754
          %v845 = vunpack.c.h.b16 %v754
          %v846 = vunpack.c.l.b16 %v755
          %v847 = vunpack.c.h.b16 %v755
          %v848 = vunpack.c.l.b16 %v756
          %v849 = vunpack.c.h.b16 %v756
          %v850 = vunpack.c.l.b16 %v757
          %v851 = vunpack.c.h.b16 %v757
          %v852 = vunpack.c.l.b16 %v758
          %v853 = vunpack.c.h.b16 %v758
          %v854 = vunpack.c.l.b16 %v759
          %v855 = vunpack.c.h.b16 %v759
          %v856 = vunpack.c.l.b16 %v760
          %v857 = vunpack.c.h.b16 %v760
          %v858 = vunpack.c.l.b16 %v761
          %v859 = vunpack.c.h.b16 %v761
          %v860 = vunpack.c.l.b16 %v762
          %v861 = vunpack.c.h.b16 %v762
          %v862 = vunpack.c.l.b16 %v763
          %v863 = vunpack.c.h.b16 %v763
          %v864 = vunpack.c.l.b16 %v764
          %v865 = vunpack.c.h.b16 %v764
          %v866 = vunpack.c.l.b16 %v765
          %v867 = vunpack.c.h.b16 %v765
          %v868 = vunpack.c.l.b16 %v766
          %v869 = vunpack.c.h.b16 %v766
          %v870 = vunpack.c.l.b16 %v767
          %v871 = vunpack.c.h.b16 %v767
          %v872 = vunpack.c.l.b16 %v768
          %v873 = vunpack.c.h.b16 %v768
          %v874 = vunpack.c.l.b16 %v769
          %v875 = vunpack.c.h.b16 %v769
          %v876 = vunpack.c.l.b16 %v770
          %v877 = vunpack.c.h.b16 %v770
          %v878 = vunpack.c.l.b16 %v771
          %v879 = vunpack.c.h.b16 %v771
          %v880 = vunpack.c.l.b16 %v772
          %v881 = vunpack.c.h.b16 %v772
          %v882 = vunpack.c.l.b16 %v773
          %v883 = vunpack.c.h.b16 %v773
          %v884 = vunpack.c.l.b16 %v774
          %v885 = vunpack.c.h.b16 %v774
          %v886 = vunpack.c.l.b16 %v775
          %v887 = vunpack.c.h.b16 %v775
          %v888 = vunpack.c.l.b16 %v776
          %v889 = vunpack.c.h.b16 %v776
          %v890 = vunpack.c.l.b16 %v777
          %v891 = vunpack.c.h.b16 %v777
          %v892 = vunpack.c.l.b16 %v778
          %v893 = vunpack.c.h.b16 %v778
          %v894 = vunpack.c.l.b16 %v779
          %v895 = vunpack.c.h.b16 %v779
          %v896 = vunpack.c.l.b16 %v780
          %v897 = vunpack.c.h.b16 %v780
          %v898 = vunpack.c.l.b16 %v781
          %v899 = vunpack.c.h.b16 %v781
          %v900 = vpack.c.b16 %v840, %v836
          %v901 = vpack.c.b16 %v841, %v837
          %v902 = vpack.c.b16 %v842, %v838
          %v903 = vpack.c.b16 %v843, %v839
          %v904 = vpack.c.b16 %v848, %v844
          %v905 = vpack.c.b16 %v849, %v845
          %v906 = vpack.c.b16 %v850, %v846
          %v907 = vpack.c.b16 %v851, %v847
          %v908 = vpack.c.b16 %v856, %v852
          %v909 = vpack.c.b16 %v857, %v853
          %v910 = vpack.c.b16 %v858, %v854
          %v911 = vpack.c.b16 %v859, %v855
          %v912 = vpack.c.b16 %v864, %v860
          %v913 = vpack.c.b16 %v865, %v861
          %v914 = vpack.c.b16 %v866, %v862
          %v915 = vpack.c.b16 %v867, %v863
          %v916 = vpack.c.b16 %v872, %v868
          %v917 = vpack.c.b16 %v873, %v869
          %v918 = vpack.c.b16 %v874, %v870
          %v919 = vpack.c.b16 %v875, %v871
          %v920 = vpack.c.b16 %v880, %v876
          %v921 = vpack.c.b16 %v881, %v877
          %v922 = vpack.c.b16 %v882, %v878
          %v923 = vpack.c.b16 %v883, %v879
          %v924 = vpack.c.b16 %v888, %v884
          %v925 = vpack.c.b16 %v889, %v885
          %v926 = vpack.c.b16 %v890, %v886
          %v927 = vpack.c.b16 %v891, %v887
          %v928 = vpack.c.b16 %v896, %v892
          %v929 = vpack.c.b16 %v897, %v893
          %v930 = vpack.c.b16 %v898, %v894
          %v931 = vpack.c.b16 %v899, %v895
          %964 = vmatprep.subr.bf16.mxu0 %v901
          %965 = vmatpush1.bf16.msra.mxu0 %v900
          %966 = vmatprep.subr.bf16.mxu0 %v905
          %967 = vmatpush1.bf16.msra.mxu0 %v904
          %968 = vmatprep.subr.bf16.mxu0 %v909
          %969 = vmatpush1.bf16.msra.mxu0 %v908
          %970 = vmatprep.subr.bf16.mxu0 %v913
          %971 = vmatpush1.bf16.msra.mxu0 %v912
          %972 = vmatprep.subr.bf16.mxu0 %v917
          %973 = vmatpush1.bf16.msra.mxu0 %v916
          %974 = vmatprep.subr.bf16.mxu0 %v921
          %975 = vmatpush1.bf16.msra.mxu0 %v920
          %976 = vmatprep.subr.bf16.mxu0 %v925
          %977 = vmatpush1.bf16.msra.mxu0 %v924
          %978 = vmatprep.subr.bf16.mxu0 %v929
          %979 = vmatpush1.bf16.msra.mxu0 %v928
          %980 = vmatprep.subr.bf16.mxu0 0
          %981 = vmatpush1.bf16.msra.mxu0 0
          %982 = vmatprep.subr.bf16.mxu0 0
          %983 = vmatpush1.bf16.msra.mxu0 0
          %984 = vmatprep.subr.bf16.mxu0 0
          %985 = vmatpush1.bf16.msra.mxu0 0
          %986 = vmatprep.subr.bf16.mxu0 0
          %987 = vmatpush1.bf16.msra.mxu0 0
          %988 = vmatprep.subr.bf16.mxu0 0
          %989 = vmatpush1.bf16.msra.mxu0 0
          %990 = vmatprep.subr.bf16.mxu0 0
          %991 = vmatpush1.bf16.msra.mxu0 0
          %992 = vmatprep.subr.bf16.mxu0 0
          %993 = vmatpush1.bf16.msra.mxu0 0
          %994 = vmatprep.subr.bf16.mxu0 0
          %995 = vmatpush1.bf16.msra.mxu0 0
          %996 = vmatprep.mubr.bf16.mxu0 0
          %997 = vmatmul.mubr.bf16.gmra.mrb[0].mxu0 %v748
          %v998 = vpop.f32.mrb[0].mxu0
          %v999 = vadd.f32 %v787, %v998
          %v1000 = vpop.f32.mrb[0].mxu0
          %v1001 = vadd.f32 %v791, %v1000
          %v1002 = vpop.f32.mrb[0].mxu0
          %v1003 = vadd.f32 %v787, %v1002
          %v1004 = vpop.f32.mrb[0].mxu0
          %v1005 = vadd.f32 %v791, %v1004
          %1006 = vmatprep.mubr.bf16.mxu0 0
          %1007 = vmatmul.mubr.bf16.gmra.mrb[0].mxu0 %v749
          %v1008 = vpop.f32.mrb[0].mxu0
          %v1009 = vadd.f32 %v787, %v1008
          %v1010 = vpop.f32.mrb[0].mxu0
          %v1011 = vadd.f32 %v791, %v1010
          %v1012 = vpop.f32.mrb[0].mxu0
          %v1013 = vadd.f32 %v787, %v1012
          %v1014 = vpop.f32.mrb[0].mxu0
          %v1015 = vadd.f32 %v791, %v1014
          %1016 = vdwg.mxu0
          %1017 = vmatprep.subr.bf16.mxu0 %v903
          %1018 = vmatpush1.bf16.msra.mxu0 %v902
          %1019 = vmatprep.subr.bf16.mxu0 %v907
          %1020 = vmatpush1.bf16.msra.mxu0 %v906
          %1021 = vmatprep.subr.bf16.mxu0 %v911
          %1022 = vmatpush1.bf16.msra.mxu0 %v910
          %1023 = vmatprep.subr.bf16.mxu0 %v915
          %1024 = vmatpush1.bf16.msra.mxu0 %v914
          %1025 = vmatprep.subr.bf16.mxu0 %v919
          %1026 = vmatpush1.bf16.msra.mxu0 %v918
          %1027 = vmatprep.subr.bf16.mxu0 %v923
          %1028 = vmatpush1.bf16.msra.mxu0 %v922
          %1029 = vmatprep.subr.bf16.mxu0 %v927
          %1030 = vmatpush1.bf16.msra.mxu0 %v926
          %1031 = vmatprep.subr.bf16.mxu0 %v931
          %1032 = vmatpush1.bf16.msra.mxu0 %v930
          %1033 = vmatprep.subr.bf16.mxu0 0
          %1034 = vmatpush1.bf16.msra.mxu0 0
          %1035 = vmatprep.subr.bf16.mxu0 0
          %1036 = vmatpush1.bf16.msra.mxu0 0
          %1037 = vmatprep.subr.bf16.mxu0 0
          %1038 = vmatpush1.bf16.msra.mxu0 0
          %1039 = vmatprep.subr.bf16.mxu0 0
          %1040 = vmatpush1.bf16.msra.mxu0 0
          %1041 = vmatprep.subr.bf16.mxu0 0
          %1042 = vmatpush1.bf16.msra.mxu0 0
          %1043 = vmatprep.subr.bf16.mxu0 0
          %1044 = vmatpush1.bf16.msra.mxu0 0
          %1045 = vmatprep.subr.bf16.mxu0 0
          %1046 = vmatpush1.bf16.msra.mxu0 0
          %1047 = vmatprep.subr.bf16.mxu0 0
          %1048 = vmatpush1.bf16.msra.mxu0 0
          %1049 = vmatprep.mubr.bf16.mxu0 0
          %1050 = vmatmul.mubr.bf16.gmra.mrb[0].mxu0 %v748
          %v1051 = vpop.f32.mrb[0].mxu0
          %v1052 = vadd.f32 %v795, %v1051
          %v1053 = vpop.f32.mrb[0].mxu0
          %v1054 = vadd.f32 %v799, %v1053
          %v1055 = vpop.f32.mrb[0].mxu0
          %v1056 = vadd.f32 %v795, %v1055
          %v1057 = vpop.f32.mrb[0].mxu0
          %v1058 = vadd.f32 %v799, %v1057
          %1059 = vmatprep.mubr.bf16.mxu0 0
          %1060 = vmatmul.mubr.bf16.gmra.mrb[0].mxu0 %v749
          %v1061 = vpop.f32.mrb[0].mxu0
          %v1062 = vadd.f32 %v795, %v1061
          %v1063 = vpop.f32.mrb[0].mxu0
          %v1064 = vadd.f32 %v799, %v1063
          %v1065 = vpop.f32.mrb[0].mxu0
          %v1066 = vadd.f32 %v795, %v1065
          %v1067 = vpop.f32.mrb[0].mxu0
          %v1068 = vadd.f32 %v799, %v1067
          %1069 = vdwg.mxu0
          %1070 = vst [vmem:[#allocation3] sm:$0xff] %v999
          %1071 = vst [vmem:[#allocation3 + $0x8] sm:$0xff] %v1001
          %1072 = vst [vmem:[#allocation3 + $0x10] sm:$0xff] %v1052
          %1073 = vst [vmem:[#allocation3 + $0x18] sm:$0xff] %v1054
          %1074 = vst [vmem:[#allocation3 + $0x20] sm:$0xff] %v1003
          %1075 = vst [vmem:[#allocation3 + $0x28] sm:$0xff] %v1005
          %1076 = vst [vmem:[#allocation3 + $0x30] sm:$0xff] %v1056
          %1077 = vst [vmem:[#allocation3 + $0x38] sm:$0xff] %v1058
          %1078 = vst [vmem:[#allocation3 + $0x40] sm:$0xff] %v1009
          %1079 = vst [vmem:[#allocation3 + $0x48] sm:$0xff] %v1011
          %1080 = vst [vmem:[#allocation3 + $0x50] sm:$0xff] %v1062
          %1081 = vst [vmem:[#allocation3 + $0x58] sm:$0xff] %v1064
          %1082 = vst [vmem:[#allocation3 + $0x60] sm:$0xff] %v1013
          %1083 = vst [vmem:[#allocation3 + $0x68] sm:$0xff] %v1015
          %1084 = vst [vmem:[#allocation3 + $0x70] sm:$0xff] %v1066
          %1085 = vst [vmem:[#allocation3 + $0x78] sm:$0xff] %v1068
        $region80: #{tpu_custom_call.1} parent=55 // pred_fallthru
          _
        %p1086 = scmp.gt.s32.totalorder %s42, 0
        // Predicated region
        $region81: #{tpu_custom_call.1} parent=55 // pred_check
          %p1087 = pneg %p1086
        $region82: #{tpu_custom_call.1} parent=55 // pred_check_branch
          %1089 = sbr.rel (%p1087) target = $region84
        $region83: #{tpu_custom_call.1} parent=55 // pred_region
          %s1090 = scalar_lea.vmem [#allocation2], %s602
          %v1091 = vld [vmem:[%s1090] sm:$0xff]
          %v1092 = vld [vmem:[%s1090 + $0x8] sm:$0xff]
          %v1093 = vld [vmem:[%s1090 + $0x10] sm:$0xff]
          %v1094 = vld [vmem:[%s1090 + $0x18] sm:$0xff]
          %v1095 = vpack.c.bf16 %v1092, %v1091
          %v1096 = vpack.c.bf16 %v1094, %v1093
          %v1097 = vld [vmem:[%s486] sm:$0xff]
          %v1098 = vld [vmem:[%s486 + $0x8] sm:$0xff]
          %v1099 = vld [vmem:[%s486 + $0x10] sm:$0xff]
          %v1100 = vld [vmem:[%s486 + $0x18] sm:$0xff]
          %v1101 = vld [vmem:[%s486 + $0x20] sm:$0xff]
          %v1102 = vld [vmem:[%s486 + $0x28] sm:$0xff]
          %v1103 = vld [vmem:[%s486 + $0x30] sm:$0xff]
          %v1104 = vld [vmem:[%s486 + $0x38] sm:$0xff]
          %v1105 = vld [vmem:[%s486 + $0x40] sm:$0xff]
          %v1106 = vld [vmem:[%s486 + $0x48] sm:$0xff]
          %v1107 = vld [vmem:[%s486 + $0x50] sm:$0xff]
          %v1108 = vld [vmem:[%s486 + $0x58] sm:$0xff]
          %v1109 = vld [vmem:[%s486 + $0x60] sm:$0xff]
          %v1110 = vld [vmem:[%s486 + $0x68] sm:$0xff]
          %v1111 = vld [vmem:[%s486 + $0x70] sm:$0xff]
          %v1112 = vld [vmem:[%s486 + $0x78] sm:$0xff]
          %v1113 = vld [vmem:[%s486 + $0x80] sm:$0xff]
          %v1114 = vld [vmem:[%s486 + $0x88] sm:$0xff]
          %v1115 = vld [vmem:[%s486 + $0x90] sm:$0xff]
          %v1116 = vld [vmem:[%s486 + $0x98] sm:$0xff]
          %v1117 = vld [vmem:[%s486 + $0xa0] sm:$0xff]
          %v1118 = vld [vmem:[%s486 + $0xa8] sm:$0xff]
          %v1119 = vld [vmem:[%s486 + $0xb0] sm:$0xff]
          %v1120 = vld [vmem:[%s486 + $0xb8] sm:$0xff]
          %v1121 = vld [vmem:[%s486 + $0xc0] sm:$0xff]
          %v1122 = vld [vmem:[%s486 + $0xc8] sm:$0xff]
          %v1123 = vld [vmem:[%s486 + $0xd0] sm:$0xff]
          %v1124 = vld [vmem:[%s486 + $0xd8] sm:$0xff]
          %v1125 = vld [vmem:[%s486 + $0xe0] sm:$0xff]
          %v1126 = vld [vmem:[%s486 + $0xe8] sm:$0xff]
          %v1127 = vld [vmem:[%s486 + $0xf0] sm:$0xff]
          %v1128 = vld [vmem:[%s486 + $0xf8] sm:$0xff]
          %v1129 = vld [vmem:[%s504] sm:$0xf]
          %v1131 = vlaneseq
          %v1132 = vshrl.u32 %v1131, 7
          %v1133 = vsub.s32 0, %v1132
          %v1134 = vrot.slane %v1129, %v1133
          %v1135 = vlaneseq
          %v1136 = vshrl.u32 %v1135, 7
          %v1137 = vsub.s32 1, %v1136
          %v1138 = vrot.slane %v1129, %v1137
          %v1139 = vlaneseq
          %v1140 = vshrl.u32 %v1139, 7
          %v1141 = vsub.s32 2, %v1140
          %v1142 = vrot.slane %v1129, %v1141
          %v1143 = vlaneseq
          %v1144 = vshrl.u32 %v1143, 7
          %v1145 = vsub.s32 3, %v1144
          %v1146 = vrot.slane %v1129, %v1145
          %v1183 = vunpack.c.l.b16 %v1097
          %v1184 = vunpack.c.h.b16 %v1097
          %v1185 = vunpack.c.l.b16 %v1098
          %v1186 = vunpack.c.h.b16 %v1098
          %v1187 = vunpack.c.l.b16 %v1099
          %v1188 = vunpack.c.h.b16 %v1099
          %v1189 = vunpack.c.l.b16 %v1100
          %v1190 = vunpack.c.h.b16 %v1100
          %v1191 = vunpack.c.l.b16 %v1101
          %v1192 = vunpack.c.h.b16 %v1101
          %v1193 = vunpack.c.l.b16 %v1102
          %v1194 = vunpack.c.h.b16 %v1102
          %v1195 = vunpack.c.l.b16 %v1103
          %v1196 = vunpack.c.h.b16 %v1103
          %v1197 = vunpack.c.l.b16 %v1104
          %v1198 = vunpack.c.h.b16 %v1104
          %v1199 = vunpack.c.l.b16 %v1105
          %v1200 = vunpack.c.h.b16 %v1105
          %v1201 = vunpack.c.l.b16 %v1106
          %v1202 = vunpack.c.h.b16 %v1106
          %v1203 = vunpack.c.l.b16 %v1107
          %v1204 = vunpack.c.h.b16 %v1107
          %v1205 = vunpack.c.l.b16 %v1108
          %v1206 = vunpack.c.h.b16 %v1108
          %v1207 = vunpack.c.l.b16 %v1109
          %v1208 = vunpack.c.h.b16 %v1109
          %v1209 = vunpack.c.l.b16 %v1110
          %v1210 = vunpack.c.h.b16 %v1110
          %v1211 = vunpack.c.l.b16 %v1111
          %v1212 = vunpack.c.h.b16 %v1111
          %v1213 = vunpack.c.l.b16 %v1112
          %v1214 = vunpack.c.h.b16 %v1112
          %v1215 = vunpack.c.l.b16 %v1113
          %v1216 = vunpack.c.h.b16 %v1113
          %v1217 = vunpack.c.l.b16 %v1114
          %v1218 = vunpack.c.h.b16 %v1114
          %v1219 = vunpack.c.l.b16 %v1115
          %v1220 = vunpack.c.h.b16 %v1115
          %v1221 = vunpack.c.l.b16 %v1116
          %v1222 = vunpack.c.h.b16 %v1116
          %v1223 = vunpack.c.l.b16 %v1117
          %v1224 = vunpack.c.h.b16 %v1117
          %v1225 = vunpack.c.l.b16 %v1118
          %v1226 = vunpack.c.h.b16 %v1118
          %v1227 = vunpack.c.l.b16 %v1119
          %v1228 = vunpack.c.h.b16 %v1119
          %v1229 = vunpack.c.l.b16 %v1120
          %v1230 = vunpack.c.h.b16 %v1120
          %v1231 = vunpack.c.l.b16 %v1121
          %v1232 = vunpack.c.h.b16 %v1121
          %v1233 = vunpack.c.l.b16 %v1122
          %v1234 = vunpack.c.h.b16 %v1122
          %v1235 = vunpack.c.l.b16 %v1123
          %v1236 = vunpack.c.h.b16 %v1123
          %v1237 = vunpack.c.l.b16 %v1124
          %v1238 = vunpack.c.h.b16 %v1124
          %v1239 = vunpack.c.l.b16 %v1125
          %v1240 = vunpack.c.h.b16 %v1125
          %v1241 = vunpack.c.l.b16 %v1126
          %v1242 = vunpack.c.h.b16 %v1126
          %v1243 = vunpack.c.l.b16 %v1127
          %v1244 = vunpack.c.h.b16 %v1127
          %v1245 = vunpack.c.l.b16 %v1128
          %v1246 = vunpack.c.h.b16 %v1128
          %v1247 = vpack.c.b16 %v1187, %v1183
          %v1248 = vpack.c.b16 %v1188, %v1184
          %v1249 = vpack.c.b16 %v1189, %v1185
          %v1250 = vpack.c.b16 %v1190, %v1186
          %v1251 = vpack.c.b16 %v1195, %v1191
          %v1252 = vpack.c.b16 %v1196, %v1192
          %v1253 = vpack.c.b16 %v1197, %v1193
          %v1254 = vpack.c.b16 %v1198, %v1194
          %v1255 = vpack.c.b16 %v1203, %v1199
          %v1256 = vpack.c.b16 %v1204, %v1200
          %v1257 = vpack.c.b16 %v1205, %v1201
          %v1258 = vpack.c.b16 %v1206, %v1202
          %v1259 = vpack.c.b16 %v1211, %v1207
          %v1260 = vpack.c.b16 %v1212, %v1208
          %v1261 = vpack.c.b16 %v1213, %v1209
          %v1262 = vpack.c.b16 %v1214, %v1210
          %v1263 = vpack.c.b16 %v1219, %v1215
          %v1264 = vpack.c.b16 %v1220, %v1216
          %v1265 = vpack.c.b16 %v1221, %v1217
          %v1266 = vpack.c.b16 %v1222, %v1218
          %v1267 = vpack.c.b16 %v1227, %v1223
          %v1268 = vpack.c.b16 %v1228, %v1224
          %v1269 = vpack.c.b16 %v1229, %v1225
          %v1270 = vpack.c.b16 %v1230, %v1226
          %v1271 = vpack.c.b16 %v1235, %v1231
          %v1272 = vpack.c.b16 %v1236, %v1232
          %v1273 = vpack.c.b16 %v1237, %v1233
          %v1274 = vpack.c.b16 %v1238, %v1234
          %v1275 = vpack.c.b16 %v1243, %v1239
          %v1276 = vpack.c.b16 %v1244, %v1240
          %v1277 = vpack.c.b16 %v1245, %v1241
          %v1278 = vpack.c.b16 %v1246, %v1242
          %1311 = vmatprep.subr.bf16.mxu0 %v1248
          %1312 = vmatpush1.bf16.msra.mxu0 %v1247
          %1313 = vmatprep.subr.bf16.mxu0 %v1252
          %1314 = vmatpush1.bf16.msra.mxu0 %v1251
          %1315 = vmatprep.subr.bf16.mxu0 %v1256
          %1316 = vmatpush1.bf16.msra.mxu0 %v1255
          %1317 = vmatprep.subr.bf16.mxu0 %v1260
          %1318 = vmatpush1.bf16.msra.mxu0 %v1259
          %1319 = vmatprep.subr.bf16.mxu0 %v1264
          %1320 = vmatpush1.bf16.msra.mxu0 %v1263
          %1321 = vmatprep.subr.bf16.mxu0 %v1268
          %1322 = vmatpush1.bf16.msra.mxu0 %v1267
          %1323 = vmatprep.subr.bf16.mxu0 %v1272
          %1324 = vmatpush1.bf16.msra.mxu0 %v1271
          %1325 = vmatprep.subr.bf16.mxu0 %v1276
          %1326 = vmatpush1.bf16.msra.mxu0 %v1275
          %1327 = vmatprep.subr.bf16.mxu0 0
          %1328 = vmatpush1.bf16.msra.mxu0 0
          %1329 = vmatprep.subr.bf16.mxu0 0
          %1330 = vmatpush1.bf16.msra.mxu0 0
          %1331 = vmatprep.subr.bf16.mxu0 0
          %1332 = vmatpush1.bf16.msra.mxu0 0
          %1333 = vmatprep.subr.bf16.mxu0 0
          %1334 = vmatpush1.bf16.msra.mxu0 0
          %1335 = vmatprep.subr.bf16.mxu0 0
          %1336 = vmatpush1.bf16.msra.mxu0 0
          %1337 = vmatprep.subr.bf16.mxu0 0
          %1338 = vmatpush1.bf16.msra.mxu0 0
          %1339 = vmatprep.subr.bf16.mxu0 0
          %1340 = vmatpush1.bf16.msra.mxu0 0
          %1341 = vmatprep.subr.bf16.mxu0 0
          %1342 = vmatpush1.bf16.msra.mxu0 0
          %1343 = vmatprep.mubr.bf16.mxu0 0
          %1344 = vmatmul.mubr.bf16.gmra.mrb[0].mxu0 %v1095
          %v1345 = vpop.f32.mrb[0].mxu0
          %v1346 = vadd.f32 %v1134, %v1345
          %v1347 = vpop.f32.mrb[0].mxu0
          %v1348 = vadd.f32 %v1138, %v1347
          %v1349 = vpop.f32.mrb[0].mxu0
          %v1350 = vadd.f32 %v1134, %v1349
          %v1351 = vpop.f32.mrb[0].mxu0
          %v1352 = vadd.f32 %v1138, %v1351
          %1353 = vmatprep.mubr.bf16.mxu0 0
          %1354 = vmatmul.mubr.bf16.gmra.mrb[0].mxu0 %v1096
          %v1355 = vpop.f32.mrb[0].mxu0
          %v1356 = vadd.f32 %v1134, %v1355
          %v1357 = vpop.f32.mrb[0].mxu0
          %v1358 = vadd.f32 %v1138, %v1357
          %v1359 = vpop.f32.mrb[0].mxu0
          %v1360 = vadd.f32 %v1134, %v1359
          %v1361 = vpop.f32.mrb[0].mxu0
          %v1362 = vadd.f32 %v1138, %v1361
          %1363 = vdwg.mxu0
          %1364 = vmatprep.subr.bf16.mxu0 %v1250
          %1365 = vmatpush1.bf16.msra.mxu0 %v1249
          %1366 = vmatprep.subr.bf16.mxu0 %v1254
          %1367 = vmatpush1.bf16.msra.mxu0 %v1253
          %1368 = vmatprep.subr.bf16.mxu0 %v1258
          %1369 = vmatpush1.bf16.msra.mxu0 %v1257
          %1370 = vmatprep.subr.bf16.mxu0 %v1262
          %1371 = vmatpush1.bf16.msra.mxu0 %v1261
          %1372 = vmatprep.subr.bf16.mxu0 %v1266
          %1373 = vmatpush1.bf16.msra.mxu0 %v1265
          %1374 = vmatprep.subr.bf16.mxu0 %v1270
          %1375 = vmatpush1.bf16.msra.mxu0 %v1269
          %1376 = vmatprep.subr.bf16.mxu0 %v1274
          %1377 = vmatpush1.bf16.msra.mxu0 %v1273
          %1378 = vmatprep.subr.bf16.mxu0 %v1278
          %1379 = vmatpush1.bf16.msra.mxu0 %v1277
          %1380 = vmatprep.subr.bf16.mxu0 0
          %1381 = vmatpush1.bf16.msra.mxu0 0
          %1382 = vmatprep.subr.bf16.mxu0 0
          %1383 = vmatpush1.bf16.msra.mxu0 0
          %1384 = vmatprep.subr.bf16.mxu0 0
          %1385 = vmatpush1.bf16.msra.mxu0 0
          %1386 = vmatprep.subr.bf16.mxu0 0
          %1387 = vmatpush1.bf16.msra.mxu0 0
          %1388 = vmatprep.subr.bf16.mxu0 0
          %1389 = vmatpush1.bf16.msra.mxu0 0
          %1390 = vmatprep.subr.bf16.mxu0 0
          %1391 = vmatpush1.bf16.msra.mxu0 0
          %1392 = vmatprep.subr.bf16.mxu0 0
          %1393 = vmatpush1.bf16.msra.mxu0 0
          %1394 = vmatprep.subr.bf16.mxu0 0
          %1395 = vmatpush1.bf16.msra.mxu0 0
          %1396 = vmatprep.mubr.bf16.mxu0 0
          %1397 = vmatmul.mubr.bf16.gmra.mrb[0].mxu0 %v1095
          %v1398 = vpop.f32.mrb[0].mxu0
          %v1399 = vadd.f32 %v1142, %v1398
          %v1400 = vpop.f32.mrb[0].mxu0
          %v1401 = vadd.f32 %v1146, %v1400
          %v1402 = vpop.f32.mrb[0].mxu0
          %v1403 = vadd.f32 %v1142, %v1402
          %v1404 = vpop.f32.mrb[0].mxu0
          %v1405 = vadd.f32 %v1146, %v1404
          %1406 = vmatprep.mubr.bf16.mxu0 0
          %1407 = vmatmul.mubr.bf16.gmra.mrb[0].mxu0 %v1096
          %v1408 = vpop.f32.mrb[0].mxu0
          %v1409 = vadd.f32 %v1142, %v1408
          %v1410 = vpop.f32.mrb[0].mxu0
          %v1411 = vadd.f32 %v1146, %v1410
          %v1412 = vpop.f32.mrb[0].mxu0
          %v1413 = vadd.f32 %v1142, %v1412
          %v1414 = vpop.f32.mrb[0].mxu0
          %v1415 = vadd.f32 %v1146, %v1414
          %1416 = vdwg.mxu0
          %1417 = vst [vmem:[#allocation3] sm:$0xff] %v1346
          %1418 = vst [vmem:[#allocation3 + $0x8] sm:$0xff] %v1348
          %1419 = vst [vmem:[#allocation3 + $0x10] sm:$0xff] %v1399
          %1420 = vst [vmem:[#allocation3 + $0x18] sm:$0xff] %v1401
          %1421 = vst [vmem:[#allocation3 + $0x20] sm:$0xff] %v1350
          %1422 = vst [vmem:[#allocation3 + $0x28] sm:$0xff] %v1352
          %1423 = vst [vmem:[#allocation3 + $0x30] sm:$0xff] %v1403
          %1424 = vst [vmem:[#allocation3 + $0x38] sm:$0xff] %v1405
          %1425 = vst [vmem:[#allocation3 + $0x40] sm:$0xff] %v1356
          %1426 = vst [vmem:[#allocation3 + $0x48] sm:$0xff] %v1358
          %1427 = vst [vmem:[#allocation3 + $0x50] sm:$0xff] %v1409
          %1428 = vst [vmem:[#allocation3 + $0x58] sm:$0xff] %v1411
          %1429 = vst [vmem:[#allocation3 + $0x60] sm:$0xff] %v1360
          %1430 = vst [vmem:[#allocation3 + $0x68] sm:$0xff] %v1362
          %1431 = vst [vmem:[#allocation3 + $0x70] sm:$0xff] %v1413
          %1432 = vst [vmem:[#allocation3 + $0x78] sm:$0xff] %v1415
        $region84: #{tpu_custom_call.1} parent=55 // pred_fallthru
          _
        %p1433 = scmp.eq.s32.totalorder %s43, 0
        // Predicated region
        $region85: #{tpu_custom_call.1} parent=55 // pred_check
          %p1434 = pneg %p1433
        $region86: #{tpu_custom_call.1} parent=55 // pred_check_branch
          %1436 = sbr.rel (%p1434) target = $region88
        $region87: #{tpu_custom_call.1} parent=55 // pred_region
          %v1437 = vld [vmem:[%s599] sm:$0xff]
          %1438 = vst [vmem:[#allocation4] sm:$0xff] %v1437
          %v1439 = vld [vmem:[%s513] sm:$0xff]
          %1440 = vst [vmem:[#allocation5] sm:$0xff] %v1439
        $region88: #{tpu_custom_call.1} parent=55 // pred_fallthru
          _
        %v1441 = vld [vmem:[#allocation4] sm:$0xff]
        %v1442 = vld [vmem:[#allocation5] sm:$0xff]
        %s1443 = smul.u32 0, 4
        %s1444 = smul.addr %s1443, 8
        %s1445 = scalar_lea.vmem [#allocation3], %s1444
        %v1446 = vld [vmem:[%s1445] sm:$0xff]
        %v1447 = vld [vmem:[%s1445 + $0x8] sm:$0xff]
        %v1448 = vld [vmem:[%s1445 + $0x10] sm:$0xff]
        %v1449 = vld [vmem:[%s1445 + $0x18] sm:$0xff]
        %v1450 = vpack.c.bf16 %v1441, %v1441
        %v1451 = vld [vmem:[%s495] sm:$0xff]
        %v1452 = vld [vmem:[%s495 + $0x8] sm:$0xff]
        %v1453 = vld [vmem:[%s495 + $0x10] sm:$0xff]
        %v1454 = vld [vmem:[%s495 + $0x18] sm:$0xff]
        %v1455 = vld [vmem:[%s495 + $0x20] sm:$0xff]
        %v1456 = vld [vmem:[%s495 + $0x28] sm:$0xff]
        %v1457 = vld [vmem:[%s495 + $0x30] sm:$0xff]
        %v1458 = vld [vmem:[%s495 + $0x38] sm:$0xff]
        %v1459 = vld [vmem:[%s495 + $0x40] sm:$0xff]
        %v1460 = vld [vmem:[%s495 + $0x48] sm:$0xff]
        %v1461 = vld [vmem:[%s495 + $0x50] sm:$0xff]
        %v1462 = vld [vmem:[%s495 + $0x58] sm:$0xff]
        %v1463 = vld [vmem:[%s495 + $0x60] sm:$0xff]
        %v1464 = vld [vmem:[%s495 + $0x68] sm:$0xff]
        %v1465 = vld [vmem:[%s495 + $0x70] sm:$0xff]
        %v1466 = vld [vmem:[%s495 + $0x78] sm:$0xff]
        %v1467 = vld [vmem:[%s495 + $0x80] sm:$0xff]
        %v1468 = vld [vmem:[%s495 + $0x88] sm:$0xff]
        %v1469 = vld [vmem:[%s495 + $0x90] sm:$0xff]
        %v1470 = vld [vmem:[%s495 + $0x98] sm:$0xff]
        %v1471 = vld [vmem:[%s495 + $0xa0] sm:$0xff]
        %v1472 = vld [vmem:[%s495 + $0xa8] sm:$0xff]
        %v1473 = vld [vmem:[%s495 + $0xb0] sm:$0xff]
        %v1474 = vld [vmem:[%s495 + $0xb8] sm:$0xff]
        %v1475 = vld [vmem:[%s495 + $0xc0] sm:$0xff]
        %v1476 = vld [vmem:[%s495 + $0xc8] sm:$0xff]
        %v1477 = vld [vmem:[%s495 + $0xd0] sm:$0xff]
        %v1478 = vld [vmem:[%s495 + $0xd8] sm:$0xff]
        %v1479 = vld [vmem:[%s495 + $0xe0] sm:$0xff]
        %v1480 = vld [vmem:[%s495 + $0xe8] sm:$0xff]
        %v1481 = vld [vmem:[%s495 + $0xf0] sm:$0xff]
        %v1482 = vld [vmem:[%s495 + $0xf8] sm:$0xff]
        %v1515 = vunpack.c.l.b16 %v1451
        %v1516 = vunpack.c.h.b16 %v1451
        %v1517 = vunpack.c.l.b16 %v1452
        %v1518 = vunpack.c.h.b16 %v1452
        %v1519 = vunpack.c.l.b16 %v1453
        %v1520 = vunpack.c.h.b16 %v1453
        %v1521 = vunpack.c.l.b16 %v1454
        %v1522 = vunpack.c.h.b16 %v1454
        %v1523 = vunpack.c.l.b16 %v1455
        %v1524 = vunpack.c.h.b16 %v1455
        %v1525 = vunpack.c.l.b16 %v1456
        %v1526 = vunpack.c.h.b16 %v1456
        %v1527 = vunpack.c.l.b16 %v1457
        %v1528 = vunpack.c.h.b16 %v1457
        %v1529 = vunpack.c.l.b16 %v1458
        %v1530 = vunpack.c.h.b16 %v1458
        %v1531 = vunpack.c.l.b16 %v1459
        %v1532 = vunpack.c.h.b16 %v1459
        %v1533 = vunpack.c.l.b16 %v1460
        %v1534 = vunpack.c.h.b16 %v1460
        %v1535 = vunpack.c.l.b16 %v1461
        %v1536 = vunpack.c.h.b16 %v1461
        %v1537 = vunpack.c.l.b16 %v1462
        %v1538 = vunpack.c.h.b16 %v1462
        %v1539 = vunpack.c.l.b16 %v1463
        %v1540 = vunpack.c.h.b16 %v1463
        %v1541 = vunpack.c.l.b16 %v1464
        %v1542 = vunpack.c.h.b16 %v1464
        %v1543 = vunpack.c.l.b16 %v1465
        %v1544 = vunpack.c.h.b16 %v1465
        %v1545 = vunpack.c.l.b16 %v1466
        %v1546 = vunpack.c.h.b16 %v1466
        %v1547 = vunpack.c.l.b16 %v1467
        %v1548 = vunpack.c.h.b16 %v1467
        %v1549 = vunpack.c.l.b16 %v1468
        %v1550 = vunpack.c.h.b16 %v1468
        %v1551 = vunpack.c.l.b16 %v1469
        %v1552 = vunpack.c.h.b16 %v1469
        %v1553 = vunpack.c.l.b16 %v1470
        %v1554 = vunpack.c.h.b16 %v1470
        %v1555 = vunpack.c.l.b16 %v1471
        %v1556 = vunpack.c.h.b16 %v1471
        %v1557 = vunpack.c.l.b16 %v1472
        %v1558 = vunpack.c.h.b16 %v1472
        %v1559 = vunpack.c.l.b16 %v1473
        %v1560 = vunpack.c.h.b16 %v1473
        %v1561 = vunpack.c.l.b16 %v1474
        %v1562 = vunpack.c.h.b16 %v1474
        %v1563 = vunpack.c.l.b16 %v1475
        %v1564 = vunpack.c.h.b16 %v1475
        %v1565 = vunpack.c.l.b16 %v1476
        %v1566 = vunpack.c.h.b16 %v1476
        %v1567 = vunpack.c.l.b16 %v1477
        %v1568 = vunpack.c.h.b16 %v1477
        %v1569 = vunpack.c.l.b16 %v1478
        %v1570 = vunpack.c.h.b16 %v1478
        %v1571 = vunpack.c.l.b16 %v1479
        %v1572 = vunpack.c.h.b16 %v1479
        %v1573 = vunpack.c.l.b16 %v1480
        %v1574 = vunpack.c.h.b16 %v1480
        %v1575 = vunpack.c.l.b16 %v1481
        %v1576 = vunpack.c.h.b16 %v1481
        %v1577 = vunpack.c.l.b16 %v1482
        %v1578 = vunpack.c.h.b16 %v1482
        %v1579 = vpack.c.b16 %v1519, %v1515
        %v1580 = vpack.c.b16 %v1520, %v1516
        %v1581 = vpack.c.b16 %v1521, %v1517
        %v1582 = vpack.c.b16 %v1522, %v1518
        %v1583 = vpack.c.b16 %v1527, %v1523
        %v1584 = vpack.c.b16 %v1528, %v1524
        %v1585 = vpack.c.b16 %v1529, %v1525
        %v1586 = vpack.c.b16 %v1530, %v1526
        %v1587 = vpack.c.b16 %v1535, %v1531
        %v1588 = vpack.c.b16 %v1536, %v1532
        %v1589 = vpack.c.b16 %v1537, %v1533
        %v1590 = vpack.c.b16 %v1538, %v1534
        %v1591 = vpack.c.b16 %v1543, %v1539
        %v1592 = vpack.c.b16 %v1544, %v1540
        %v1593 = vpack.c.b16 %v1545, %v1541
        %v1594 = vpack.c.b16 %v1546, %v1542
        %v1595 = vpack.c.b16 %v1551, %v1547
        %v1596 = vpack.c.b16 %v1552, %v1548
        %v1597 = vpack.c.b16 %v1553, %v1549
        %v1598 = vpack.c.b16 %v1554, %v1550
        %v1599 = vpack.c.b16 %v1559, %v1555
        %v1600 = vpack.c.b16 %v1560, %v1556
        %v1601 = vpack.c.b16 %v1561, %v1557
        %v1602 = vpack.c.b16 %v1562, %v1558
        %v1603 = vpack.c.b16 %v1567, %v1563
        %v1604 = vpack.c.b16 %v1568, %v1564
        %v1605 = vpack.c.b16 %v1569, %v1565
        %v1606 = vpack.c.b16 %v1570, %v1566
        %v1607 = vpack.c.b16 %v1575, %v1571
        %v1608 = vpack.c.b16 %v1576, %v1572
        %v1609 = vpack.c.b16 %v1577, %v1573
        %v1610 = vpack.c.b16 %v1578, %v1574
        %1643 = vmatprep.subr.bf16.mxu0 %v1580
        %1644 = vmatpush1.bf16.msra.mxu0 %v1579
        %1645 = vmatprep.subr.bf16.mxu0 %v1584
        %1646 = vmatpush1.bf16.msra.mxu0 %v1583
        %1647 = vmatprep.subr.bf16.mxu0 %v1588
        %1648 = vmatpush1.bf16.msra.mxu0 %v1587
        %1649 = vmatprep.subr.bf16.mxu0 %v1592
        %1650 = vmatpush1.bf16.msra.mxu0 %v1591
        %1651 = vmatprep.subr.bf16.mxu0 %v1596
        %1652 = vmatpush1.bf16.msra.mxu0 %v1595
        %1653 = vmatprep.subr.bf16.mxu0 %v1600
        %1654 = vmatpush1.bf16.msra.mxu0 %v1599
        %1655 = vmatprep.subr.bf16.mxu0 %v1604
        %1656 = vmatpush1.bf16.msra.mxu0 %v1603
        %1657 = vmatprep.subr.bf16.mxu0 %v1608
        %1658 = vmatpush1.bf16.msra.mxu0 %v1607
        %1659 = vmatprep.subr.bf16.mxu0 0
        %1660 = vmatpush1.bf16.msra.mxu0 0
        %1661 = vmatprep.subr.bf16.mxu0 0
        %1662 = vmatpush1.bf16.msra.mxu0 0
        %1663 = vmatprep.subr.bf16.mxu0 0
        %1664 = vmatpush1.bf16.msra.mxu0 0
        %1665 = vmatprep.subr.bf16.mxu0 0
        %1666 = vmatpush1.bf16.msra.mxu0 0
        %1667 = vmatprep.subr.bf16.mxu0 0
        %1668 = vmatpush1.bf16.msra.mxu0 0
        %1669 = vmatprep.subr.bf16.mxu0 0
        %1670 = vmatpush1.bf16.msra.mxu0 0
        %1671 = vmatprep.subr.bf16.mxu0 0
        %1672 = vmatpush1.bf16.msra.mxu0 0
        %1673 = vmatprep.subr.bf16.mxu0 0
        %1674 = vmatpush1.bf16.msra.mxu0 0
        %1675 = vmatprep.mubr.bf16.mxu0 0
        %1676 = vmatmul.mubr.bf16.gmra.mrb[0].mxu0 %v1450
        %v1677 = vpop.f32.mrb[0].mxu0
        %v1678 = vadd.f32 0.0, %v1677
        %v1679 = vpop.f32.mrb[0].mxu0
        %v1680 = vadd.f32 0.0, %v1679
        %v1681 = vpop.f32.mrb[0].mxu0
        %v1682 = vpop.f32.mrb[0].mxu0
        %1683 = vdwg.mxu0
        %1684 = vmatprep.subr.bf16.mxu0 %v1582
        %1685 = vmatpush1.bf16.msra.mxu0 %v1581
        %1686 = vmatprep.subr.bf16.mxu0 %v1586
        %1687 = vmatpush1.bf16.msra.mxu0 %v1585
        %1688 = vmatprep.subr.bf16.mxu0 %v1590
        %1689 = vmatpush1.bf16.msra.mxu0 %v1589
        %1690 = vmatprep.subr.bf16.mxu0 %v1594
        %1691 = vmatpush1.bf16.msra.mxu0 %v1593
        %1692 = vmatprep.subr.bf16.mxu0 %v1598
        %1693 = vmatpush1.bf16.msra.mxu0 %v1597
        %1694 = vmatprep.subr.bf16.mxu0 %v1602
        %1695 = vmatpush1.bf16.msra.mxu0 %v1601
        %1696 = vmatprep.subr.bf16.mxu0 %v1606
        %1697 = vmatpush1.bf16.msra.mxu0 %v1605
        %1698 = vmatprep.subr.bf16.mxu0 %v1610
        %1699 = vmatpush1.bf16.msra.mxu0 %v1609
        %1700 = vmatprep.subr.bf16.mxu0 0
        %1701 = vmatpush1.bf16.msra.mxu0 0
        %1702 = vmatprep.subr.bf16.mxu0 0
        %1703 = vmatpush1.bf16.msra.mxu0 0
        %1704 = vmatprep.subr.bf16.mxu0 0
        %1705 = vmatpush1.bf16.msra.mxu0 0
        %1706 = vmatprep.subr.bf16.mxu0 0
        %1707 = vmatpush1.bf16.msra.mxu0 0
        %1708 = vmatprep.subr.bf16.mxu0 0
        %1709 = vmatpush1.bf16.msra.mxu0 0
        %1710 = vmatprep.subr.bf16.mxu0 0
        %1711 = vmatpush1.bf16.msra.mxu0 0
        %1712 = vmatprep.subr.bf16.mxu0 0
        %1713 = vmatpush1.bf16.msra.mxu0 0
        %1714 = vmatprep.subr.bf16.mxu0 0
        %1715 = vmatpush1.bf16.msra.mxu0 0
        %1716 = vmatprep.mubr.bf16.mxu0 0
        %1717 = vmatmul.mubr.bf16.gmra.mrb[0].mxu0 %v1450
        %v1718 = vpop.f32.mrb[0].mxu0
        %v1719 = vadd.f32 0.0, %v1718
        %v1720 = vpop.f32.mrb[0].mxu0
        %v1721 = vadd.f32 0.0, %v1720
        %v1722 = vpop.f32.mrb[0].mxu0
        %v1723 = vpop.f32.mrb[0].mxu0
        %1724 = vdwg.mxu0
        %v1725 = vadd.f32 %v1446, %v1678
        %v1726 = vadd.f32 %v1447, %v1680
        %v1727 = vadd.f32 %v1448, %v1719
        %v1728 = vadd.f32 %v1449, %v1721
        %v1729 = vxor.u32 %v1725, 2147483648
        %v1730 = vxor.u32 %v1726, 2147483648
        %v1731 = vxor.u32 %v1727, 2147483648
        %v1732 = vmul.f32 %v1729, 1.442695
        %v1733 = vpow.pop %v1732
        %v1734 = vmul.f32 %v1730, 1.442695
        %v1735 = vpow.pop %v1734
        %v1736 = vmul.f32 %v1731, 1.442695
        %v1737 = vpow.pop %v1736
        %v1738 = vadd.f32 %v1733, 1.0
        %v1739 = vadd.f32 %v1735, 1.0
        %v1740 = vadd.f32 %v1737, 1.0
        %v1741 = vrcp.pop %v1738
        %v1742 = vmul.f32 1.0, %v1741
        %v1743 = vrcp.pop %v1739
        %v1744 = vmul.f32 1.0, %v1743
        %v1745 = vrcp.pop %v1740
        %v1746 = vmul.f32 1.0, %v1745
        %v1747 = vtanh.pop %v1728
        %v1748 = vmul.f32 %v1744, %v1442
        %v1749 = vmul.f32 %v1742, %v1747
        %v1750 = vadd.f32 %v1748, %v1749
        %v1751 = vtanh.pop %v1750
        %v1752 = vmul.f32 %v1746, %v1751
        %s1753 = sadd.s32 %s602, 0
        %s1754 = scalar_lea.vmem [#allocation2], %s1753
        %1755 = vst [vmem:[%s1754] sm:$0xff] %v1752
        %s1756 = smul.u32 1, 4
        %s1757 = smul.addr %s1756, 8
        %s1758 = scalar_lea.vmem [#allocation3], %s1757
        %v1759 = vld [vmem:[%s1758] sm:$0xff]
        %v1760 = vld [vmem:[%s1758 + $0x8] sm:$0xff]
        %v1761 = vld [vmem:[%s1758 + $0x10] sm:$0xff]
        %v1762 = vld [vmem:[%s1758 + $0x18] sm:$0xff]
        %v1763 = vpack.c.bf16 %v1752, %v1752
        %v1764 = vld [vmem:[%s495] sm:$0xff]
        %v1765 = vld [vmem:[%s495 + $0x8] sm:$0xff]
        %v1766 = vld [vmem:[%s495 + $0x10] sm:$0xff]
        %v1767 = vld [vmem:[%s495 + $0x18] sm:$0xff]
        %v1768 = vld [vmem:[%s495 + $0x20] sm:$0xff]
        %v1769 = vld [vmem:[%s495 + $0x28] sm:$0xff]
        %v1770 = vld [vmem:[%s495 + $0x30] sm:$0xff]
        %v1771 = vld [vmem:[%s495 + $0x38] sm:$0xff]
        %v1772 = vld [vmem:[%s495 + $0x40] sm:$0xff]
        %v1773 = vld [vmem:[%s495 + $0x48] sm:$0xff]
        %v1774 = vld [vmem:[%s495 + $0x50] sm:$0xff]
        %v1775 = vld [vmem:[%s495 + $0x58] sm:$0xff]
        %v1776 = vld [vmem:[%s495 + $0x60] sm:$0xff]
        %v1777 = vld [vmem:[%s495 + $0x68] sm:$0xff]
        %v1778 = vld [vmem:[%s495 + $0x70] sm:$0xff]
        %v1779 = vld [vmem:[%s495 + $0x78] sm:$0xff]
        %v1780 = vld [vmem:[%s495 + $0x80] sm:$0xff]
        %v1781 = vld [vmem:[%s495 + $0x88] sm:$0xff]
        %v1782 = vld [vmem:[%s495 + $0x90] sm:$0xff]
        %v1783 = vld [vmem:[%s495 + $0x98] sm:$0xff]
        %v1784 = vld [vmem:[%s495 + $0xa0] sm:$0xff]
        %v1785 = vld [vmem:[%s495 + $0xa8] sm:$0xff]
        %v1786 = vld [vmem:[%s495 + $0xb0] sm:$0xff]
        %v1787 = vld [vmem:[%s495 + $0xb8] sm:$0xff]
        %v1788 = vld [vmem:[%s495 + $0xc0] sm:$0xff]
        %v1789 = vld [vmem:[%s495 + $0xc8] sm:$0xff]
        %v1790 = vld [vmem:[%s495 + $0xd0] sm:$0xff]
        %v1791 = vld [vmem:[%s495 + $0xd8] sm:$0xff]
        %v1792 = vld [vmem:[%s495 + $0xe0] sm:$0xff]
        %v1793 = vld [vmem:[%s495 + $0xe8] sm:$0xff]
        %v1794 = vld [vmem:[%s495 + $0xf0] sm:$0xff]
        %v1795 = vld [vmem:[%s495 + $0xf8] sm:$0xff]
        %v1828 = vunpack.c.l.b16 %v1764
        %v1829 = vunpack.c.h.b16 %v1764
        %v1830 = vunpack.c.l.b16 %v1765
        %v1831 = vunpack.c.h.b16 %v1765
        %v1832 = vunpack.c.l.b16 %v1766
        %v1833 = vunpack.c.h.b16 %v1766
        %v1834 = vunpack.c.l.b16 %v1767
        %v1835 = vunpack.c.h.b16 %v1767
        %v1836 = vunpack.c.l.b16 %v1768
        %v1837 = vunpack.c.h.b16 %v1768
        %v1838 = vunpack.c.l.b16 %v1769
        %v1839 = vunpack.c.h.b16 %v1769
        %v1840 = vunpack.c.l.b16 %v1770
        %v1841 = vunpack.c.h.b16 %v1770
        %v1842 = vunpack.c.l.b16 %v1771
        %v1843 = vunpack.c.h.b16 %v1771
        %v1844 = vunpack.c.l.b16 %v1772
        %v1845 = vunpack.c.h.b16 %v1772
        %v1846 = vunpack.c.l.b16 %v1773
        %v1847 = vunpack.c.h.b16 %v1773
        %v1848 = vunpack.c.l.b16 %v1774
        %v1849 = vunpack.c.h.b16 %v1774
        %v1850 = vunpack.c.l.b16 %v1775
        %v1851 = vunpack.c.h.b16 %v1775
        %v1852 = vunpack.c.l.b16 %v1776
        %v1853 = vunpack.c.h.b16 %v1776
        %v1854 = vunpack.c.l.b16 %v1777
        %v1855 = vunpack.c.h.b16 %v1777
        %v1856 = vunpack.c.l.b16 %v1778
        %v1857 = vunpack.c.h.b16 %v1778
        %v1858 = vunpack.c.l.b16 %v1779
        %v1859 = vunpack.c.h.b16 %v1779
        %v1860 = vunpack.c.l.b16 %v1780
        %v1861 = vunpack.c.h.b16 %v1780
        %v1862 = vunpack.c.l.b16 %v1781
        %v1863 = vunpack.c.h.b16 %v1781
        %v1864 = vunpack.c.l.b16 %v1782
        %v1865 = vunpack.c.h.b16 %v1782
        %v1866 = vunpack.c.l.b16 %v1783
        %v1867 = vunpack.c.h.b16 %v1783
        %v1868 = vunpack.c.l.b16 %v1784
        %v1869 = vunpack.c.h.b16 %v1784
        %v1870 = vunpack.c.l.b16 %v1785
        %v1871 = vunpack.c.h.b16 %v1785
        %v1872 = vunpack.c.l.b16 %v1786
        %v1873 = vunpack.c.h.b16 %v1786
        %v1874 = vunpack.c.l.b16 %v1787
        %v1875 = vunpack.c.h.b16 %v1787
        %v1876 = vunpack.c.l.b16 %v1788
        %v1877 = vunpack.c.h.b16 %v1788
        %v1878 = vunpack.c.l.b16 %v1789
        %v1879 = vunpack.c.h.b16 %v1789
        %v1880 = vunpack.c.l.b16 %v1790
        %v1881 = vunpack.c.h.b16 %v1790
        %v1882 = vunpack.c.l.b16 %v1791
        %v1883 = vunpack.c.h.b16 %v1791
        %v1884 = vunpack.c.l.b16 %v1792
        %v1885 = vunpack.c.h.b16 %v1792
        %v1886 = vunpack.c.l.b16 %v1793
        %v1887 = vunpack.c.h.b16 %v1793
        %v1888 = vunpack.c.l.b16 %v1794
        %v1889 = vunpack.c.h.b16 %v1794
        %v1890 = vunpack.c.l.b16 %v1795
        %v1891 = vunpack.c.h.b16 %v1795
        %v1892 = vpack.c.b16 %v1832, %v1828
        %v1893 = vpack.c.b16 %v1833, %v1829
        %v1894 = vpack.c.b16 %v1834, %v1830
        %v1895 = vpack.c.b16 %v1835, %v1831
        %v1896 = vpack.c.b16 %v1840, %v1836
        %v1897 = vpack.c.b16 %v1841, %v1837
        %v1898 = vpack.c.b16 %v1842, %v1838
        %v1899 = vpack.c.b16 %v1843, %v1839
        %v1900 = vpack.c.b16 %v1848, %v1844
        %v1901 = vpack.c.b16 %v1849, %v1845
        %v1902 = vpack.c.b16 %v1850, %v1846
        %v1903 = vpack.c.b16 %v1851, %v1847
        %v1904 = vpack.c.b16 %v1856, %v1852
        %v1905 = vpack.c.b16 %v1857, %v1853
        %v1906 = vpack.c.b16 %v1858, %v1854
        %v1907 = vpack.c.b16 %v1859, %v1855
        %v1908 = vpack.c.b16 %v1864, %v1860
        %v1909 = vpack.c.b16 %v1865, %v1861
        %v1910 = vpack.c.b16 %v1866, %v1862
        %v1911 = vpack.c.b16 %v1867, %v1863
        %v1912 = vpack.c.b16 %v1872, %v1868
        %v1913 = vpack.c.b16 %v1873, %v1869
        %v1914 = vpack.c.b16 %v1874, %v1870
        %v1915 = vpack.c.b16 %v1875, %v1871
        %v1916 = vpack.c.b16 %v1880, %v1876
        %v1917 = vpack.c.b16 %v1881, %v1877
        %v1918 = vpack.c.b16 %v1882, %v1878
        %v1919 = vpack.c.b16 %v1883, %v1879
        %v1920 = vpack.c.b16 %v1888, %v1884
        %v1921 = vpack.c.b16 %v1889, %v1885
        %v1922 = vpack.c.b16 %v1890, %v1886
        %v1923 = vpack.c.b16 %v1891, %v1887
        %1956 = vmatprep.subr.bf16.mxu0 %v1893
        %1957 = vmatpush1.bf16.msra.mxu0 %v1892
        %1958 = vmatprep.subr.bf16.mxu0 %v1897
        %1959 = vmatpush1.bf16.msra.mxu0 %v1896
        %1960 = vmatprep.subr.bf16.mxu0 %v1901
        %1961 = vmatpush1.bf16.msra.mxu0 %v1900
        %1962 = vmatprep.subr.bf16.mxu0 %v1905
        %1963 = vmatpush1.bf16.msra.mxu0 %v1904
        %1964 = vmatprep.subr.bf16.mxu0 %v1909
        %1965 = vmatpush1.bf16.msra.mxu0 %v1908
        %1966 = vmatprep.subr.bf16.mxu0 %v1913
        %1967 = vmatpush1.bf16.msra.mxu0 %v1912
        %1968 = vmatprep.subr.bf16.mxu0 %v1917
        %1969 = vmatpush1.bf16.msra.mxu0 %v1916
        %1970 = vmatprep.subr.bf16.mxu0 %v1921
        %1971 = vmatpush1.bf16.msra.mxu0 %v1920
        %1972 = vmatprep.subr.bf16.mxu0 0
        %1973 = vmatpush1.bf16.msra.mxu0 0
        %1974 = vmatprep.subr.bf16.mxu0 0
        %1975 = vmatpush1.bf16.msra.mxu0 0
        %1976 = vmatprep.subr.bf16.mxu0 0
        %1977 = vmatpush1.bf16.msra.mxu0 0
        %1978 = vmatprep.subr.bf16.mxu0 0
        %1979 = vmatpush1.bf16.msra.mxu0 0
        %1980 = vmatprep.subr.bf16.mxu0 0
        %1981 = vmatpush1.bf16.msra.mxu0 0
        %1982 = vmatprep.subr.bf16.mxu0 0
        %1983 = vmatpush1.bf16.msra.mxu0 0
        %1984 = vmatprep.subr.bf16.mxu0 0
        %1985 = vmatpush1.bf16.msra.mxu0 0
        %1986 = vmatprep.subr.bf16.mxu0 0
        %1987 = vmatpush1.bf16.msra.mxu0 0
        %1988 = vmatprep.mubr.bf16.mxu0 0
        %1989 = vmatmul.mubr.bf16.gmra.mrb[0].mxu0 %v1763
        %v1990 = vpop.f32.mrb[0].mxu0
        %v1991 = vadd.f32 0.0, %v1990
        %v1992 = vpop.f32.mrb[0].mxu0
        %v1993 = vadd.f32 0.0, %v1992
        %v1994 = vpop.f32.mrb[0].mxu0
        %v1995 = vpop.f32.mrb[0].mxu0
        %1996 = vdwg.mxu0
        %1997 = vmatprep.subr.bf16.mxu0 %v1895
        %1998 = vmatpush1.bf16.msra.mxu0 %v1894
        %1999 = vmatprep.subr.bf16.mxu0 %v1899
        %2000 = vmatpush1.bf16.msra.mxu0 %v1898
        %2001 = vmatprep.subr.bf16.mxu0 %v1903
        %2002 = vmatpush1.bf16.msra.mxu0 %v1902
        %2003 = vmatprep.subr.bf16.mxu0 %v1907
        %2004 = vmatpush1.bf16.msra.mxu0 %v1906
        %2005 = vmatprep.subr.bf16.mxu0 %v1911
        %2006 = vmatpush1.bf16.msra.mxu0 %v1910
        %2007 = vmatprep.subr.bf16.mxu0 %v1915
        %2008 = vmatpush1.bf16.msra.mxu0 %v1914
        %2009 = vmatprep.subr.bf16.mxu0 %v1919
        %2010 = vmatpush1.bf16.msra.mxu0 %v1918
        %2011 = vmatprep.subr.bf16.mxu0 %v1923
        %2012 = vmatpush1.bf16.msra.mxu0 %v1922
        %2013 = vmatprep.subr.bf16.mxu0 0
        %2014 = vmatpush1.bf16.msra.mxu0 0
        %2015 = vmatprep.subr.bf16.mxu0 0
        %2016 = vmatpush1.bf16.msra.mxu0 0
        %2017 = vmatprep.subr.bf16.mxu0 0
        %2018 = vmatpush1.bf16.msra.mxu0 0
        %2019 = vmatprep.subr.bf16.mxu0 0
        %2020 = vmatpush1.bf16.msra.mxu0 0
        %2021 = vmatprep.subr.bf16.mxu0 0
        %2022 = vmatpush1.bf16.msra.mxu0 0
        %2023 = vmatprep.subr.bf16.mxu0 0
        %2024 = vmatpush1.bf16.msra.mxu0 0
        %2025 = vmatprep.subr.bf16.mxu0 0
        %2026 = vmatpush1.bf16.msra.mxu0 0
        %2027 = vmatprep.subr.bf16.mxu0 0
        %2028 = vmatpush1.bf16.msra.mxu0 0
        %2029 = vmatprep.mubr.bf16.mxu0 0
        %2030 = vmatmul.mubr.bf16.gmra.mrb[0].mxu0 %v1763
        %v2031 = vpop.f32.mrb[0].mxu0
        %v2032 = vadd.f32 0.0, %v2031
        %v2033 = vpop.f32.mrb[0].mxu0
        %v2034 = vadd.f32 0.0, %v2033
        %v2035 = vpop.f32.mrb[0].mxu0
        %v2036 = vpop.f32.mrb[0].mxu0
        %2037 = vdwg.mxu0
        %v2038 = vadd.f32 %v1759, %v1991
        %v2039 = vadd.f32 %v1760, %v1993
        %v2040 = vadd.f32 %v1761, %v2032
        %v2041 = vadd.f32 %v1762, %v2034
        %v2042 = vxor.u32 %v2038, 2147483648
        %v2043 = vxor.u32 %v2039, 2147483648
        %v2044 = vxor.u32 %v2040, 2147483648
        %v2045 = vmul.f32 %v2042, 1.442695
        %v2046 = vpow.pop %v2045
        %v2047 = vmul.f32 %v2043, 1.442695
        %v2048 = vpow.pop %v2047
        %v2049 = vmul.f32 %v2044, 1.442695
        %v2050 = vpow.pop %v2049
        %v2051 = vadd.f32 %v2046, 1.0
        %v2052 = vadd.f32 %v2048, 1.0
        %v2053 = vadd.f32 %v2050, 1.0
        %v2054 = vrcp.pop %v2051
        %v2055 = vmul.f32 1.0, %v2054
        %v2056 = vrcp.pop %v2052
        %v2057 = vmul.f32 1.0, %v2056
        %v2058 = vrcp.pop %v2053
        %v2059 = vmul.f32 1.0, %v2058
        %v2060 = vtanh.pop %v2041
        %v2061 = vmul.f32 %v2057, %v1750
        %v2062 = vmul.f32 %v2055, %v2060
        %v2063 = vadd.f32 %v2061, %v2062
        %v2064 = vtanh.pop %v2063
        %v2065 = vmul.f32 %v2059, %v2064
        %s2066 = sadd.s32 %s602, 8
        %s2067 = scalar_lea.vmem [#allocation2], %s2066
        %2068 = vst [vmem:[%s2067] sm:$0xff] %v2065
        %s2069 = smul.u32 2, 4
        %s2070 = smul.addr %s2069, 8
        %s2071 = scalar_lea.vmem [#allocation3], %s2070
        %v2072 = vld [vmem:[%s2071] sm:$0xff]
        %v2073 = vld [vmem:[%s2071 + $0x8] sm:$0xff]
        %v2074 = vld [vmem:[%s2071 + $0x10] sm:$0xff]
        %v2075 = vld [vmem:[%s2071 + $0x18] sm:$0xff]
        %v2076 = vpack.c.bf16 %v2065, %v2065
        %v2077 = vld [vmem:[%s495] sm:$0xff]
        %v2078 = vld [vmem:[%s495 + $0x8] sm:$0xff]
        %v2079 = vld [vmem:[%s495 + $0x10] sm:$0xff]
        %v2080 = vld [vmem:[%s495 + $0x18] sm:$0xff]
        %v2081 = vld [vmem:[%s495 + $0x20] sm:$0xff]
        %v2082 = vld [vmem:[%s495 + $0x28] sm:$0xff]
        %v2083 = vld [vmem:[%s495 + $0x30] sm:$0xff]
        %v2084 = vld [vmem:[%s495 + $0x38] sm:$0xff]
        %v2085 = vld [vmem:[%s495 + $0x40] sm:$0xff]
        %v2086 = vld [vmem:[%s495 + $0x48] sm:$0xff]
        %v2087 = vld [vmem:[%s495 + $0x50] sm:$0xff]
        %v2088 = vld [vmem:[%s495 + $0x58] sm:$0xff]
        %v2089 = vld [vmem:[%s495 + $0x60] sm:$0xff]
        %v2090 = vld [vmem:[%s495 + $0x68] sm:$0xff]
        %v2091 = vld [vmem:[%s495 + $0x70] sm:$0xff]
        %v2092 = vld [vmem:[%s495 + $0x78] sm:$0xff]
        %v2093 = vld [vmem:[%s495 + $0x80] sm:$0xff]
        %v2094 = vld [vmem:[%s495 + $0x88] sm:$0xff]
        %v2095 = vld [vmem:[%s495 + $0x90] sm:$0xff]
        %v2096 = vld [vmem:[%s495 + $0x98] sm:$0xff]
        %v2097 = vld [vmem:[%s495 + $0xa0] sm:$0xff]
        %v2098 = vld [vmem:[%s495 + $0xa8] sm:$0xff]
        %v2099 = vld [vmem:[%s495 + $0xb0] sm:$0xff]
        %v2100 = vld [vmem:[%s495 + $0xb8] sm:$0xff]
        %v2101 = vld [vmem:[%s495 + $0xc0] sm:$0xff]
        %v2102 = vld [vmem:[%s495 + $0xc8] sm:$0xff]
        %v2103 = vld [vmem:[%s495 + $0xd0] sm:$0xff]
        %v2104 = vld [vmem:[%s495 + $0xd8] sm:$0xff]
        %v2105 = vld [vmem:[%s495 + $0xe0] sm:$0xff]
        %v2106 = vld [vmem:[%s495 + $0xe8] sm:$0xff]
        %v2107 = vld [vmem:[%s495 + $0xf0] sm:$0xff]
        %v2108 = vld [vmem:[%s495 + $0xf8] sm:$0xff]
        %v2141 = vunpack.c.l.b16 %v2077
        %v2142 = vunpack.c.h.b16 %v2077
        %v2143 = vunpack.c.l.b16 %v2078
        %v2144 = vunpack.c.h.b16 %v2078
        %v2145 = vunpack.c.l.b16 %v2079
        %v2146 = vunpack.c.h.b16 %v2079
        %v2147 = vunpack.c.l.b16 %v2080
        %v2148 = vunpack.c.h.b16 %v2080
        %v2149 = vunpack.c.l.b16 %v2081
        %v2150 = vunpack.c.h.b16 %v2081
        %v2151 = vunpack.c.l.b16 %v2082
        %v2152 = vunpack.c.h.b16 %v2082
        %v2153 = vunpack.c.l.b16 %v2083
        %v2154 = vunpack.c.h.b16 %v2083
        %v2155 = vunpack.c.l.b16 %v2084
        %v2156 = vunpack.c.h.b16 %v2084
        %v2157 = vunpack.c.l.b16 %v2085
        %v2158 = vunpack.c.h.b16 %v2085
        %v2159 = vunpack.c.l.b16 %v2086
        %v2160 = vunpack.c.h.b16 %v2086
        %v2161 = vunpack.c.l.b16 %v2087
        %v2162 = vunpack.c.h.b16 %v2087
        %v2163 = vunpack.c.l.b16 %v2088
        %v2164 = vunpack.c.h.b16 %v2088
        %v2165 = vunpack.c.l.b16 %v2089
        %v2166 = vunpack.c.h.b16 %v2089
        %v2167 = vunpack.c.l.b16 %v2090
        %v2168 = vunpack.c.h.b16 %v2090
        %v2169 = vunpack.c.l.b16 %v2091
        %v2170 = vunpack.c.h.b16 %v2091
        %v2171 = vunpack.c.l.b16 %v2092
        %v2172 = vunpack.c.h.b16 %v2092
        %v2173 = vunpack.c.l.b16 %v2093
        %v2174 = vunpack.c.h.b16 %v2093
        %v2175 = vunpack.c.l.b16 %v2094
        %v2176 = vunpack.c.h.b16 %v2094
        %v2177 = vunpack.c.l.b16 %v2095
        %v2178 = vunpack.c.h.b16 %v2095
        %v2179 = vunpack.c.l.b16 %v2096
        %v2180 = vunpack.c.h.b16 %v2096
        %v2181 = vunpack.c.l.b16 %v2097
        %v2182 = vunpack.c.h.b16 %v2097
        %v2183 = vunpack.c.l.b16 %v2098
        %v2184 = vunpack.c.h.b16 %v2098
        %v2185 = vunpack.c.l.b16 %v2099
        %v2186 = vunpack.c.h.b16 %v2099
        %v2187 = vunpack.c.l.b16 %v2100
        %v2188 = vunpack.c.h.b16 %v2100
        %v2189 = vunpack.c.l.b16 %v2101
        %v2190 = vunpack.c.h.b16 %v2101
        %v2191 = vunpack.c.l.b16 %v2102
        %v2192 = vunpack.c.h.b16 %v2102
        %v2193 = vunpack.c.l.b16 %v2103
        %v2194 = vunpack.c.h.b16 %v2103
        %v2195 = vunpack.c.l.b16 %v2104
        %v2196 = vunpack.c.h.b16 %v2104
        %v2197 = vunpack.c.l.b16 %v2105
        %v2198 = vunpack.c.h.b16 %v2105
        %v2199 = vunpack.c.l.b16 %v2106
        %v2200 = vunpack.c.h.b16 %v2106
        %v2201 = vunpack.c.l.b16 %v2107
        %v2202 = vunpack.c.h.b16 %v2107
        %v2203 = vunpack.c.l.b16 %v2108
        %v2204 = vunpack.c.h.b16 %v2108
        %v2205 = vpack.c.b16 %v2145, %v2141
        %v2206 = vpack.c.b16 %v2146, %v2142
        %v2207 = vpack.c.b16 %v2147, %v2143
        %v2208 = vpack.c.b16 %v2148, %v2144
        %v2209 = vpack.c.b16 %v2153, %v2149
        %v2210 = vpack.c.b16 %v2154, %v2150
        %v2211 = vpack.c.b16 %v2155, %v2151
        %v2212 = vpack.c.b16 %v2156, %v2152
        %v2213 = vpack.c.b16 %v2161, %v2157
        %v2214 = vpack.c.b16 %v2162, %v2158
        %v2215 = vpack.c.b16 %v2163, %v2159
        %v2216 = vpack.c.b16 %v2164, %v2160
        %v2217 = vpack.c.b16 %v2169, %v2165
        %v2218 = vpack.c.b16 %v2170, %v2166
        %v2219 = vpack.c.b16 %v2171, %v2167
        %v2220 = vpack.c.b16 %v2172, %v2168
        %v2221 = vpack.c.b16 %v2177, %v2173
        %v2222 = vpack.c.b16 %v2178, %v2174
        %v2223 = vpack.c.b16 %v2179, %v2175
        %v2224 = vpack.c.b16 %v2180, %v2176
        %v2225 = vpack.c.b16 %v2185, %v2181
        %v2226 = vpack.c.b16 %v2186, %v2182
        %v2227 = vpack.c.b16 %v2187, %v2183
        %v2228 = vpack.c.b16 %v2188, %v2184
        %v2229 = vpack.c.b16 %v2193, %v2189
        %v2230 = vpack.c.b16 %v2194, %v2190
        %v2231 = vpack.c.b16 %v2195, %v2191
        %v2232 = vpack.c.b16 %v2196, %v2192
        %v2233 = vpack.c.b16 %v2201, %v2197
        %v2234 = vpack.c.b16 %v2202, %v2198
        %v2235 = vpack.c.b16 %v2203, %v2199
        %v2236 = vpack.c.b16 %v2204, %v2200
        %2269 = vmatprep.subr.bf16.mxu0 %v2206
        %2270 = vmatpush1.bf16.msra.mxu0 %v2205
        %2271 = vmatprep.subr.bf16.mxu0 %v2210
        %2272 = vmatpush1.bf16.msra.mxu0 %v2209
        %2273 = vmatprep.subr.bf16.mxu0 %v2214
        %2274 = vmatpush1.bf16.msra.mxu0 %v2213
        %2275 = vmatprep.subr.bf16.mxu0 %v2218
        %2276 = vmatpush1.bf16.msra.mxu0 %v2217
        %2277 = vmatprep.subr.bf16.mxu0 %v2222
        %2278 = vmatpush1.bf16.msra.mxu0 %v2221
        %2279 = vmatprep.subr.bf16.mxu0 %v2226
        %2280 = vmatpush1.bf16.msra.mxu0 %v2225
        %2281 = vmatprep.subr.bf16.mxu0 %v2230
        %2282 = vmatpush1.bf16.msra.mxu0 %v2229
        %2283 = vmatprep.subr.bf16.mxu0 %v2234
        %2284 = vmatpush1.bf16.msra.mxu0 %v2233
        %2285 = vmatprep.subr.bf16.mxu0 0
        %2286 = vmatpush1.bf16.msra.mxu0 0
        %2287 = vmatprep.subr.bf16.mxu0 0
        %2288 = vmatpush1.bf16.msra.mxu0 0
        %2289 = vmatprep.subr.bf16.mxu0 0
        %2290 = vmatpush1.bf16.msra.mxu0 0
        %2291 = vmatprep.subr.bf16.mxu0 0
        %2292 = vmatpush1.bf16.msra.mxu0 0
        %2293 = vmatprep.subr.bf16.mxu0 0
        %2294 = vmatpush1.bf16.msra.mxu0 0
        %2295 = vmatprep.subr.bf16.mxu0 0
        %2296 = vmatpush1.bf16.msra.mxu0 0
        %2297 = vmatprep.subr.bf16.mxu0 0
        %2298 = vmatpush1.bf16.msra.mxu0 0
        %2299 = vmatprep.subr.bf16.mxu0 0
        %2300 = vmatpush1.bf16.msra.mxu0 0
        %2301 = vmatprep.mubr.bf16.mxu0 0
        %2302 = vmatmul.mubr.bf16.gmra.mrb[0].mxu0 %v2076
        %v2303 = vpop.f32.mrb[0].mxu0
        %v2304 = vadd.f32 0.0, %v2303
        %v2305 = vpop.f32.mrb[0].mxu0
        %v2306 = vadd.f32 0.0, %v2305
        %v2307 = vpop.f32.mrb[0].mxu0
        %v2308 = vpop.f32.mrb[0].mxu0
        %2309 = vdwg.mxu0
        %2310 = vmatprep.subr.bf16.mxu0 %v2208
        %2311 = vmatpush1.bf16.msra.mxu0 %v2207
        %2312 = vmatprep.subr.bf16.mxu0 %v2212
        %2313 = vmatpush1.bf16.msra.mxu0 %v2211
        %2314 = vmatprep.subr.bf16.mxu0 %v2216
        %2315 = vmatpush1.bf16.msra.mxu0 %v2215
        %2316 = vmatprep.subr.bf16.mxu0 %v2220
        %2317 = vmatpush1.bf16.msra.mxu0 %v2219
        %2318 = vmatprep.subr.bf16.mxu0 %v2224
        %2319 = vmatpush1.bf16.msra.mxu0 %v2223
        %2320 = vmatprep.subr.bf16.mxu0 %v2228
        %2321 = vmatpush1.bf16.msra.mxu0 %v2227
        %2322 = vmatprep.subr.bf16.mxu0 %v2232
        %2323 = vmatpush1.bf16.msra.mxu0 %v2231
        %2324 = vmatprep.subr.bf16.mxu0 %v2236
        %2325 = vmatpush1.bf16.msra.mxu0 %v2235
        %2326 = vmatprep.subr.bf16.mxu0 0
        %2327 = vmatpush1.bf16.msra.mxu0 0
        %2328 = vmatprep.subr.bf16.mxu0 0
        %2329 = vmatpush1.bf16.msra.mxu0 0
        %2330 = vmatprep.subr.bf16.mxu0 0
        %2331 = vmatpush1.bf16.msra.mxu0 0
        %2332 = vmatprep.subr.bf16.mxu0 0
        %2333 = vmatpush1.bf16.msra.mxu0 0
        %2334 = vmatprep.subr.bf16.mxu0 0
        %2335 = vmatpush1.bf16.msra.mxu0 0
        %2336 = vmatprep.subr.bf16.mxu0 0
        %2337 = vmatpush1.bf16.msra.mxu0 0
        %2338 = vmatprep.subr.bf16.mxu0 0
        %2339 = vmatpush1.bf16.msra.mxu0 0
        %2340 = vmatprep.subr.bf16.mxu0 0
        %2341 = vmatpush1.bf16.msra.mxu0 0
        %2342 = vmatprep.mubr.bf16.mxu0 0
        %2343 = vmatmul.mubr.bf16.gmra.mrb[0].mxu0 %v2076
        %v2344 = vpop.f32.mrb[0].mxu0
        %v2345 = vadd.f32 0.0, %v2344
        %v2346 = vpop.f32.mrb[0].mxu0
        %v2347 = vadd.f32 0.0, %v2346
        %v2348 = vpop.f32.mrb[0].mxu0
        %v2349 = vpop.f32.mrb[0].mxu0
        %2350 = vdwg.mxu0
        %v2351 = vadd.f32 %v2072, %v2304
        %v2352 = vadd.f32 %v2073, %v2306
        %v2353 = vadd.f32 %v2074, %v2345
        %v2354 = vadd.f32 %v2075, %v2347
        %v2355 = vxor.u32 %v2351, 2147483648
        %v2356 = vxor.u32 %v2352, 2147483648
        %v2357 = vxor.u32 %v2353, 2147483648
        %v2358 = vmul.f32 %v2355, 1.442695
        %v2359 = vpow.pop %v2358
        %v2360 = vmul.f32 %v2356, 1.442695
        %v2361 = vpow.pop %v2360
        %v2362 = vmul.f32 %v2357, 1.442695
        %v2363 = vpow.pop %v2362
        %v2364 = vadd.f32 %v2359, 1.0
        %v2365 = vadd.f32 %v2361, 1.0
        %v2366 = vadd.f32 %v2363, 1.0
        %v2367 = vrcp.pop %v2364
        %v2368 = vmul.f32 1.0, %v2367
        %v2369 = vrcp.pop %v2365
        %v2370 = vmul.f32 1.0, %v2369
        %v2371 = vrcp.pop %v2366
        %v2372 = vmul.f32 1.0, %v2371
        %v2373 = vtanh.pop %v2354
        %v2374 = vmul.f32 %v2370, %v2063
        %v2375 = vmul.f32 %v2368, %v2373
        %v2376 = vadd.f32 %v2374, %v2375
        %v2377 = vtanh.pop %v2376
        %v2378 = vmul.f32 %v2372, %v2377
        %s2379 = sadd.s32 %s602, 16
        %s2380 = scalar_lea.vmem [#allocation2], %s2379
        %2381 = vst [vmem:[%s2380] sm:$0xff] %v2378
        %s2382 = smul.u32 3, 4
        %s2383 = smul.addr %s2382, 8
        %s2384 = scalar_lea.vmem [#allocation3], %s2383
        %v2385 = vld [vmem:[%s2384] sm:$0xff]
        %v2386 = vld [vmem:[%s2384 + $0x8] sm:$0xff]
        %v2387 = vld [vmem:[%s2384 + $0x10] sm:$0xff]
        %v2388 = vld [vmem:[%s2384 + $0x18] sm:$0xff]
        %v2389 = vpack.c.bf16 %v2378, %v2378
        %v2390 = vld [vmem:[%s495] sm:$0xff]
        %v2391 = vld [vmem:[%s495 + $0x8] sm:$0xff]
        %v2392 = vld [vmem:[%s495 + $0x10] sm:$0xff]
        %v2393 = vld [vmem:[%s495 + $0x18] sm:$0xff]
        %v2394 = vld [vmem:[%s495 + $0x20] sm:$0xff]
        %v2395 = vld [vmem:[%s495 + $0x28] sm:$0xff]
        %v2396 = vld [vmem:[%s495 + $0x30] sm:$0xff]
        %v2397 = vld [vmem:[%s495 + $0x38] sm:$0xff]
        %v2398 = vld [vmem:[%s495 + $0x40] sm:$0xff]
        %v2399 = vld [vmem:[%s495 + $0x48] sm:$0xff]
        %v2400 = vld [vmem:[%s495 + $0x50] sm:$0xff]
        %v2401 = vld [vmem:[%s495 + $0x58] sm:$0xff]
        %v2402 = vld [vmem:[%s495 + $0x60] sm:$0xff]
        %v2403 = vld [vmem:[%s495 + $0x68] sm:$0xff]
        %v2404 = vld [vmem:[%s495 + $0x70] sm:$0xff]
        %v2405 = vld [vmem:[%s495 + $0x78] sm:$0xff]
        %v2406 = vld [vmem:[%s495 + $0x80] sm:$0xff]
        %v2407 = vld [vmem:[%s495 + $0x88] sm:$0xff]
        %v2408 = vld [vmem:[%s495 + $0x90] sm:$0xff]
        %v2409 = vld [vmem:[%s495 + $0x98] sm:$0xff]
        %v2410 = vld [vmem:[%s495 + $0xa0] sm:$0xff]
        %v2411 = vld [vmem:[%s495 + $0xa8] sm:$0xff]
        %v2412 = vld [vmem:[%s495 + $0xb0] sm:$0xff]
        %v2413 = vld [vmem:[%s495 + $0xb8] sm:$0xff]
        %v2414 = vld [vmem:[%s495 + $0xc0] sm:$0xff]
        %v2415 = vld [vmem:[%s495 + $0xc8] sm:$0xff]
        %v2416 = vld [vmem:[%s495 + $0xd0] sm:$0xff]
        %v2417 = vld [vmem:[%s495 + $0xd8] sm:$0xff]
        %v2418 = vld [vmem:[%s495 + $0xe0] sm:$0xff]
        %v2419 = vld [vmem:[%s495 + $0xe8] sm:$0xff]
        %v2420 = vld [vmem:[%s495 + $0xf0] sm:$0xff]
        %v2421 = vld [vmem:[%s495 + $0xf8] sm:$0xff]
        %v2454 = vunpack.c.l.b16 %v2390
        %v2455 = vunpack.c.h.b16 %v2390
        %v2456 = vunpack.c.l.b16 %v2391
        %v2457 = vunpack.c.h.b16 %v2391
        %v2458 = vunpack.c.l.b16 %v2392
        %v2459 = vunpack.c.h.b16 %v2392
        %v2460 = vunpack.c.l.b16 %v2393
        %v2461 = vunpack.c.h.b16 %v2393
        %v2462 = vunpack.c.l.b16 %v2394
        %v2463 = vunpack.c.h.b16 %v2394
        %v2464 = vunpack.c.l.b16 %v2395
        %v2465 = vunpack.c.h.b16 %v2395
        %v2466 = vunpack.c.l.b16 %v2396
        %v2467 = vunpack.c.h.b16 %v2396
        %v2468 = vunpack.c.l.b16 %v2397
        %v2469 = vunpack.c.h.b16 %v2397
        %v2470 = vunpack.c.l.b16 %v2398
        %v2471 = vunpack.c.h.b16 %v2398
        %v2472 = vunpack.c.l.b16 %v2399
        %v2473 = vunpack.c.h.b16 %v2399
        %v2474 = vunpack.c.l.b16 %v2400
        %v2475 = vunpack.c.h.b16 %v2400
        %v2476 = vunpack.c.l.b16 %v2401
        %v2477 = vunpack.c.h.b16 %v2401
        %v2478 = vunpack.c.l.b16 %v2402
        %v2479 = vunpack.c.h.b16 %v2402
        %v2480 = vunpack.c.l.b16 %v2403
        %v2481 = vunpack.c.h.b16 %v2403
        %v2482 = vunpack.c.l.b16 %v2404
        %v2483 = vunpack.c.h.b16 %v2404
        %v2484 = vunpack.c.l.b16 %v2405
        %v2485 = vunpack.c.h.b16 %v2405
        %v2486 = vunpack.c.l.b16 %v2406
        %v2487 = vunpack.c.h.b16 %v2406
        %v2488 = vunpack.c.l.b16 %v2407
        %v2489 = vunpack.c.h.b16 %v2407
        %v2490 = vunpack.c.l.b16 %v2408
        %v2491 = vunpack.c.h.b16 %v2408
        %v2492 = vunpack.c.l.b16 %v2409
        %v2493 = vunpack.c.h.b16 %v2409
        %v2494 = vunpack.c.l.b16 %v2410
        %v2495 = vunpack.c.h.b16 %v2410
        %v2496 = vunpack.c.l.b16 %v2411
        %v2497 = vunpack.c.h.b16 %v2411
        %v2498 = vunpack.c.l.b16 %v2412
        %v2499 = vunpack.c.h.b16 %v2412
        %v2500 = vunpack.c.l.b16 %v2413
        %v2501 = vunpack.c.h.b16 %v2413
        %v2502 = vunpack.c.l.b16 %v2414
        %v2503 = vunpack.c.h.b16 %v2414
        %v2504 = vunpack.c.l.b16 %v2415
        %v2505 = vunpack.c.h.b16 %v2415
        %v2506 = vunpack.c.l.b16 %v2416
        %v2507 = vunpack.c.h.b16 %v2416
        %v2508 = vunpack.c.l.b16 %v2417
        %v2509 = vunpack.c.h.b16 %v2417
        %v2510 = vunpack.c.l.b16 %v2418
        %v2511 = vunpack.c.h.b16 %v2418
        %v2512 = vunpack.c.l.b16 %v2419
        %v2513 = vunpack.c.h.b16 %v2419
        %v2514 = vunpack.c.l.b16 %v2420
        %v2515 = vunpack.c.h.b16 %v2420
        %v2516 = vunpack.c.l.b16 %v2421
        %v2517 = vunpack.c.h.b16 %v2421
        %v2518 = vpack.c.b16 %v2458, %v2454
        %v2519 = vpack.c.b16 %v2459, %v2455
        %v2520 = vpack.c.b16 %v2460, %v2456
        %v2521 = vpack.c.b16 %v2461, %v2457
        %v2522 = vpack.c.b16 %v2466, %v2462
        %v2523 = vpack.c.b16 %v2467, %v2463
        %v2524 = vpack.c.b16 %v2468, %v2464
        %v2525 = vpack.c.b16 %v2469, %v2465
        %v2526 = vpack.c.b16 %v2474, %v2470
        %v2527 = vpack.c.b16 %v2475, %v2471
        %v2528 = vpack.c.b16 %v2476, %v2472
        %v2529 = vpack.c.b16 %v2477, %v2473
        %v2530 = vpack.c.b16 %v2482, %v2478
        %v2531 = vpack.c.b16 %v2483, %v2479
        %v2532 = vpack.c.b16 %v2484, %v2480
        %v2533 = vpack.c.b16 %v2485, %v2481
        %v2534 = vpack.c.b16 %v2490, %v2486
        %v2535 = vpack.c.b16 %v2491, %v2487
        %v2536 = vpack.c.b16 %v2492, %v2488
        %v2537 = vpack.c.b16 %v2493, %v2489
        %v2538 = vpack.c.b16 %v2498, %v2494
        %v2539 = vpack.c.b16 %v2499, %v2495
        %v2540 = vpack.c.b16 %v2500, %v2496
        %v2541 = vpack.c.b16 %v2501, %v2497
        %v2542 = vpack.c.b16 %v2506, %v2502
        %v2543 = vpack.c.b16 %v2507, %v2503
        %v2544 = vpack.c.b16 %v2508, %v2504
        %v2545 = vpack.c.b16 %v2509, %v2505
        %v2546 = vpack.c.b16 %v2514, %v2510
        %v2547 = vpack.c.b16 %v2515, %v2511
        %v2548 = vpack.c.b16 %v2516, %v2512
        %v2549 = vpack.c.b16 %v2517, %v2513
        %2582 = vmatprep.subr.bf16.mxu0 %v2519
        %2583 = vmatpush1.bf16.msra.mxu0 %v2518
        %2584 = vmatprep.subr.bf16.mxu0 %v2523
        %2585 = vmatpush1.bf16.msra.mxu0 %v2522
        %2586 = vmatprep.subr.bf16.mxu0 %v2527
        %2587 = vmatpush1.bf16.msra.mxu0 %v2526
        %2588 = vmatprep.subr.bf16.mxu0 %v2531
        %2589 = vmatpush1.bf16.msra.mxu0 %v2530
        %2590 = vmatprep.subr.bf16.mxu0 %v2535
        %2591 = vmatpush1.bf16.msra.mxu0 %v2534
        %2592 = vmatprep.subr.bf16.mxu0 %v2539
        %2593 = vmatpush1.bf16.msra.mxu0 %v2538
        %2594 = vmatprep.subr.bf16.mxu0 %v2543
        %2595 = vmatpush1.bf16.msra.mxu0 %v2542
        %2596 = vmatprep.subr.bf16.mxu0 %v2547
        %2597 = vmatpush1.bf16.msra.mxu0 %v2546
        %2598 = vmatprep.subr.bf16.mxu0 0
        %2599 = vmatpush1.bf16.msra.mxu0 0
        %2600 = vmatprep.subr.bf16.mxu0 0
        %2601 = vmatpush1.bf16.msra.mxu0 0
        %2602 = vmatprep.subr.bf16.mxu0 0
        %2603 = vmatpush1.bf16.msra.mxu0 0
        %2604 = vmatprep.subr.bf16.mxu0 0
        %2605 = vmatpush1.bf16.msra.mxu0 0
        %2606 = vmatprep.subr.bf16.mxu0 0
        %2607 = vmatpush1.bf16.msra.mxu0 0
        %2608 = vmatprep.subr.bf16.mxu0 0
        %2609 = vmatpush1.bf16.msra.mxu0 0
        %2610 = vmatprep.subr.bf16.mxu0 0
        %2611 = vmatpush1.bf16.msra.mxu0 0
        %2612 = vmatprep.subr.bf16.mxu0 0
        %2613 = vmatpush1.bf16.msra.mxu0 0
        %2614 = vmatprep.mubr.bf16.mxu0 0
        %2615 = vmatmul.mubr.bf16.gmra.mrb[0].mxu0 %v2389
        %v2616 = vpop.f32.mrb[0].mxu0
        %v2617 = vadd.f32 0.0, %v2616
        %v2618 = vpop.f32.mrb[0].mxu0
        %v2619 = vadd.f32 0.0, %v2618
        %v2620 = vpop.f32.mrb[0].mxu0
        %v2621 = vpop.f32.mrb[0].mxu0
        %2622 = vdwg.mxu0
        %2623 = vmatprep.subr.bf16.mxu0 %v2521
        %2624 = vmatpush1.bf16.msra.mxu0 %v2520
        %2625 = vmatprep.subr.bf16.mxu0 %v2525
        %2626 = vmatpush1.bf16.msra.mxu0 %v2524
        %2627 = vmatprep.subr.bf16.mxu0 %v2529
        %2628 = vmatpush1.bf16.msra.mxu0 %v2528
        %2629 = vmatprep.subr.bf16.mxu0 %v2533
        %2630 = vmatpush1.bf16.msra.mxu0 %v2532
        %2631 = vmatprep.subr.bf16.mxu0 %v2537
        %2632 = vmatpush1.bf16.msra.mxu0 %v2536
        %2633 = vmatprep.subr.bf16.mxu0 %v2541
        %2634 = vmatpush1.bf16.msra.mxu0 %v2540
        %2635 = vmatprep.subr.bf16.mxu0 %v2545
        %2636 = vmatpush1.bf16.msra.mxu0 %v2544
        %2637 = vmatprep.subr.bf16.mxu0 %v2549
        %2638 = vmatpush1.bf16.msra.mxu0 %v2548
        %2639 = vmatprep.subr.bf16.mxu0 0
        %2640 = vmatpush1.bf16.msra.mxu0 0
        %2641 = vmatprep.subr.bf16.mxu0 0
        %2642 = vmatpush1.bf16.msra.mxu0 0
        %2643 = vmatprep.subr.bf16.mxu0 0
        %2644 = vmatpush1.bf16.msra.mxu0 0
        %2645 = vmatprep.subr.bf16.mxu0 0
        %2646 = vmatpush1.bf16.msra.mxu0 0
        %2647 = vmatprep.subr.bf16.mxu0 0
        %2648 = vmatpush1.bf16.msra.mxu0 0
        %2649 = vmatprep.subr.bf16.mxu0 0
        %2650 = vmatpush1.bf16.msra.mxu0 0
        %2651 = vmatprep.subr.bf16.mxu0 0
        %2652 = vmatpush1.bf16.msra.mxu0 0
        %2653 = vmatprep.subr.bf16.mxu0 0
        %2654 = vmatpush1.bf16.msra.mxu0 0
        %2655 = vmatprep.mubr.bf16.mxu0 0
        %2656 = vmatmul.mubr.bf16.gmra.mrb[0].mxu0 %v2389
        %v2657 = vpop.f32.mrb[0].mxu0
        %v2658 = vadd.f32 0.0, %v2657
        %v2659 = vpop.f32.mrb[0].mxu0
        %v2660 = vadd.f32 0.0, %v2659
        %v2661 = vpop.f32.mrb[0].mxu0
        %v2662 = vpop.f32.mrb[0].mxu0
        %2663 = vdwg.mxu0
        %v2664 = vadd.f32 %v2385, %v2617
        %v2665 = vadd.f32 %v2386, %v2619
        %v2666 = vadd.f32 %v2387, %v2658
        %v2667 = vadd.f32 %v2388, %v2660
        %v2668 = vxor.u32 %v2664, 2147483648
        %v2669 = vxor.u32 %v2665, 2147483648
        %v2670 = vxor.u32 %v2666, 2147483648
        %v2671 = vmul.f32 %v2668, 1.442695
        %v2672 = vpow.pop %v2671
        %v2673 = vmul.f32 %v2669, 1.442695
        %v2674 = vpow.pop %v2673
        %v2675 = vmul.f32 %v2670, 1.442695
        %v2676 = vpow.pop %v2675
        %v2677 = vadd.f32 %v2672, 1.0
        %v2678 = vadd.f32 %v2674, 1.0
        %v2679 = vadd.f32 %v2676, 1.0
        %v2680 = vrcp.pop %v2677
        %v2681 = vmul.f32 1.0, %v2680
        %v2682 = vrcp.pop %v2678
        %v2683 = vmul.f32 1.0, %v2682
        %v2684 = vrcp.pop %v2679
        %v2685 = vmul.f32 1.0, %v2684
        %v2686 = vtanh.pop %v2667
        %v2687 = vmul.f32 %v2683, %v2376
        %v2688 = vmul.f32 %v2681, %v2686
        %v2689 = vadd.f32 %v2687, %v2688
        %v2690 = vtanh.pop %v2689
        %v2691 = vmul.f32 %v2685, %v2690
        %s2692 = sadd.s32 %s602, 24
        %s2693 = scalar_lea.vmem [#allocation2], %s2692
        %2694 = vst [vmem:[%s2693] sm:$0xff] %v2691
        %2695 = vst [vmem:[#allocation4] sm:$0xff] %v2691
        %2696 = vst [vmem:[#allocation5] sm:$0xff] %v2689
        %p2697 = scmp.eq.s32.totalorder %s43, 1
        // Predicated region
        $region89: #{tpu_custom_call.1} parent=55 // pred_check
          %p2698 = pneg %p2697
        $region90: #{tpu_custom_call.1} parent=55 // pred_check_branch
          %2700 = sbr.rel (%p2698) target = $region92
        $region91: #{tpu_custom_call.1} parent=55 // pred_region
          %2701 = vst [vmem:[%s582] sm:$0xff] %v2691
          %2702 = vst [vmem:[%s589] sm:$0xff] %v2689
        $region92: #{tpu_custom_call.1} parent=55 // pred_fallthru
          _
        %p2703 = scmp.eq.s32.totalorder %s42, 1
        // Predicated region
        $region93: #{tpu_custom_call.1} parent=55 // pred_check
          %p2704 = pneg %p2703
        $region94: #{tpu_custom_call.1} parent=55 // pred_check_branch
          %2706 = sbr.rel (%p2704) target = $region96
        $region95: #{tpu_custom_call.1} parent=55 // pred_region
          %s2707 = scalar_lea.vmem [#allocation2], %s602
          %v2708 = vld [vmem:[%s2707] sm:$0xff]
          %v2709 = vld [vmem:[%s2707 + $0x8] sm:$0xff]
          %v2710 = vld [vmem:[%s2707 + $0x10] sm:$0xff]
          %v2711 = vld [vmem:[%s2707 + $0x18] sm:$0xff]
          %v2712 = vpack.c.bf16 %v2709, %v2708
          %v2713 = vpack.c.bf16 %v2711, %v2710
          %v2714 = vld [vmem:[#allocation14] sm:$0xf]
          %v2715 = vld [vmem:[#allocation14 + $0x4] sm:$0xf]
          %v2716 = vld [vmem:[#allocation14 + $0x8] sm:$0xf]
          %v2717 = vld [vmem:[#allocation14 + $0xc] sm:$0xf]
          %v2718 = vld [vmem:[#allocation14 + $0x10] sm:$0xf]
          %v2719 = vld [vmem:[#allocation14 + $0x14] sm:$0xf]
          %v2720 = vld [vmem:[#allocation14 + $0x18] sm:$0xf]
          %v2721 = vld [vmem:[#allocation14 + $0x1c] sm:$0xf]
          %v2722 = vld [vmem:[#allocation14 + $0x20] sm:$0xf]
          %v2723 = vld [vmem:[#allocation14 + $0x24] sm:$0xf]
          %v2724 = vld [vmem:[#allocation14 + $0x28] sm:$0xf]
          %v2725 = vld [vmem:[#allocation14 + $0x2c] sm:$0xf]
          %v2726 = vld [vmem:[#allocation14 + $0x30] sm:$0xf]
          %v2727 = vld [vmem:[#allocation14 + $0x34] sm:$0xf]
          %v2728 = vld [vmem:[#allocation14 + $0x38] sm:$0xf]
          %v2729 = vld [vmem:[#allocation14 + $0x3c] sm:$0xf]
          %v2730 = vld [vmem:[%s8] sm:$0x1]
          %v2732 = vlaneseq
          %v2733 = vshrl.u32 %v2732, 7
          %v2734 = vsub.s32 0, %v2733
          %v2735 = vrot.slane %v2730, %v2734
          %v2753 = vunpack.c.l.b16 %v2714
          %v2754 = vunpack.c.l.b16 %v2715
          %v2755 = vunpack.c.l.b16 %v2716
          %v2756 = vunpack.c.l.b16 %v2717
          %v2757 = vunpack.c.l.b16 %v2718
          %v2758 = vunpack.c.l.b16 %v2719
          %v2759 = vunpack.c.l.b16 %v2720
          %v2760 = vunpack.c.l.b16 %v2721
          %v2761 = vunpack.c.l.b16 %v2722
          %v2762 = vunpack.c.l.b16 %v2723
          %v2763 = vunpack.c.l.b16 %v2724
          %v2764 = vunpack.c.l.b16 %v2725
          %v2765 = vunpack.c.l.b16 %v2726
          %v2766 = vunpack.c.l.b16 %v2727
          %v2767 = vunpack.c.l.b16 %v2728
          %v2768 = vunpack.c.l.b16 %v2729
          %v2769 = vpack.c.b16 %v2754, %v2753
          %v2770 = vpack.c.b16 %v2756, %v2755
          %v2771 = vpack.c.b16 %v2758, %v2757
          %v2772 = vpack.c.b16 %v2760, %v2759
          %v2773 = vpack.c.b16 %v2762, %v2761
          %v2774 = vpack.c.b16 %v2764, %v2763
          %v2775 = vpack.c.b16 %v2766, %v2765
          %v2776 = vpack.c.b16 %v2768, %v2767
          %2785 = vmatprep.subr.bf16.mxu0 0
          %2786 = vmatpush1.bf16.msra.mxu0 %v2769
          %2787 = vmatprep.subr.bf16.mxu0 0
          %2788 = vmatpush1.bf16.msra.mxu0 %v2770
          %2789 = vmatprep.subr.bf16.mxu0 0
          %2790 = vmatpush1.bf16.msra.mxu0 %v2771
          %2791 = vmatprep.subr.bf16.mxu0 0
          %2792 = vmatpush1.bf16.msra.mxu0 %v2772
          %2793 = vmatprep.subr.bf16.mxu0 0
          %2794 = vmatpush1.bf16.msra.mxu0 %v2773
          %2795 = vmatprep.subr.bf16.mxu0 0
          %2796 = vmatpush1.bf16.msra.mxu0 %v2774
          %2797 = vmatprep.subr.bf16.mxu0 0
          %2798 = vmatpush1.bf16.msra.mxu0 %v2775
          %2799 = vmatprep.subr.bf16.mxu0 0
          %2800 = vmatpush1.bf16.msra.mxu0 %v2776
          %2801 = vmatprep.subr.bf16.mxu0 0
          %2802 = vmatpush1.bf16.msra.mxu0 0
          %2803 = vmatprep.subr.bf16.mxu0 0
          %2804 = vmatpush1.bf16.msra.mxu0 0
          %2805 = vmatprep.subr.bf16.mxu0 0
          %2806 = vmatpush1.bf16.msra.mxu0 0
          %2807 = vmatprep.subr.bf16.mxu0 0
          %2808 = vmatpush1.bf16.msra.mxu0 0
          %2809 = vmatprep.subr.bf16.mxu0 0
          %2810 = vmatpush1.bf16.msra.mxu0 0
          %2811 = vmatprep.subr.bf16.mxu0 0
          %2812 = vmatpush1.bf16.msra.mxu0 0
          %2813 = vmatprep.subr.bf16.mxu0 0
          %2814 = vmatpush1.bf16.msra.mxu0 0
          %2815 = vmatprep.subr.bf16.mxu0 0
          %2816 = vmatpush1.bf16.msra.mxu0 0
          %2817 = vmatprep.mubr.bf16.mxu0 0
          %2818 = vmatmul.mubr.bf16.gmra.mrb[0].mxu0 %v2712
          %v2819 = vpop.f32.mrb[0].mxu0
          %v2820 = vadd.f32 %v2735, %v2819
          %v2821 = vpop.f32.mrb[0].mxu0
          %v2822 = vpop.f32.mrb[0].mxu0
          %v2823 = vadd.f32 %v2735, %v2822
          %v2824 = vpop.f32.mrb[0].mxu0
          %2825 = vmatprep.mubr.bf16.mxu0 0
          %2826 = vmatmul.mubr.bf16.gmra.mrb[0].mxu0 %v2713
          %v2827 = vpop.f32.mrb[0].mxu0
          %v2828 = vadd.f32 %v2735, %v2827
          %v2829 = vpop.f32.mrb[0].mxu0
          %v2830 = vpop.f32.mrb[0].mxu0
          %v2831 = vadd.f32 %v2735, %v2830
          %v2832 = vpop.f32.mrb[0].mxu0
          %2833 = vdwg.mxu0
          %2834 = vst [vmem:[%s575] sm:$0xff] %v2820
          %2835 = vst [vmem:[%s575 + $0x8] sm:$0xff] %v2823
          %2836 = vst [vmem:[%s575 + $0x10] sm:$0xff] %v2828
          %2837 = vst [vmem:[%s575 + $0x18] sm:$0xff] %v2831
        $region96: #{tpu_custom_call.1} parent=55 // pred_fallthru
          _
        %s2838 = sand.u32 %s277, 1
        %s2839 = scalar_lea.sflag [#allocation8], %s2838
        %s2840 = sand.u32 %s277, 1
        %s2841 = smul.addr %s2840, 32
        %s2842 = scalar_lea.vmem [#allocation15], %s2841
        %s2843 = sand.u32 %s38, 1
        %s2844 = scalar_lea.sflag [#allocation17], %s2843
        %s2845 = sand.u32 %s303, 1
        %s2846 = smul.addr %s2845, 8
        %s2847 = scalar_lea.vmem [#allocation16], %s2846
        %s2848 = sand.u32 %s38, 1
        %s2849 = scalar_lea.sflag [#allocation17], %s2848
        %s2850 = sand.u32 %s329, 1
        %s2851 = smul.addr %s2850, 8
        %s2852 = scalar_lea.vmem [#allocation18], %s2851
        // Predicated region
        $region97: #{tpu_custom_call.1} parent=55 // pred_check
          %p2853 = pneg %p287
        $region98: #{tpu_custom_call.1} parent=55 // pred_check_branch
          %2855 = sbr.rel (%p2853) target = $region100
        $region99: #{tpu_custom_call.1} parent=55 // pred_region
          %s2856 = smul.u32 4, %s43
          %s2858 = ssub.s32 512, 512
          %2859 = vsyncadd %s2839, %s2858
          %s2860 = smul.addr %s2856, 128
          %s2861 = scalar_lea.hbm %s9, %s2860
          %s2862 = sshll.u32 %s2842, 4
          %s2863 = int_to_ptr.vmem [resolvable:$true] %s2862
          %2868 = dma.vmem_to_hbm [thread:$0]  %s2863, 512, %s2861, %s2839, 128, 128, 8
        $region100: #{tpu_custom_call.1} parent=55 // pred_fallthru
          _
        // Predicated region
        $region101: #{tpu_custom_call.1} parent=55 // pred_check
          %p2869 = pneg %p313
        $region102: #{tpu_custom_call.1} parent=55 // pred_check_branch
          %2871 = sbr.rel (%p2869) target = $region104
        $region103: #{tpu_custom_call.1} parent=55 // pred_region
          %s2873 = ssub.s32 128, 128
          %2874 = vsyncadd %s2844, %s2873
          %s2875 = smul.addr %s42, 128
          %s2876 = scalar_lea.hbm %s10, %s2875
          %s2878 = sshll.u32 %s2847, 4
          %s2879 = int_to_ptr.vmem [resolvable:$true] %s2878
          %2881 = dma.vmem_to_hbm [thread:$0]  %s2879, 128, %s2876, %s2844
        $region104: #{tpu_custom_call.1} parent=55 // pred_fallthru
          _
        // Predicated region
        $region105: #{tpu_custom_call.1} parent=55 // pred_check
          %p2882 = pneg %p339
        $region106: #{tpu_custom_call.1} parent=55 // pred_check_branch
          %2884 = sbr.rel (%p2882) target = $region108
        $region107: #{tpu_custom_call.1} parent=55 // pred_region
          %s2886 = ssub.s32 128, 128
          %2887 = vsyncadd %s2849, %s2886
          %s2888 = smul.addr %s42, 128
          %s2889 = scalar_lea.hbm %s11, %s2888
          %s2891 = sshll.u32 %s2852, 4
          %s2892 = int_to_ptr.vmem [resolvable:$true] %s2891
          %2894 = dma.vmem_to_hbm [thread:$0]  %s2892, 128, %s2889, %s2849
        $region108: #{tpu_custom_call.1} parent=55 // pred_fallthru
          _
      $region56: #{tpu_custom_call.1} parent=5 // pred_fallthru
        _
      %p2895 = scmp.le.s32.totalorder 2, %s33
      // Predicated region
      $region109: #{tpu_custom_call.1} parent=5 // pred_check
        %p2896 = pneg %p2895
      $region110: #{tpu_custom_call.1} parent=5 // pred_check_branch
        %2898 = sbr.rel (%p2896) target = $region112
      $region111: #{tpu_custom_call.1} parent=5 // pred_region
        %s2899 = ssub.s32 %s33, 2
        // Predicated region
        $region113: #{tpu_custom_call.1} parent=111 // pred_check
          %p2900 = pneg %p293
        $region114: #{tpu_custom_call.1} parent=111 // pred_check_branch
          %2902 = sbr.rel (%p2900) target = $region116
        $region115: #{tpu_custom_call.1} parent=111 // pred_region
          %s2903 = sand.u32 %s278, 1
          %s2904 = scalar_lea.sflag [#allocation8], %s2903
          %s2905 = sand.u32 %s278, 1
          %s2906 = smul.addr %s2905, 32
          %s2907 = scalar_lea.vmem [#allocation15], %s2906
          %2908 = dma.done %s2904, 512
        $region116: #{tpu_custom_call.1} parent=111 // pred_fallthru
          _
        // Predicated region
        $region117: #{tpu_custom_call.1} parent=111 // pred_check
          %p2909 = pneg %p319
        $region118: #{tpu_custom_call.1} parent=111 // pred_check_branch
          %2911 = sbr.rel (%p2909) target = $region120
        $region119: #{tpu_custom_call.1} parent=111 // pred_region
          %s2912 = sand.u32 %s39, 1
          %s2913 = scalar_lea.sflag [#allocation17], %s2912
          %s2914 = sand.u32 %s304, 1
          %s2915 = smul.addr %s2914, 8
          %s2916 = scalar_lea.vmem [#allocation16], %s2915
          %2917 = dma.done %s2913, 128
        $region120: #{tpu_custom_call.1} parent=111 // pred_fallthru
          _
        // Predicated region
        $region121: #{tpu_custom_call.1} parent=111 // pred_check
          %p2918 = pneg %p345
        $region122: #{tpu_custom_call.1} parent=111 // pred_check_branch
          %2920 = sbr.rel (%p2918) target = $region124
        $region123: #{tpu_custom_call.1} parent=111 // pred_region
          %s2921 = sand.u32 %s39, 1
          %s2922 = scalar_lea.sflag [#allocation17], %s2921
          %s2923 = sand.u32 %s330, 1
          %s2924 = smul.addr %s2923, 8
          %s2925 = scalar_lea.vmem [#allocation18], %s2924
          %2926 = dma.done %s2922, 128
        $region124: #{tpu_custom_call.1} parent=111 // pred_fallthru
          _
      $region112: #{tpu_custom_call.1} parent=5 // pred_fallthru
        _
    $region6: #{tpu_custom_call.1} parent=1 // loop_footer
      %s37 = sadd.s32 1, %s33
    $region7: #{tpu_custom_call.1} parent=1 // loop_footer_branch
      %32 = sbr.rel target = $region3
    $region8: #{tpu_custom_call.1} parent=1 // loop_exit
      _
    %2927 = vsyncpa [#allocation7], 1
    %s2928 = scalar_lea.sflag [#allocation7], 1
    %2929 = vsyncpa %s2928, 1
    %2930 = vsyncpa [#allocation10], 1
    %s2931 = scalar_lea.sflag [#allocation10], 1
    %2932 = vsyncpa %s2931, 1
    %2933 = vsyncpa [#allocation13], 1
    %s2934 = scalar_lea.sflag [#allocation13], 1
    %2935 = vsyncpa %s2934, 1
    %2936 = vsyncpa [#allocation8], 1
    %s2937 = scalar_lea.sflag [#allocation8], 1
    %2938 = vsyncpa %s2937, 1
    %2939 = vsyncpa [#allocation17], 1
    %s2940 = scalar_lea.sflag [#allocation17], 1
    %2941 = vsyncpa %s2940, 1

</llo_original>
